<compile_context>
chip_gen: v7x
topology: tpu7x:2x2x1
jax: 0.10.0
libtpu: 0.0.40
codegen_flags: <defaults>
</compile_context>

<pallas_src>
import functools
import math

import jax
import jax.numpy as jnp
from jax.experimental import pallas as pl
from jax.experimental.pallas import tpu as pltpu

# ---------------- model configuration (small, consistent with the module) ----
BATCH = 2
SEQ_LEN = 8          # length of each input sequence y
HIDDEN = 32          # hidden_size
SIZE = 4             # number of sin/cos harmonics
OUT_STEPS = 16       # out_steps
APPROX_STEPS = 100   # approx_steps
# step = get_t(out_steps).max() / out_steps
#      = (4*pi*out_steps/approx_steps) / out_steps = 4*pi/approx_steps
# (linspace's max is exactly its endpoint, so there is no (N-1)/N factor).
STEP = 4.0 * math.pi / APPROX_STEPS

# ---------------- parameter-slab row layout (single (240, 256) f32 slab) -----
_H, _S = HIDDEN, SIZE
SLAB_COLS = 8 * _H                          # 256 lanes (lane-aligned)
ROW_ENC_WHH = 0                             # (2H, 8H) fused encoder recurrent weight
ROW_RL_WHH = ROW_ENC_WHH + 2 * _H           # (H, 4H)  refinement recurrent weight
ROW_MLP_W1 = ROW_RL_WHH + _H                # (2H, 2H) block-diag converter layer 1
ROW_MLP_W2 = ROW_MLP_W1 + 2 * _H            # (2H, 2S+2) block-diag converter layer 2
ROW_PHASE = ROW_MLP_W2 + 2 * _H             # (2S, OUT_STEPS) [cos(phi); sin(phi)] table
ROW_ENC_W = ROW_PHASE + 2 * _S              # (1, 8H) encoder input-weight row
ROW_ENC_B = ROW_ENC_W + 1                   # (1, 8H) encoder combined bias
ROW_RL_W = ROW_ENC_B + 1                    # (1, 4H) refinement input-weight row
ROW_RL_B = ROW_RL_W + 1                     # (1, 4H) refinement combined bias
ROW_B1 = ROW_RL_B + 1                       # (1, 2H) converter layer-1 bias
ROW_B2 = ROW_B1 + 1                         # (1, 2S+2) converter layer-2 bias (+t_0,+C)
ROW_RF = ROW_B2 + 1                         # (1, H+1) rf_w | rf_b
ROW_TRIG = ROW_RF + 1                       # (1, 4S)  [coefs, coefs] | [0.., -pi/2..]
SLAB_ROWS = ((ROW_TRIG + 1 + 7) // 8) * 8   # 240 rows


def closed_form_kernel(y_ref, p_ref, out_ref, *, T_IN, H, S, OUT_STEPS):
    f32 = jnp.float32
    H2, H4 = 2 * H, 4 * H
    S2 = 2 * S
    NC = 2 * S + 2

    # ---- static views into the single parameter slab (free slices) ----------
    enc_whhT = p_ref[ROW_ENC_WHH:ROW_ENC_WHH + H2, :]           # (2H, 8H)
    rl_whhT = p_ref[ROW_RL_WHH:ROW_RL_WHH + H, 0:H4]            # (H, 4H)
    mlp_w1T = p_ref[ROW_MLP_W1:ROW_MLP_W1 + H2, 0:H2]           # (2H, 2H)
    mlp_w2T = p_ref[ROW_MLP_W2:ROW_MLP_W2 + H2, 0:NC]           # (2H, 2S+2)
    phase = p_ref[ROW_PHASE:ROW_PHASE + S2, 0:OUT_STEPS]        # (2S, OUT)
    enc_w = p_ref[ROW_ENC_W:ROW_ENC_W + 1, :]                   # (1, 8H)
    enc_b = p_ref[ROW_ENC_B:ROW_ENC_B + 1, :]                   # (1, 8H)
    rl_w = p_ref[ROW_RL_W:ROW_RL_W + 1, 0:H4]                   # (1, 4H)
    rl_b = p_ref[ROW_RL_B:ROW_RL_B + 1, 0:H4]                   # (1, 4H)
    b1 = p_ref[ROW_B1:ROW_B1 + 1, 0:H2]                         # (1, 2H)
    b2 = p_ref[ROW_B2:ROW_B2 + 1, 0:NC]                         # (1, 2S+2)
    rf_w = p_ref[ROW_RF:ROW_RF + 1, 0:H]                        # (1, H)
    rf_b = p_ref[ROW_RF:ROW_RF + 1, H:H + 1]                    # (1, 1)
    coefs2 = p_ref[ROW_TRIG:ROW_TRIG + 1, 0:S2]                 # (1, 2S)
    shift = p_ref[ROW_TRIG:ROW_TRIG + 1, S2:2 * S2]             # (1, 2S)

    def sigmoid(x):
        # exp on the EUP; approx reciprocal also on the EUP -> no VPU Newton steps
        return pl.reciprocal(1.0 + jnp.exp(-x), approx=True)

    def lstm_step(pre, h, c, whhT, G):
        # pre: hoisted input pre-activation (B, 4G); gate order [i, f, g(x2), o]
        gates = pre if h is None else pre + jnp.dot(h, whhT, preferred_element_type=f32)
        s = sigmoid(gates)                                      # ONE sigmoid pass
        i_g = s[:, 0 * G:1 * G]
        f_g = s[:, 1 * G:2 * G]
        g_g = 2.0 * s[:, 2 * G:3 * G] - 1.0                     # == tanh(pre_g)
        o_g = s[:, 3 * G:4 * G]
        c_new = i_g * g_g if c is None else f_g * c + i_g * g_g
        h_new = o_g * jnp.tanh(c_new)
        return h_new, c_new

    # ---- fused encoder LSTMs (t_inference || C_inference), fully unrolled ---
    y = y_ref[...]                                              # (B, T_IN)
    pre_enc = [y[:, t:t + 1] * enc_w + enc_b for t in range(T_IN)]   # hoisted
    h2 = c2 = None                                              # h0 = c0 = 0
    for t in range(T_IN):
        h2, c2 = lstm_step(pre_enc[t], h2, c2, enc_whhT, H2)
    # h2 = [h_t | h_c], shape (B, 2H)

    # ---- fused converter MLPs (block-diagonal, t_0 / C folded into b2) ------
    z = jnp.maximum(jnp.dot(h2, mlp_w1T, preferred_element_type=f32) + b1, 0.0)
    head = jnp.dot(z, mlp_w2T, preferred_element_type=f32) + b2      # (B, 2S+2)
    t0 = head[:, 0:1]                                           # (B, 1)
    c_cos = head[:, 1:1 + S]                                    # (B, S)  C[1,3,..]
    c_sin = head[:, 1 + S:1 + 2 * S]                            # (B, S)  C[2,4,..]
    c0 = head[:, 1 + 2 * S:2 + 2 * S]                           # (B, 1)  C[0]

    # ---- closed-form trig series via angle addition + one tiny MXU matmul ---
    # cos(w*(t0 + i*step)) = cosA*cos(phi) - sinA*sin(phi), phi = w*i*step is
    # batch-independent and precomputed host-side into `phase`.
    ext = t0 * coefs2 + shift                                   # (B, 2S); sin(x)=cos(x-pi/2)
    trig = jnp.cos(ext)                                         # ONE EUP push: [cosA | sinA]
    cosA = trig[:, 0:S]
    sinA = trig[:, S:S2]
    a_c = c_cos * cosA + c_sin * sinA
    a_s = c_sin * cosA - c_cos * sinA
    cf = c0 + jnp.dot(jnp.concatenate([a_c, a_s], axis=1), phase,
                      preferred_element_type=f32)               # (B, OUT_STEPS)

    # ---- refinement LSTM + per-step Linear(H, 1), per-step static stores ----
    pre_rl = [cf[:, t:t + 1] * rl_w + rl_b for t in range(OUT_STEPS)]   # hoisted
    h = c = None
    for t in range(OUT_STEPS):
        h, c = lstm_step(pre_rl[t], h, c, rl_whhT, H)
        out_ref[:, t:t + 1] = jnp.sum(h * rf_w, axis=-1, keepdims=True) + rf_b


# ---------------------------- parameter init / packing -----------------------
def init_lstm(key, hidden):
    k1, k2, k3, k4 = jax.random.split(key, 4)
    lim = 1.0 / math.sqrt(hidden)
    w_ih = jax.random.uniform(k1, (4 * hidden, 1), jnp.float32, -lim, lim)
    w_hh = jax.random.uniform(k2, (4 * hidden, hidden), jnp.float32, -lim, lim)
    b_ih = jax.random.uniform(k3, (4 * hidden,), jnp.float32, -lim, lim)
    b_hh = jax.random.uniform(k4, (4 * hidden,), jnp.float32, -lim, lim)
    return w_ih, w_hh, b_ih, b_hh


def init_linear(key, in_f, out_f):
    k1, k2 = jax.random.split(key)
    lim = 1.0 / math.sqrt(in_f)
    w = jax.random.uniform(k1, (out_f, in_f), jnp.float32, -lim, lim)
    b = jax.random.uniform(k2, (out_f,), jnp.float32, -lim, lim)
    return w, b


def make_param_slab(key):
    """Pack the 24 torch parameter tensors into ONE lane-aligned (240,256) slab."""
    H, S = HIDDEN, SIZE
    ks = jax.random.split(key, 10)
    ti = init_lstm(ks[0], H)
    ci = init_lstm(ks[1], H)
    rl = init_lstm(ks[2], H)
    tc_w1, tc_b1 = init_linear(ks[3], H, H)
    tc_w2, tc_b2 = init_linear(ks[4], H, 1)
    cc_w1, cc_b1 = init_linear(ks[5], H, H)
    cc_w2, cc_b2 = init_linear(ks[6], H, 2 * S + 1)
    rf_w, rf_b = init_linear(ks[7], H, 1)

    t0_p = jnp.zeros((1,), jnp.float32)                         # nn.Parameter t_0
    C_p = jax.random.uniform(ks[8], (2 * S + 1,)) - 0.5         # nn.Parameter C
    # TODO(synk): torch forward broadcasts coefs[i-1] (shape (2,)) against a
    # length-out_steps vector, which is ill-defined; use column 0 per harmonic.
    coefs = (5.0 * jax.random.uniform(ks[9], (S, 2)))[:, 0]     # (S,)

    gate_scale = (1.0, 1.0, 2.0, 1.0)   # fold x2 into g-gate (tanh = 2*sig(2x)-1)

    def split4(a):
        return [a[k * H:(k + 1) * H] for k in range(4)]         # [i, f, g, o]

    def blockdiag(a, b):
        za = jnp.zeros((a.shape[0], b.shape[1]), jnp.float32)
        zb = jnp.zeros((b.shape[0], a.shape[1]), jnp.float32)
        return jnp.concatenate([jnp.concatenate([a, za], 1),
                                jnp.concatenate([zb, b], 1)], 0)

    # --- fused encoder: gate blocks interleaved [i_t i_c | f_t f_c | g g | o o]
    ti_wih, ti_whh, ti_bih, ti_bhh = ti
    ci_wih, ci_whh, ci_bih, ci_bhh = ci
    wi_t, wi_c = split4(ti_wih), split4(ci_wih)                 # each (H, 1)
    wh_t, wh_c = split4(ti_whh), split4(ci_whh)                 # each (H, H)
    b_t, b_c = split4(ti_bih + ti_bhh), split4(ci_bih + ci_bhh)
    enc_w = jnp.concatenate(
        [gate_scale[k] * jnp.concatenate([wi_t[k][:, 0], wi_c[k][:, 0]]) for k in range(4)])
    enc_b = jnp.concatenate(
        [gate_scale[k] * jnp.concatenate([b_t[k], b_c[k]]) for k in range(4)])
    enc_whhT = jnp.concatenate(
        [gate_scale[k] * blockdiag(wh_t[k].T, wh_c[k].T) for k in range(4)], axis=1)

    # --- refinement LSTM (standard [i, f, g, o] layout, g scaled by 2) --------
    rl_wih, rl_whh, rl_bih, rl_bhh = rl
    wi_r, wh_r, b_r = split4(rl_wih), split4(rl_whh), split4(rl_bih + rl_bhh)
    rl_w = jnp.concatenate([gate_scale[k] * wi_r[k][:, 0] for k in range(4)])
    rl_b = jnp.concatenate([gate_scale[k] * b_r[k] for k in range(4)])
    rl_whhT = jnp.concatenate([gate_scale[k] * wh_r[k].T for k in range(4)], axis=1)

    # --- fused converter MLPs; layer-2 output = [t0 | cos 1..S | sin 1..S | C0]
    perm = jnp.array([2 * k - 1 for k in range(1, S + 1)]
                     + [2 * k for k in range(1, S + 1)] + [0])
    mlp_w1T = blockdiag(tc_w1.T, cc_w1.T)                       # (2H, 2H)
    mlp_w2T = blockdiag(tc_w2.T, (cc_w2.T)[:, perm])            # (2H, 2S+2)
    b1 = jnp.concatenate([tc_b1, cc_b1])                        # (2H,)
    b2 = jnp.concatenate([tc_b2 + t0_p, (cc_b2 + C_p)[perm]])   # (2S+2,)

    # --- batch-independent phase table + small trig helper vectors -----------
    idx = jnp.arange(OUT_STEPS, dtype=jnp.float32)
    phi = coefs[:, None] * (idx[None, :] * STEP)                # (S, OUT)
    phase = jnp.concatenate([jnp.cos(phi), jnp.sin(phi)], axis=0)   # (2S, OUT)
    coefs2 = jnp.concatenate([coefs, coefs])                    # (2S,)
    shift = jnp.concatenate([jnp.zeros((S,), jnp.float32),
                             jnp.full((S,), -0.5 * math.pi, jnp.float32)])

    slab = jnp.zeros((SLAB_ROWS, SLAB_COLS), jnp.float32)

    def put(s, row, a):
        a = jnp.asarray(a, jnp.float32)
        if a.ndim == 1:
            a = a[None, :]
        r, c = a.shape
        return s.at[row:row + r, 0:c].set(a)

    slab = put(slab, ROW_ENC_WHH, enc_whhT)
    slab = put(slab, ROW_RL_WHH, rl_whhT)
    slab = put(slab, ROW_MLP_W1, mlp_w1T)
    slab = put(slab, ROW_MLP_W2, mlp_w2T)
    slab = put(slab, ROW_PHASE, phase)
    slab = put(slab, ROW_ENC_W, enc_w)
    slab = put(slab, ROW_ENC_B, enc_b)
    slab = put(slab, ROW_RL_W, rl_w)
    slab = put(slab, ROW_RL_B, rl_b)
    slab = put(slab, ROW_B1, b1)
    slab = put(slab, ROW_B2, b2)
    slab = put(slab, ROW_RF, jnp.concatenate([rf_w[0], rf_b]))
    slab = put(slab, ROW_TRIG, jnp.concatenate([coefs2, shift]))
    return slab


# ---------------------------------- wrapper -----------------------------------
@jax.jit
def closed_form_forward(x, slab):
    """x: (B, seq_len, 1) batch-major (PyTorch convention) -> (B, out_steps, 1)."""
    b, t_in, _ = x.shape
    y2d = x[:, :, 0].astype(jnp.float32)                        # (B, T_IN)

    out = pl.pallas_call(
        functools.partial(closed_form_kernel,
                          T_IN=t_in, H=HIDDEN, S=SIZE, OUT_STEPS=OUT_STEPS),
        out_shape=jax.ShapeDtypeStruct((b, OUT_STEPS), jnp.float32),
        in_specs=[pl.BlockSpec(memory_space=pltpu.MemorySpace.VMEM),
                  pl.BlockSpec(memory_space=pltpu.MemorySpace.VMEM)],
        out_specs=pl.BlockSpec(memory_space=pltpu.MemorySpace.VMEM),
    )(y2d, slab)

    return out[:, :, None]                                      # (B, OUT_STEPS, 1)


if __name__ == "__main__":
    key = jax.random.PRNGKey(0)
    x = jax.random.normal(key, (BATCH, SEQ_LEN, 1), jnp.float32)
    slab = make_param_slab(jax.random.PRNGKey(1))

    pred = closed_form_forward(x, slab)
    jax.block_until_ready(pred)
    assert pred.shape == (BATCH, OUT_STEPS, 1)
    assert bool(jnp.all(jnp.isfinite(pred)))
    print("KERNEL_OK")
</pallas_src>

<mosaic_0001>
module attributes {stable_mosaic.version = 11 : i64} {
  func.func @closed_form_kernel(%arg0: memref<2x8xf32, #tpu.memory_space<vmem>>, %arg1: memref<240x256xf32, #tpu.memory_space<vmem>>, %arg2: memref<2x16xf32, #tpu.memory_space<vmem>>) attributes {dimension_semantics = [], scalar_prefetch = 0 : i64, scratch_operands = 0 : i64, tpu.core_type = #tpu.core_type<tc>} {
    %c0 = arith.constant 0 : index
    %c0_0 = arith.constant 0 : index
    %0 = vector.load %arg1[%c0, %c0_0] : memref<240x256xf32, #tpu.memory_space<vmem>>, vector<64x256xf32>
    %c64 = arith.constant 64 : index
    %c0_1 = arith.constant 0 : index
    %1 = vector.load %arg1[%c64, %c0_1] : memref<240x256xf32, #tpu.memory_space<vmem>>, vector<32x128xf32>
    %c96 = arith.constant 96 : index
    %c0_2 = arith.constant 0 : index
    %2 = vector.load %arg1[%c96, %c0_2] : memref<240x256xf32, #tpu.memory_space<vmem>>, vector<64x64xf32>
    %c160 = arith.constant 160 : index
    %c0_3 = arith.constant 0 : index
    %3 = vector.load %arg1[%c160, %c0_3] : memref<240x256xf32, #tpu.memory_space<vmem>>, vector<64x10xf32>
    %c224 = arith.constant 224 : index
    %c0_4 = arith.constant 0 : index
    %4 = vector.load %arg1[%c224, %c0_4] : memref<240x256xf32, #tpu.memory_space<vmem>>, vector<8x16xf32>
    %c232 = arith.constant 232 : index
    %c0_5 = arith.constant 0 : index
    %5 = vector.load %arg1[%c232, %c0_5] : memref<240x256xf32, #tpu.memory_space<vmem>>, vector<1x256xf32>
    %c233 = arith.constant 233 : index
    %c0_6 = arith.constant 0 : index
    %6 = vector.load %arg1[%c233, %c0_6] : memref<240x256xf32, #tpu.memory_space<vmem>>, vector<1x256xf32>
    %c234 = arith.constant 234 : index
    %c0_7 = arith.constant 0 : index
    %7 = vector.load %arg1[%c234, %c0_7] : memref<240x256xf32, #tpu.memory_space<vmem>>, vector<1x128xf32>
    %c235 = arith.constant 235 : index
    %c0_8 = arith.constant 0 : index
    %8 = vector.load %arg1[%c235, %c0_8] : memref<240x256xf32, #tpu.memory_space<vmem>>, vector<1x128xf32>
    %c236 = arith.constant 236 : index
    %c0_9 = arith.constant 0 : index
    %9 = vector.load %arg1[%c236, %c0_9] : memref<240x256xf32, #tpu.memory_space<vmem>>, vector<1x64xf32>
    %c237 = arith.constant 237 : index
    %c0_10 = arith.constant 0 : index
    %10 = vector.load %arg1[%c237, %c0_10] : memref<240x256xf32, #tpu.memory_space<vmem>>, vector<1x10xf32>
    %c238 = arith.constant 238 : index
    %c0_11 = arith.constant 0 : index
    %11 = vector.load %arg1[%c238, %c0_11] : memref<240x256xf32, #tpu.memory_space<vmem>>, vector<1x32xf32>
    %c238_12 = arith.constant 238 : index
    %c32 = arith.constant 32 : index
    %12 = vector.load %arg1[%c238_12, %c32] : memref<240x256xf32, #tpu.memory_space<vmem>>, vector<1x1xf32>
    %c239 = arith.constant 239 : index
    %c0_13 = arith.constant 0 : index
    %13 = vector.load %arg1[%c239, %c0_13] : memref<240x256xf32, #tpu.memory_space<vmem>>, vector<1x8xf32>
    %c239_14 = arith.constant 239 : index
    %c8 = arith.constant 8 : index
    %14 = vector.load %arg1[%c239_14, %c8] : memref<240x256xf32, #tpu.memory_space<vmem>>, vector<1x8xf32>
    %c0_15 = arith.constant 0 : index
    %c0_16 = arith.constant 0 : index
    %15 = vector.load %arg0[%c0_15, %c0_16] : memref<2x8xf32, #tpu.memory_space<vmem>>, vector<2x8xf32>
    %16 = vector.extract_strided_slice %15 {offsets = [0, 0], sizes = [2, 1], strides = [1, 1]} : vector<2x8xf32> to vector<2x1xf32>
    %17 = vector.broadcast %16 : vector<2x1xf32> to vector<2x256xf32>
    %18 = vector.broadcast %5 : vector<1x256xf32> to vector<2x256xf32>
    %19 = arith.mulf %17, %18 : vector<2x256xf32>
    %20 = vector.broadcast %6 : vector<1x256xf32> to vector<2x256xf32>
    %21 = arith.addf %19, %20 : vector<2x256xf32>
    %22 = vector.extract_strided_slice %15 {offsets = [0, 1], sizes = [2, 1], strides = [1, 1]} : vector<2x8xf32> to vector<2x1xf32>
    %23 = vector.broadcast %22 : vector<2x1xf32> to vector<2x256xf32>
    %24 = vector.broadcast %5 : vector<1x256xf32> to vector<2x256xf32>
    %25 = arith.mulf %23, %24 : vector<2x256xf32>
    %26 = vector.broadcast %6 : vector<1x256xf32> to vector<2x256xf32>
    %27 = arith.addf %25, %26 : vector<2x256xf32>
    %28 = vector.extract_strided_slice %15 {offsets = [0, 2], sizes = [2, 1], strides = [1, 1]} : vector<2x8xf32> to vector<2x1xf32>
    %29 = vector.broadcast %28 : vector<2x1xf32> to vector<2x256xf32>
    %30 = vector.broadcast %5 : vector<1x256xf32> to vector<2x256xf32>
    %31 = arith.mulf %29, %30 : vector<2x256xf32>
    %32 = vector.broadcast %6 : vector<1x256xf32> to vector<2x256xf32>
    %33 = arith.addf %31, %32 : vector<2x256xf32>
    %34 = vector.extract_strided_slice %15 {offsets = [0, 3], sizes = [2, 1], strides = [1, 1]} : vector<2x8xf32> to vector<2x1xf32>
    %35 = vector.broadcast %34 : vector<2x1xf32> to vector<2x256xf32>
    %36 = vector.broadcast %5 : vector<1x256xf32> to vector<2x256xf32>
    %37 = arith.mulf %35, %36 : vector<2x256xf32>
    %38 = vector.broadcast %6 : vector<1x256xf32> to vector<2x256xf32>
    %39 = arith.addf %37, %38 : vector<2x256xf32>
    %40 = vector.extract_strided_slice %15 {offsets = [0, 4], sizes = [2, 1], strides = [1, 1]} : vector<2x8xf32> to vector<2x1xf32>
    %41 = vector.broadcast %40 : vector<2x1xf32> to vector<2x256xf32>
    %42 = vector.broadcast %5 : vector<1x256xf32> to vector<2x256xf32>
    %43 = arith.mulf %41, %42 : vector<2x256xf32>
    %44 = vector.broadcast %6 : vector<1x256xf32> to vector<2x256xf32>
    %45 = arith.addf %43, %44 : vector<2x256xf32>
    %46 = vector.extract_strided_slice %15 {offsets = [0, 5], sizes = [2, 1], strides = [1, 1]} : vector<2x8xf32> to vector<2x1xf32>
    %47 = vector.broadcast %46 : vector<2x1xf32> to vector<2x256xf32>
    %48 = vector.broadcast %5 : vector<1x256xf32> to vector<2x256xf32>
    %49 = arith.mulf %47, %48 : vector<2x256xf32>
    %50 = vector.broadcast %6 : vector<1x256xf32> to vector<2x256xf32>
    %51 = arith.addf %49, %50 : vector<2x256xf32>
    %52 = vector.extract_strided_slice %15 {offsets = [0, 6], sizes = [2, 1], strides = [1, 1]} : vector<2x8xf32> to vector<2x1xf32>
    %53 = vector.broadcast %52 : vector<2x1xf32> to vector<2x256xf32>
    %54 = vector.broadcast %5 : vector<1x256xf32> to vector<2x256xf32>
    %55 = arith.mulf %53, %54 : vector<2x256xf32>
    %56 = vector.broadcast %6 : vector<1x256xf32> to vector<2x256xf32>
    %57 = arith.addf %55, %56 : vector<2x256xf32>
    %58 = vector.extract_strided_slice %15 {offsets = [0, 7], sizes = [2, 1], strides = [1, 1]} : vector<2x8xf32> to vector<2x1xf32>
    %59 = vector.broadcast %58 : vector<2x1xf32> to vector<2x256xf32>
    %60 = vector.broadcast %5 : vector<1x256xf32> to vector<2x256xf32>
    %61 = arith.mulf %59, %60 : vector<2x256xf32>
    %62 = vector.broadcast %6 : vector<1x256xf32> to vector<2x256xf32>
    %63 = arith.addf %61, %62 : vector<2x256xf32>
    %cst = arith.constant 0.000000e+00 : f32
    %64 = vector.broadcast %cst : f32 to vector<2x256xf32>
    %65 = arith.subf %64, %21 : vector<2x256xf32>
    %66 = math.exp %65 : vector<2x256xf32>
    %cst_17 = arith.constant 1.000000e+00 : f32
    %67 = vector.broadcast %cst_17 : f32 to vector<2x256xf32>
    %68 = arith.addf %67, %66 : vector<2x256xf32>
    %69 = tpu.reciprocal %68 {approx = true} : vector<2x256xf32> -> vector<2x256xf32>
    %70 = vector.extract_strided_slice %69 {offsets = [0, 0], sizes = [2, 64], strides = [1, 1]} : vector<2x256xf32> to vector<2x64xf32>
    %71 = vector.extract_strided_slice %69 {offsets = [0, 128], sizes = [2, 64], strides = [1, 1]} : vector<2x256xf32> to vector<2x64xf32>
    %cst_18 = arith.constant 2.000000e+00 : f32
    %72 = vector.broadcast %cst_18 : f32 to vector<2x64xf32>
    %73 = arith.mulf %72, %71 : vector<2x64xf32>
    %cst_19 = arith.constant 1.000000e+00 : f32
    %74 = vector.broadcast %cst_19 : f32 to vector<2x64xf32>
    %75 = arith.subf %73, %74 : vector<2x64xf32>
    %76 = vector.extract_strided_slice %69 {offsets = [0, 192], sizes = [2, 64], strides = [1, 1]} : vector<2x256xf32> to vector<2x64xf32>
    %77 = arith.mulf %70, %75 : vector<2x64xf32>
    %78 = math.tanh %77 : vector<2x64xf32>
    %79 = arith.mulf %76, %78 : vector<2x64xf32>
    %cst_20 = arith.constant dense<0.000000e+00> : vector<2x256xf32>
    %80 = tpu.matmul %79, %0, %cst_20 {dimension_numbers = #tpu.dot_dimension_numbers<[1], [0], [0], [1], [0, 0, 1, 1], [], []>} : vector<2x64xf32>, vector<64x256xf32>, vector<2x256xf32> -> vector<2x256xf32>
    %81 = arith.addf %27, %80 : vector<2x256xf32>
    %cst_21 = arith.constant 0.000000e+00 : f32
    %82 = vector.broadcast %cst_21 : f32 to vector<2x256xf32>
    %83 = arith.subf %82, %81 : vector<2x256xf32>
    %84 = math.exp %83 : vector<2x256xf32>
    %cst_22 = arith.constant 1.000000e+00 : f32
    %85 = vector.broadcast %cst_22 : f32 to vector<2x256xf32>
    %86 = arith.addf %85, %84 : vector<2x256xf32>
    %87 = tpu.reciprocal %86 {approx = true} : vector<2x256xf32> -> vector<2x256xf32>
    %88 = vector.extract_strided_slice %87 {offsets = [0, 0], sizes = [2, 64], strides = [1, 1]} : vector<2x256xf32> to vector<2x64xf32>
    %89 = vector.extract_strided_slice %87 {offsets = [0, 64], sizes = [2, 64], strides = [1, 1]} : vector<2x256xf32> to vector<2x64xf32>
    %90 = vector.extract_strided_slice %87 {offsets = [0, 128], sizes = [2, 64], strides = [1, 1]} : vector<2x256xf32> to vector<2x64xf32>
    %cst_23 = arith.constant 2.000000e+00 : f32
    %91 = vector.broadcast %cst_23 : f32 to vector<2x64xf32>
    %92 = arith.mulf %91, %90 : vector<2x64xf32>
    %cst_24 = arith.constant 1.000000e+00 : f32
    %93 = vector.broadcast %cst_24 : f32 to vector<2x64xf32>
    %94 = arith.subf %92, %93 : vector<2x64xf32>
    %95 = vector.extract_strided_slice %87 {offsets = [0, 192], sizes = [2, 64], strides = [1, 1]} : vector<2x256xf32> to vector<2x64xf32>
    %96 = arith.mulf %89, %77 : vector<2x64xf32>
    %97 = arith.mulf %88, %94 : vector<2x64xf32>
    %98 = arith.addf %96, %97 : vector<2x64xf32>
    %99 = math.tanh %98 : vector<2x64xf32>
    %100 = arith.mulf %95, %99 : vector<2x64xf32>
    %cst_25 = arith.constant dense<0.000000e+00> : vector<2x256xf32>
    %101 = tpu.matmul %100, %0, %cst_25 {dimension_numbers = #tpu.dot_dimension_numbers<[1], [0], [0], [1], [0, 0, 1, 1], [], []>} : vector<2x64xf32>, vector<64x256xf32>, vector<2x256xf32> -> vector<2x256xf32>
    %102 = arith.addf %33, %101 : vector<2x256xf32>
    %cst_26 = arith.constant 0.000000e+00 : f32
    %103 = vector.broadcast %cst_26 : f32 to vector<2x256xf32>
    %104 = arith.subf %103, %102 : vector<2x256xf32>
    %105 = math.exp %104 : vector<2x256xf32>
    %cst_27 = arith.constant 1.000000e+00 : f32
    %106 = vector.broadcast %cst_27 : f32 to vector<2x256xf32>
    %107 = arith.addf %106, %105 : vector<2x256xf32>
    %108 = tpu.reciprocal %107 {approx = true} : vector<2x256xf32> -> vector<2x256xf32>
    %109 = vector.extract_strided_slice %108 {offsets = [0, 0], sizes = [2, 64], strides = [1, 1]} : vector<2x256xf32> to vector<2x64xf32>
    %110 = vector.extract_strided_slice %108 {offsets = [0, 64], sizes = [2, 64], strides = [1, 1]} : vector<2x256xf32> to vector<2x64xf32>
    %111 = vector.extract_strided_slice %108 {offsets = [0, 128], sizes = [2, 64], strides = [1, 1]} : vector<2x256xf32> to vector<2x64xf32>
    %cst_28 = arith.constant 2.000000e+00 : f32
    %112 = vector.broadcast %cst_28 : f32 to vector<2x64xf32>
    %113 = arith.mulf %112, %111 : vector<2x64xf32>
    %cst_29 = arith.constant 1.000000e+00 : f32
    %114 = vector.broadcast %cst_29 : f32 to vector<2x64xf32>
    %115 = arith.subf %113, %114 : vector<2x64xf32>
    %116 = vector.extract_strided_slice %108 {offsets = [0, 192], sizes = [2, 64], strides = [1, 1]} : vector<2x256xf32> to vector<2x64xf32>
    %117 = arith.mulf %110, %98 : vector<2x64xf32>
    %118 = arith.mulf %109, %115 : vector<2x64xf32>
    %119 = arith.addf %117, %118 : vector<2x64xf32>
    %120 = math.tanh %119 : vector<2x64xf32>
    %121 = arith.mulf %116, %120 : vector<2x64xf32>
    %cst_30 = arith.constant dense<0.000000e+00> : vector<2x256xf32>
    %122 = tpu.matmul %121, %0, %cst_30 {dimension_numbers = #tpu.dot_dimension_numbers<[1], [0], [0], [1], [0, 0, 1, 1], [], []>} : vector<2x64xf32>, vector<64x256xf32>, vector<2x256xf32> -> vector<2x256xf32>
    %123 = arith.addf %39, %122 : vector<2x256xf32>
    %cst_31 = arith.constant 0.000000e+00 : f32
    %124 = vector.broadcast %cst_31 : f32 to vector<2x256xf32>
    %125 = arith.subf %124, %123 : vector<2x256xf32>
    %126 = math.exp %125 : vector<2x256xf32>
    %cst_32 = arith.constant 1.000000e+00 : f32
    %127 = vector.broadcast %cst_32 : f32 to vector<2x256xf32>
    %128 = arith.addf %127, %126 : vector<2x256xf32>
    %129 = tpu.reciprocal %128 {approx = true} : vector<2x256xf32> -> vector<2x256xf32>
    %130 = vector.extract_strided_slice %129 {offsets = [0, 0], sizes = [2, 64], strides = [1, 1]} : vector<2x256xf32> to vector<2x64xf32>
    %131 = vector.extract_strided_slice %129 {offsets = [0, 64], sizes = [2, 64], strides = [1, 1]} : vector<2x256xf32> to vector<2x64xf32>
    %132 = vector.extract_strided_slice %129 {offsets = [0, 128], sizes = [2, 64], strides = [1, 1]} : vector<2x256xf32> to vector<2x64xf32>
    %cst_33 = arith.constant 2.000000e+00 : f32
    %133 = vector.broadcast %cst_33 : f32 to vector<2x64xf32>
    %134 = arith.mulf %133, %132 : vector<2x64xf32>
    %cst_34 = arith.constant 1.000000e+00 : f32
    %135 = vector.broadcast %cst_34 : f32 to vector<2x64xf32>
    %136 = arith.subf %134, %135 : vector<2x64xf32>
    %137 = vector.extract_strided_slice %129 {offsets = [0, 192], sizes = [2, 64], strides = [1, 1]} : vector<2x256xf32> to vector<2x64xf32>
    %138 = arith.mulf %131, %119 : vector<2x64xf32>
    %139 = arith.mulf %130, %136 : vector<2x64xf32>
    %140 = arith.addf %138, %139 : vector<2x64xf32>
    %141 = math.tanh %140 : vector<2x64xf32>
    %142 = arith.mulf %137, %141 : vector<2x64xf32>
    %cst_35 = arith.constant dense<0.000000e+00> : vector<2x256xf32>
    %143 = tpu.matmul %142, %0, %cst_35 {dimension_numbers = #tpu.dot_dimension_numbers<[1], [0], [0], [1], [0, 0, 1, 1], [], []>} : vector<2x64xf32>, vector<64x256xf32>, vector<2x256xf32> -> vector<2x256xf32>
    %144 = arith.addf %45, %143 : vector<2x256xf32>
    %cst_36 = arith.constant 0.000000e+00 : f32
    %145 = vector.broadcast %cst_36 : f32 to vector<2x256xf32>
    %146 = arith.subf %145, %144 : vector<2x256xf32>
    %147 = math.exp %146 : vector<2x256xf32>
    %cst_37 = arith.constant 1.000000e+00 : f32
    %148 = vector.broadcast %cst_37 : f32 to vector<2x256xf32>
    %149 = arith.addf %148, %147 : vector<2x256xf32>
    %150 = tpu.reciprocal %149 {approx = true} : vector<2x256xf32> -> vector<2x256xf32>
    %151 = vector.extract_strided_slice %150 {offsets = [0, 0], sizes = [2, 64], strides = [1, 1]} : vector<2x256xf32> to vector<2x64xf32>
    %152 = vector.extract_strided_slice %150 {offsets = [0, 64], sizes = [2, 64], strides = [1, 1]} : vector<2x256xf32> to vector<2x64xf32>
    %153 = vector.extract_strided_slice %150 {offsets = [0, 128], sizes = [2, 64], strides = [1, 1]} : vector<2x256xf32> to vector<2x64xf32>
    %cst_38 = arith.constant 2.000000e+00 : f32
    %154 = vector.broadcast %cst_38 : f32 to vector<2x64xf32>
    %155 = arith.mulf %154, %153 : vector<2x64xf32>
    %cst_39 = arith.constant 1.000000e+00 : f32
    %156 = vector.broadcast %cst_39 : f32 to vector<2x64xf32>
    %157 = arith.subf %155, %156 : vector<2x64xf32>
    %158 = vector.extract_strided_slice %150 {offsets = [0, 192], sizes = [2, 64], strides = [1, 1]} : vector<2x256xf32> to vector<2x64xf32>
    %159 = arith.mulf %152, %140 : vector<2x64xf32>
    %160 = arith.mulf %151, %157 : vector<2x64xf32>
    %161 = arith.addf %159, %160 : vector<2x64xf32>
    %162 = math.tanh %161 : vector<2x64xf32>
    %163 = arith.mulf %158, %162 : vector<2x64xf32>
    %cst_40 = arith.constant dense<0.000000e+00> : vector<2x256xf32>
    %164 = tpu.matmul %163, %0, %cst_40 {dimension_numbers = #tpu.dot_dimension_numbers<[1], [0], [0], [1], [0, 0, 1, 1], [], []>} : vector<2x64xf32>, vector<64x256xf32>, vector<2x256xf32> -> vector<2x256xf32>
    %165 = arith.addf %51, %164 : vector<2x256xf32>
    %cst_41 = arith.constant 0.000000e+00 : f32
    %166 = vector.broadcast %cst_41 : f32 to vector<2x256xf32>
    %167 = arith.subf %166, %165 : vector<2x256xf32>
    %168 = math.exp %167 : vector<2x256xf32>
    %cst_42 = arith.constant 1.000000e+00 : f32
    %169 = vector.broadcast %cst_42 : f32 to vector<2x256xf32>
    %170 = arith.addf %169, %168 : vector<2x256xf32>
    %171 = tpu.reciprocal %170 {approx = true} : vector<2x256xf32> -> vector<2x256xf32>
    %172 = vector.extract_strided_slice %171 {offsets = [0, 0], sizes = [2, 64], strides = [1, 1]} : vector<2x256xf32> to vector<2x64xf32>
    %173 = vector.extract_strided_slice %171 {offsets = [0, 64], sizes = [2, 64], strides = [1, 1]} : vector<2x256xf32> to vector<2x64xf32>
    %174 = vector.extract_strided_slice %171 {offsets = [0, 128], sizes = [2, 64], strides = [1, 1]} : vector<2x256xf32> to vector<2x64xf32>
    %cst_43 = arith.constant 2.000000e+00 : f32
    %175 = vector.broadcast %cst_43 : f32 to vector<2x64xf32>
    %176 = arith.mulf %175, %174 : vector<2x64xf32>
    %cst_44 = arith.constant 1.000000e+00 : f32
    %177 = vector.broadcast %cst_44 : f32 to vector<2x64xf32>
    %178 = arith.subf %176, %177 : vector<2x64xf32>
    %179 = vector.extract_strided_slice %171 {offsets = [0, 192], sizes = [2, 64], strides = [1, 1]} : vector<2x256xf32> to vector<2x64xf32>
    %180 = arith.mulf %173, %161 : vector<2x64xf32>
    %181 = arith.mulf %172, %178 : vector<2x64xf32>
    %182 = arith.addf %180, %181 : vector<2x64xf32>
    %183 = math.tanh %182 : vector<2x64xf32>
    %184 = arith.mulf %179, %183 : vector<2x64xf32>
    %cst_45 = arith.constant dense<0.000000e+00> : vector<2x256xf32>
    %185 = tpu.matmul %184, %0, %cst_45 {dimension_numbers = #tpu.dot_dimension_numbers<[1], [0], [0], [1], [0, 0, 1, 1], [], []>} : vector<2x64xf32>, vector<64x256xf32>, vector<2x256xf32> -> vector<2x256xf32>
    %186 = arith.addf %57, %185 : vector<2x256xf32>
    %cst_46 = arith.constant 0.000000e+00 : f32
    %187 = vector.broadcast %cst_46 : f32 to vector<2x256xf32>
    %188 = arith.subf %187, %186 : vector<2x256xf32>
    %189 = math.exp %188 : vector<2x256xf32>
    %cst_47 = arith.constant 1.000000e+00 : f32
    %190 = vector.broadcast %cst_47 : f32 to vector<2x256xf32>
    %191 = arith.addf %190, %189 : vector<2x256xf32>
    %192 = tpu.reciprocal %191 {approx = true} : vector<2x256xf32> -> vector<2x256xf32>
    %193 = vector.extract_strided_slice %192 {offsets = [0, 0], sizes = [2, 64], strides = [1, 1]} : vector<2x256xf32> to vector<2x64xf32>
    %194 = vector.extract_strided_slice %192 {offsets = [0, 64], sizes = [2, 64], strides = [1, 1]} : vector<2x256xf32> to vector<2x64xf32>
    %195 = vector.extract_strided_slice %192 {offsets = [0, 128], sizes = [2, 64], strides = [1, 1]} : vector<2x256xf32> to vector<2x64xf32>
    %cst_48 = arith.constant 2.000000e+00 : f32
    %196 = vector.broadcast %cst_48 : f32 to vector<2x64xf32>
    %197 = arith.mulf %196, %195 : vector<2x64xf32>
    %cst_49 = arith.constant 1.000000e+00 : f32
    %198 = vector.broadcast %cst_49 : f32 to vector<2x64xf32>
    %199 = arith.subf %197, %198 : vector<2x64xf32>
    %200 = vector.extract_strided_slice %192 {offsets = [0, 192], sizes = [2, 64], strides = [1, 1]} : vector<2x256xf32> to vector<2x64xf32>
    %201 = arith.mulf %194, %182 : vector<2x64xf32>
    %202 = arith.mulf %193, %199 : vector<2x64xf32>
    %203 = arith.addf %201, %202 : vector<2x64xf32>
    %204 = math.tanh %203 : vector<2x64xf32>
    %205 = arith.mulf %200, %204 : vector<2x64xf32>
    %cst_50 = arith.constant dense<0.000000e+00> : vector<2x256xf32>
    %206 = tpu.matmul %205, %0, %cst_50 {dimension_numbers = #tpu.dot_dimension_numbers<[1], [0], [0], [1], [0, 0, 1, 1], [], []>} : vector<2x64xf32>, vector<64x256xf32>, vector<2x256xf32> -> vector<2x256xf32>
    %207 = arith.addf %63, %206 : vector<2x256xf32>
    %cst_51 = arith.constant 0.000000e+00 : f32
    %208 = vector.broadcast %cst_51 : f32 to vector<2x256xf32>
    %209 = arith.subf %208, %207 : vector<2x256xf32>
    %210 = math.exp %209 : vector<2x256xf32>
    %cst_52 = arith.constant 1.000000e+00 : f32
    %211 = vector.broadcast %cst_52 : f32 to vector<2x256xf32>
    %212 = arith.addf %211, %210 : vector<2x256xf32>
    %213 = tpu.reciprocal %212 {approx = true} : vector<2x256xf32> -> vector<2x256xf32>
    %214 = vector.extract_strided_slice %213 {offsets = [0, 0], sizes = [2, 64], strides = [1, 1]} : vector<2x256xf32> to vector<2x64xf32>
    %215 = vector.extract_strided_slice %213 {offsets = [0, 64], sizes = [2, 64], strides = [1, 1]} : vector<2x256xf32> to vector<2x64xf32>
    %216 = vector.extract_strided_slice %213 {offsets = [0, 128], sizes = [2, 64], strides = [1, 1]} : vector<2x256xf32> to vector<2x64xf32>
    %cst_53 = arith.constant 2.000000e+00 : f32
    %217 = vector.broadcast %cst_53 : f32 to vector<2x64xf32>
    %218 = arith.mulf %217, %216 : vector<2x64xf32>
    %cst_54 = arith.constant 1.000000e+00 : f32
    %219 = vector.broadcast %cst_54 : f32 to vector<2x64xf32>
    %220 = arith.subf %218, %219 : vector<2x64xf32>
    %221 = vector.extract_strided_slice %213 {offsets = [0, 192], sizes = [2, 64], strides = [1, 1]} : vector<2x256xf32> to vector<2x64xf32>
    %222 = arith.mulf %215, %203 : vector<2x64xf32>
    %223 = arith.mulf %214, %220 : vector<2x64xf32>
    %224 = arith.addf %222, %223 : vector<2x64xf32>
    %225 = math.tanh %224 : vector<2x64xf32>
    %226 = arith.mulf %221, %225 : vector<2x64xf32>
    %cst_55 = arith.constant dense<0.000000e+00> : vector<2x64xf32>
    %227 = tpu.matmul %226, %2, %cst_55 {dimension_numbers = #tpu.dot_dimension_numbers<[1], [0], [0], [1], [0, 0, 1, 1], [], []>} : vector<2x64xf32>, vector<64x64xf32>, vector<2x64xf32> -> vector<2x64xf32>
    %228 = vector.broadcast %9 : vector<1x64xf32> to vector<2x64xf32>
    %229 = arith.addf %227, %228 : vector<2x64xf32>
    %cst_56 = arith.constant 0.000000e+00 : f32
    %230 = vector.broadcast %cst_56 : f32 to vector<2x64xf32>
    %231 = arith.maximumf %229, %230 : vector<2x64xf32>
    %cst_57 = arith.constant dense<0.000000e+00> : vector<2x10xf32>
    %232 = tpu.matmul %231, %3, %cst_57 {dimension_numbers = #tpu.dot_dimension_numbers<[1], [0], [0], [1], [0, 0, 1, 1], [], []>} : vector<2x64xf32>, vector<64x10xf32>, vector<2x10xf32> -> vector<2x10xf32>
    %233 = vector.broadcast %10 : vector<1x10xf32> to vector<2x10xf32>
    %234 = arith.addf %232, %233 : vector<2x10xf32>
    %235 = vector.extract_strided_slice %234 {offsets = [0, 0], sizes = [2, 1], strides = [1, 1]} : vector<2x10xf32> to vector<2x1xf32>
    %236 = vector.extract_strided_slice %234 {offsets = [0, 1], sizes = [2, 4], strides = [1, 1]} : vector<2x10xf32> to vector<2x4xf32>
    %237 = vector.extract_strided_slice %234 {offsets = [0, 5], sizes = [2, 4], strides = [1, 1]} : vector<2x10xf32> to vector<2x4xf32>
    %238 = vector.extract_strided_slice %234 {offsets = [0, 9], sizes = [2, 1], strides = [1, 1]} : vector<2x10xf32> to vector<2x1xf32>
    %239 = vector.broadcast %235 : vector<2x1xf32> to vector<2x8xf32>
    %240 = vector.broadcast %13 : vector<1x8xf32> to vector<2x8xf32>
    %241 = arith.mulf %239, %240 : vector<2x8xf32>
    %242 = vector.broadcast %14 : vector<1x8xf32> to vector<2x8xf32>
    %243 = arith.addf %241, %242 : vector<2x8xf32>
    %244 = math.cos %243 : vector<2x8xf32>
    %245 = vector.extract_strided_slice %244 {offsets = [0, 0], sizes = [2, 4], strides = [1, 1]} : vector<2x8xf32> to vector<2x4xf32>
    %246 = vector.extract_strided_slice %244 {offsets = [0, 4], sizes = [2, 4], strides = [1, 1]} : vector<2x8xf32> to vector<2x4xf32>
    %247 = arith.mulf %236, %245 : vector<2x4xf32>
    %248 = arith.mulf %237, %246 : vector<2x4xf32>
    %249 = arith.addf %247, %248 : vector<2x4xf32>
    %250 = arith.mulf %237, %245 : vector<2x4xf32>
    %251 = arith.mulf %236, %246 : vector<2x4xf32>
    %252 = arith.subf %250, %251 : vector<2x4xf32>
    %253 = tpu.concatenate %249, %252 in 1 : vector<2x4xf32>, vector<2x4xf32> -> vector<2x8xf32>
    %cst_58 = arith.constant dense<0.000000e+00> : vector<2x16xf32>
    %254 = tpu.matmul %253, %4, %cst_58 {dimension_numbers = #tpu.dot_dimension_numbers<[1], [0], [0], [1], [0, 0, 1, 1], [], []>} : vector<2x8xf32>, vector<8x16xf32>, vector<2x16xf32> -> vector<2x16xf32>
    %255 = vector.broadcast %238 : vector<2x1xf32> to vector<2x16xf32>
    %256 = arith.addf %255, %254 : vector<2x16xf32>
    %257 = vector.extract_strided_slice %256 {offsets = [0, 0], sizes = [2, 1], strides = [1, 1]} : vector<2x16xf32> to vector<2x1xf32>
    %258 = vector.broadcast %257 : vector<2x1xf32> to vector<2x128xf32>
    %259 = vector.broadcast %7 : vector<1x128xf32> to vector<2x128xf32>
    %260 = arith.mulf %258, %259 : vector<2x128xf32>
    %261 = vector.broadcast %8 : vector<1x128xf32> to vector<2x128xf32>
    %262 = arith.addf %260, %261 : vector<2x128xf32>
    %263 = vector.extract_strided_slice %256 {offsets = [0, 1], sizes = [2, 1], strides = [1, 1]} : vector<2x16xf32> to vector<2x1xf32>
    %264 = vector.broadcast %263 : vector<2x1xf32> to vector<2x128xf32>
    %265 = vector.broadcast %7 : vector<1x128xf32> to vector<2x128xf32>
    %266 = arith.mulf %264, %265 : vector<2x128xf32>
    %267 = vector.broadcast %8 : vector<1x128xf32> to vector<2x128xf32>
    %268 = arith.addf %266, %267 : vector<2x128xf32>
    %269 = vector.extract_strided_slice %256 {offsets = [0, 2], sizes = [2, 1], strides = [1, 1]} : vector<2x16xf32> to vector<2x1xf32>
    %270 = vector.broadcast %269 : vector<2x1xf32> to vector<2x128xf32>
    %271 = vector.broadcast %7 : vector<1x128xf32> to vector<2x128xf32>
    %272 = arith.mulf %270, %271 : vector<2x128xf32>
    %273 = vector.broadcast %8 : vector<1x128xf32> to vector<2x128xf32>
    %274 = arith.addf %272, %273 : vector<2x128xf32>
    %275 = vector.extract_strided_slice %256 {offsets = [0, 3], sizes = [2, 1], strides = [1, 1]} : vector<2x16xf32> to vector<2x1xf32>
    %276 = vector.broadcast %275 : vector<2x1xf32> to vector<2x128xf32>
    %277 = vector.broadcast %7 : vector<1x128xf32> to vector<2x128xf32>
    %278 = arith.mulf %276, %277 : vector<2x128xf32>
    %279 = vector.broadcast %8 : vector<1x128xf32> to vector<2x128xf32>
    %280 = arith.addf %278, %279 : vector<2x128xf32>
    %281 = vector.extract_strided_slice %256 {offsets = [0, 4], sizes = [2, 1], strides = [1, 1]} : vector<2x16xf32> to vector<2x1xf32>
    %282 = vector.broadcast %281 : vector<2x1xf32> to vector<2x128xf32>
    %283 = vector.broadcast %7 : vector<1x128xf32> to vector<2x128xf32>
    %284 = arith.mulf %282, %283 : vector<2x128xf32>
    %285 = vector.broadcast %8 : vector<1x128xf32> to vector<2x128xf32>
    %286 = arith.addf %284, %285 : vector<2x128xf32>
    %287 = vector.extract_strided_slice %256 {offsets = [0, 5], sizes = [2, 1], strides = [1, 1]} : vector<2x16xf32> to vector<2x1xf32>
    %288 = vector.broadcast %287 : vector<2x1xf32> to vector<2x128xf32>
    %289 = vector.broadcast %7 : vector<1x128xf32> to vector<2x128xf32>
    %290 = arith.mulf %288, %289 : vector<2x128xf32>
    %291 = vector.broadcast %8 : vector<1x128xf32> to vector<2x128xf32>
    %292 = arith.addf %290, %291 : vector<2x128xf32>
    %293 = vector.extract_strided_slice %256 {offsets = [0, 6], sizes = [2, 1], strides = [1, 1]} : vector<2x16xf32> to vector<2x1xf32>
    %294 = vector.broadcast %293 : vector<2x1xf32> to vector<2x128xf32>
    %295 = vector.broadcast %7 : vector<1x128xf32> to vector<2x128xf32>
    %296 = arith.mulf %294, %295 : vector<2x128xf32>
    %297 = vector.broadcast %8 : vector<1x128xf32> to vector<2x128xf32>
    %298 = arith.addf %296, %297 : vector<2x128xf32>
    %299 = vector.extract_strided_slice %256 {offsets = [0, 7], sizes = [2, 1], strides = [1, 1]} : vector<2x16xf32> to vector<2x1xf32>
    %300 = vector.broadcast %299 : vector<2x1xf32> to vector<2x128xf32>
    %301 = vector.broadcast %7 : vector<1x128xf32> to vector<2x128xf32>
    %302 = arith.mulf %300, %301 : vector<2x128xf32>
    %303 = vector.broadcast %8 : vector<1x128xf32> to vector<2x128xf32>
    %304 = arith.addf %302, %303 : vector<2x128xf32>
    %305 = vector.extract_strided_slice %256 {offsets = [0, 8], sizes = [2, 1], strides = [1, 1]} : vector<2x16xf32> to vector<2x1xf32>
    %306 = vector.broadcast %305 : vector<2x1xf32> to vector<2x128xf32>
    %307 = vector.broadcast %7 : vector<1x128xf32> to vector<2x128xf32>
    %308 = arith.mulf %306, %307 : vector<2x128xf32>
    %309 = vector.broadcast %8 : vector<1x128xf32> to vector<2x128xf32>
    %310 = arith.addf %308, %309 : vector<2x128xf32>
    %311 = vector.extract_strided_slice %256 {offsets = [0, 9], sizes = [2, 1], strides = [1, 1]} : vector<2x16xf32> to vector<2x1xf32>
    %312 = vector.broadcast %311 : vector<2x1xf32> to vector<2x128xf32>
    %313 = vector.broadcast %7 : vector<1x128xf32> to vector<2x128xf32>
    %314 = arith.mulf %312, %313 : vector<2x128xf32>
    %315 = vector.broadcast %8 : vector<1x128xf32> to vector<2x128xf32>
    %316 = arith.addf %314, %315 : vector<2x128xf32>
    %317 = vector.extract_strided_slice %256 {offsets = [0, 10], sizes = [2, 1], strides = [1, 1]} : vector<2x16xf32> to vector<2x1xf32>
    %318 = vector.broadcast %317 : vector<2x1xf32> to vector<2x128xf32>
    %319 = vector.broadcast %7 : vector<1x128xf32> to vector<2x128xf32>
    %320 = arith.mulf %318, %319 : vector<2x128xf32>
    %321 = vector.broadcast %8 : vector<1x128xf32> to vector<2x128xf32>
    %322 = arith.addf %320, %321 : vector<2x128xf32>
    %323 = vector.extract_strided_slice %256 {offsets = [0, 11], sizes = [2, 1], strides = [1, 1]} : vector<2x16xf32> to vector<2x1xf32>
    %324 = vector.broadcast %323 : vector<2x1xf32> to vector<2x128xf32>
    %325 = vector.broadcast %7 : vector<1x128xf32> to vector<2x128xf32>
    %326 = arith.mulf %324, %325 : vector<2x128xf32>
    %327 = vector.broadcast %8 : vector<1x128xf32> to vector<2x128xf32>
    %328 = arith.addf %326, %327 : vector<2x128xf32>
    %329 = vector.extract_strided_slice %256 {offsets = [0, 12], sizes = [2, 1], strides = [1, 1]} : vector<2x16xf32> to vector<2x1xf32>
    %330 = vector.broadcast %329 : vector<2x1xf32> to vector<2x128xf32>
    %331 = vector.broadcast %7 : vector<1x128xf32> to vector<2x128xf32>
    %332 = arith.mulf %330, %331 : vector<2x128xf32>
    %333 = vector.broadcast %8 : vector<1x128xf32> to vector<2x128xf32>
    %334 = arith.addf %332, %333 : vector<2x128xf32>
    %335 = vector.extract_strided_slice %256 {offsets = [0, 13], sizes = [2, 1], strides = [1, 1]} : vector<2x16xf32> to vector<2x1xf32>
    %336 = vector.broadcast %335 : vector<2x1xf32> to vector<2x128xf32>
    %337 = vector.broadcast %7 : vector<1x128xf32> to vector<2x128xf32>
    %338 = arith.mulf %336, %337 : vector<2x128xf32>
    %339 = vector.broadcast %8 : vector<1x128xf32> to vector<2x128xf32>
    %340 = arith.addf %338, %339 : vector<2x128xf32>
    %341 = vector.extract_strided_slice %256 {offsets = [0, 14], sizes = [2, 1], strides = [1, 1]} : vector<2x16xf32> to vector<2x1xf32>
    %342 = vector.broadcast %341 : vector<2x1xf32> to vector<2x128xf32>
    %343 = vector.broadcast %7 : vector<1x128xf32> to vector<2x128xf32>
    %344 = arith.mulf %342, %343 : vector<2x128xf32>
    %345 = vector.broadcast %8 : vector<1x128xf32> to vector<2x128xf32>
    %346 = arith.addf %344, %345 : vector<2x128xf32>
    %347 = vector.extract_strided_slice %256 {offsets = [0, 15], sizes = [2, 1], strides = [1, 1]} : vector<2x16xf32> to vector<2x1xf32>
    %348 = vector.broadcast %347 : vector<2x1xf32> to vector<2x128xf32>
    %349 = vector.broadcast %7 : vector<1x128xf32> to vector<2x128xf32>
    %350 = arith.mulf %348, %349 : vector<2x128xf32>
    %351 = vector.broadcast %8 : vector<1x128xf32> to vector<2x128xf32>
    %352 = arith.addf %350, %351 : vector<2x128xf32>
    %cst_59 = arith.constant 0.000000e+00 : f32
    %353 = vector.broadcast %cst_59 : f32 to vector<2x128xf32>
    %354 = arith.subf %353, %262 : vector<2x128xf32>
    %355 = math.exp %354 : vector<2x128xf32>
    %cst_60 = arith.constant 1.000000e+00 : f32
    %356 = vector.broadcast %cst_60 : f32 to vector<2x128xf32>
    %357 = arith.addf %356, %355 : vector<2x128xf32>
    %358 = tpu.reciprocal %357 {approx = true} : vector<2x128xf32> -> vector<2x128xf32>
    %359 = vector.extract_strided_slice %358 {offsets = [0, 0], sizes = [2, 32], strides = [1, 1]} : vector<2x128xf32> to vector<2x32xf32>
    %360 = vector.extract_strided_slice %358 {offsets = [0, 64], sizes = [2, 32], strides = [1, 1]} : vector<2x128xf32> to vector<2x32xf32>
    %cst_61 = arith.constant 2.000000e+00 : f32
    %361 = vector.broadcast %cst_61 : f32 to vector<2x32xf32>
    %362 = arith.mulf %361, %360 : vector<2x32xf32>
    %cst_62 = arith.constant 1.000000e+00 : f32
    %363 = vector.broadcast %cst_62 : f32 to vector<2x32xf32>
    %364 = arith.subf %362, %363 : vector<2x32xf32>
    %365 = vector.extract_strided_slice %358 {offsets = [0, 96], sizes = [2, 32], strides = [1, 1]} : vector<2x128xf32> to vector<2x32xf32>
    %366 = arith.mulf %359, %364 : vector<2x32xf32>
    %367 = math.tanh %366 : vector<2x32xf32>
    %368 = arith.mulf %365, %367 : vector<2x32xf32>
    %369 = vector.broadcast %11 : vector<1x32xf32> to vector<2x32xf32>
    %370 = arith.mulf %368, %369 : vector<2x32xf32>
    %cst_63 = arith.constant dense<0.000000e+00> : vector<2xf32>
    %371 = vector.multi_reduction <add>, %370, %cst_63 [1] : vector<2x32xf32> to vector<2xf32>
    %372 = vector.shape_cast %371 : vector<2xf32> to vector<2x1xf32>
    %373 = vector.broadcast %12 : vector<1x1xf32> to vector<2x1xf32>
    %374 = arith.addf %372, %373 : vector<2x1xf32>
    %c0_64 = arith.constant 0 : index
    %c0_65 = arith.constant 0 : index
    %375 = vector.load %arg2[%c0_64, %c0_65] : memref<2x16xf32, #tpu.memory_space<vmem>>, vector<2x1xf32>
    tpu.vector_store %arg2[%c0_64, %c0_65], %374 {strides = array<i32>} : memref<2x16xf32, #tpu.memory_space<vmem>>, vector<2x1xf32>,
    %cst_66 = arith.constant dense<0.000000e+00> : vector<2x128xf32>
    %376 = tpu.matmul %368, %1, %cst_66 {dimension_numbers = #tpu.dot_dimension_numbers<[1], [0], [0], [1], [0, 0, 1, 1], [], []>} : vector<2x32xf32>, vector<32x128xf32>, vector<2x128xf32> -> vector<2x128xf32>
    %377 = arith.addf %268, %376 : vector<2x128xf32>
    %cst_67 = arith.constant 0.000000e+00 : f32
    %378 = vector.broadcast %cst_67 : f32 to vector<2x128xf32>
    %379 = arith.subf %378, %377 : vector<2x128xf32>
    %380 = math.exp %379 : vector<2x128xf32>
    %cst_68 = arith.constant 1.000000e+00 : f32
    %381 = vector.broadcast %cst_68 : f32 to vector<2x128xf32>
    %382 = arith.addf %381, %380 : vector<2x128xf32>
    %383 = tpu.reciprocal %382 {approx = true} : vector<2x128xf32> -> vector<2x128xf32>
    %384 = vector.extract_strided_slice %383 {offsets = [0, 0], sizes = [2, 32], strides = [1, 1]} : vector<2x128xf32> to vector<2x32xf32>
    %385 = vector.extract_strided_slice %383 {offsets = [0, 32], sizes = [2, 32], strides = [1, 1]} : vector<2x128xf32> to vector<2x32xf32>
    %386 = vector.extract_strided_slice %383 {offsets = [0, 64], sizes = [2, 32], strides = [1, 1]} : vector<2x128xf32> to vector<2x32xf32>
    %cst_69 = arith.constant 2.000000e+00 : f32
    %387 = vector.broadcast %cst_69 : f32 to vector<2x32xf32>
    %388 = arith.mulf %387, %386 : vector<2x32xf32>
    %cst_70 = arith.constant 1.000000e+00 : f32
    %389 = vector.broadcast %cst_70 : f32 to vector<2x32xf32>
    %390 = arith.subf %388, %389 : vector<2x32xf32>
    %391 = vector.extract_strided_slice %383 {offsets = [0, 96], sizes = [2, 32], strides = [1, 1]} : vector<2x128xf32> to vector<2x32xf32>
    %392 = arith.mulf %385, %366 : vector<2x32xf32>
    %393 = arith.mulf %384, %390 : vector<2x32xf32>
    %394 = arith.addf %392, %393 : vector<2x32xf32>
    %395 = math.tanh %394 : vector<2x32xf32>
    %396 = arith.mulf %391, %395 : vector<2x32xf32>
    %397 = vector.broadcast %11 : vector<1x32xf32> to vector<2x32xf32>
    %398 = arith.mulf %396, %397 : vector<2x32xf32>
    %cst_71 = arith.constant dense<0.000000e+00> : vector<2xf32>
    %399 = vector.multi_reduction <add>, %398, %cst_71 [1] : vector<2x32xf32> to vector<2xf32>
    %400 = vector.shape_cast %399 : vector<2xf32> to vector<2x1xf32>
    %401 = vector.broadcast %12 : vector<1x1xf32> to vector<2x1xf32>
    %402 = arith.addf %400, %401 : vector<2x1xf32>
    %c0_72 = arith.constant 0 : index
    %c1 = arith.constant 1 : index
    %403 = vector.load %arg2[%c0_72, %c1] : memref<2x16xf32, #tpu.memory_space<vmem>>, vector<2x1xf32>
    tpu.vector_store %arg2[%c0_72, %c1], %402 {strides = array<i32>} : memref<2x16xf32, #tpu.memory_space<vmem>>, vector<2x1xf32>,
    %cst_73 = arith.constant dense<0.000000e+00> : vector<2x128xf32>
    %404 = tpu.matmul %396, %1, %cst_73 {dimension_numbers = #tpu.dot_dimension_numbers<[1], [0], [0], [1], [0, 0, 1, 1], [], []>} : vector<2x32xf32>, vector<32x128xf32>, vector<2x128xf32> -> vector<2x128xf32>
    %405 = arith.addf %274, %404 : vector<2x128xf32>
    %cst_74 = arith.constant 0.000000e+00 : f32
    %406 = vector.broadcast %cst_74 : f32 to vector<2x128xf32>
    %407 = arith.subf %406, %405 : vector<2x128xf32>
    %408 = math.exp %407 : vector<2x128xf32>
    %cst_75 = arith.constant 1.000000e+00 : f32
    %409 = vector.broadcast %cst_75 : f32 to vector<2x128xf32>
    %410 = arith.addf %409, %408 : vector<2x128xf32>
    %411 = tpu.reciprocal %410 {approx = true} : vector<2x128xf32> -> vector<2x128xf32>
    %412 = vector.extract_strided_slice %411 {offsets = [0, 0], sizes = [2, 32], strides = [1, 1]} : vector<2x128xf32> to vector<2x32xf32>
    %413 = vector.extract_strided_slice %411 {offsets = [0, 32], sizes = [2, 32], strides = [1, 1]} : vector<2x128xf32> to vector<2x32xf32>
    %414 = vector.extract_strided_slice %411 {offsets = [0, 64], sizes = [2, 32], strides = [1, 1]} : vector<2x128xf32> to vector<2x32xf32>
    %cst_76 = arith.constant 2.000000e+00 : f32
    %415 = vector.broadcast %cst_76 : f32 to vector<2x32xf32>
    %416 = arith.mulf %415, %414 : vector<2x32xf32>
    %cst_77 = arith.constant 1.000000e+00 : f32
    %417 = vector.broadcast %cst_77 : f32 to vector<2x32xf32>
    %418 = arith.subf %416, %417 : vector<2x32xf32>
    %419 = vector.extract_strided_slice %411 {offsets = [0, 96], sizes = [2, 32], strides = [1, 1]} : vector<2x128xf32> to vector<2x32xf32>
    %420 = arith.mulf %413, %394 : vector<2x32xf32>
    %421 = arith.mulf %412, %418 : vector<2x32xf32>
    %422 = arith.addf %420, %421 : vector<2x32xf32>
    %423 = math.tanh %422 : vector<2x32xf32>
    %424 = arith.mulf %419, %423 : vector<2x32xf32>
    %425 = vector.broadcast %11 : vector<1x32xf32> to vector<2x32xf32>
    %426 = arith.mulf %424, %425 : vector<2x32xf32>
    %cst_78 = arith.constant dense<0.000000e+00> : vector<2xf32>
    %427 = vector.multi_reduction <add>, %426, %cst_78 [1] : vector<2x32xf32> to vector<2xf32>
    %428 = vector.shape_cast %427 : vector<2xf32> to vector<2x1xf32>
    %429 = vector.broadcast %12 : vector<1x1xf32> to vector<2x1xf32>
    %430 = arith.addf %428, %429 : vector<2x1xf32>
    %c0_79 = arith.constant 0 : index
    %c2 = arith.constant 2 : index
    %431 = vector.load %arg2[%c0_79, %c2] : memref<2x16xf32, #tpu.memory_space<vmem>>, vector<2x1xf32>
    tpu.vector_store %arg2[%c0_79, %c2], %430 {strides = array<i32>} : memref<2x16xf32, #tpu.memory_space<vmem>>, vector<2x1xf32>,
    %cst_80 = arith.constant dense<0.000000e+00> : vector<2x128xf32>
    %432 = tpu.matmul %424, %1, %cst_80 {dimension_numbers = #tpu.dot_dimension_numbers<[1], [0], [0], [1], [0, 0, 1, 1], [], []>} : vector<2x32xf32>, vector<32x128xf32>, vector<2x128xf32> -> vector<2x128xf32>
    %433 = arith.addf %280, %432 : vector<2x128xf32>
    %cst_81 = arith.constant 0.000000e+00 : f32
    %434 = vector.broadcast %cst_81 : f32 to vector<2x128xf32>
    %435 = arith.subf %434, %433 : vector<2x128xf32>
    %436 = math.exp %435 : vector<2x128xf32>
    %cst_82 = arith.constant 1.000000e+00 : f32
    %437 = vector.broadcast %cst_82 : f32 to vector<2x128xf32>
    %438 = arith.addf %437, %436 : vector<2x128xf32>
    %439 = tpu.reciprocal %438 {approx = true} : vector<2x128xf32> -> vector<2x128xf32>
    %440 = vector.extract_strided_slice %439 {offsets = [0, 0], sizes = [2, 32], strides = [1, 1]} : vector<2x128xf32> to vector<2x32xf32>
    %441 = vector.extract_strided_slice %439 {offsets = [0, 32], sizes = [2, 32], strides = [1, 1]} : vector<2x128xf32> to vector<2x32xf32>
    %442 = vector.extract_strided_slice %439 {offsets = [0, 64], sizes = [2, 32], strides = [1, 1]} : vector<2x128xf32> to vector<2x32xf32>
    %cst_83 = arith.constant 2.000000e+00 : f32
    %443 = vector.broadcast %cst_83 : f32 to vector<2x32xf32>
    %444 = arith.mulf %443, %442 : vector<2x32xf32>
    %cst_84 = arith.constant 1.000000e+00 : f32
    %445 = vector.broadcast %cst_84 : f32 to vector<2x32xf32>
    %446 = arith.subf %444, %445 : vector<2x32xf32>
    %447 = vector.extract_strided_slice %439 {offsets = [0, 96], sizes = [2, 32], strides = [1, 1]} : vector<2x128xf32> to vector<2x32xf32>
    %448 = arith.mulf %441, %422 : vector<2x32xf32>
    %449 = arith.mulf %440, %446 : vector<2x32xf32>
    %450 = arith.addf %448, %449 : vector<2x32xf32>
    %451 = math.tanh %450 : vector<2x32xf32>
    %452 = arith.mulf %447, %451 : vector<2x32xf32>
    %453 = vector.broadcast %11 : vector<1x32xf32> to vector<2x32xf32>
    %454 = arith.mulf %452, %453 : vector<2x32xf32>
    %cst_85 = arith.constant dense<0.000000e+00> : vector<2xf32>
    %455 = vector.multi_reduction <add>, %454, %cst_85 [1] : vector<2x32xf32> to vector<2xf32>
    %456 = vector.shape_cast %455 : vector<2xf32> to vector<2x1xf32>
    %457 = vector.broadcast %12 : vector<1x1xf32> to vector<2x1xf32>
    %458 = arith.addf %456, %457 : vector<2x1xf32>
    %c0_86 = arith.constant 0 : index
    %c3 = arith.constant 3 : index
    %459 = vector.load %arg2[%c0_86, %c3] : memref<2x16xf32, #tpu.memory_space<vmem>>, vector<2x1xf32>
    tpu.vector_store %arg2[%c0_86, %c3], %458 {strides = array<i32>} : memref<2x16xf32, #tpu.memory_space<vmem>>, vector<2x1xf32>,
    %cst_87 = arith.constant dense<0.000000e+00> : vector<2x128xf32>
    %460 = tpu.matmul %452, %1, %cst_87 {dimension_numbers = #tpu.dot_dimension_numbers<[1], [0], [0], [1], [0, 0, 1, 1], [], []>} : vector<2x32xf32>, vector<32x128xf32>, vector<2x128xf32> -> vector<2x128xf32>
    %461 = arith.addf %286, %460 : vector<2x128xf32>
    %cst_88 = arith.constant 0.000000e+00 : f32
    %462 = vector.broadcast %cst_88 : f32 to vector<2x128xf32>
    %463 = arith.subf %462, %461 : vector<2x128xf32>
    %464 = math.exp %463 : vector<2x128xf32>
    %cst_89 = arith.constant 1.000000e+00 : f32
    %465 = vector.broadcast %cst_89 : f32 to vector<2x128xf32>
    %466 = arith.addf %465, %464 : vector<2x128xf32>
    %467 = tpu.reciprocal %466 {approx = true} : vector<2x128xf32> -> vector<2x128xf32>
    %468 = vector.extract_strided_slice %467 {offsets = [0, 0], sizes = [2, 32], strides = [1, 1]} : vector<2x128xf32> to vector<2x32xf32>
    %469 = vector.extract_strided_slice %467 {offsets = [0, 32], sizes = [2, 32], strides = [1, 1]} : vector<2x128xf32> to vector<2x32xf32>
    %470 = vector.extract_strided_slice %467 {offsets = [0, 64], sizes = [2, 32], strides = [1, 1]} : vector<2x128xf32> to vector<2x32xf32>
    %cst_90 = arith.constant 2.000000e+00 : f32
    %471 = vector.broadcast %cst_90 : f32 to vector<2x32xf32>
    %472 = arith.mulf %471, %470 : vector<2x32xf32>
    %cst_91 = arith.constant 1.000000e+00 : f32
    %473 = vector.broadcast %cst_91 : f32 to vector<2x32xf32>
    %474 = arith.subf %472, %473 : vector<2x32xf32>
    %475 = vector.extract_strided_slice %467 {offsets = [0, 96], sizes = [2, 32], strides = [1, 1]} : vector<2x128xf32> to vector<2x32xf32>
    %476 = arith.mulf %469, %450 : vector<2x32xf32>
    %477 = arith.mulf %468, %474 : vector<2x32xf32>
    %478 = arith.addf %476, %477 : vector<2x32xf32>
    %479 = math.tanh %478 : vector<2x32xf32>
    %480 = arith.mulf %475, %479 : vector<2x32xf32>
    %481 = vector.broadcast %11 : vector<1x32xf32> to vector<2x32xf32>
    %482 = arith.mulf %480, %481 : vector<2x32xf32>
    %cst_92 = arith.constant dense<0.000000e+00> : vector<2xf32>
    %483 = vector.multi_reduction <add>, %482, %cst_92 [1] : vector<2x32xf32> to vector<2xf32>
    %484 = vector.shape_cast %483 : vector<2xf32> to vector<2x1xf32>
    %485 = vector.broadcast %12 : vector<1x1xf32> to vector<2x1xf32>
    %486 = arith.addf %484, %485 : vector<2x1xf32>
    %c0_93 = arith.constant 0 : index
    %c4 = arith.constant 4 : index
    %487 = vector.load %arg2[%c0_93, %c4] : memref<2x16xf32, #tpu.memory_space<vmem>>, vector<2x1xf32>
    tpu.vector_store %arg2[%c0_93, %c4], %486 {strides = array<i32>} : memref<2x16xf32, #tpu.memory_space<vmem>>, vector<2x1xf32>,
    %cst_94 = arith.constant dense<0.000000e+00> : vector<2x128xf32>
    %488 = tpu.matmul %480, %1, %cst_94 {dimension_numbers = #tpu.dot_dimension_numbers<[1], [0], [0], [1], [0, 0, 1, 1], [], []>} : vector<2x32xf32>, vector<32x128xf32>, vector<2x128xf32> -> vector<2x128xf32>
    %489 = arith.addf %292, %488 : vector<2x128xf32>
    %cst_95 = arith.constant 0.000000e+00 : f32
    %490 = vector.broadcast %cst_95 : f32 to vector<2x128xf32>
    %491 = arith.subf %490, %489 : vector<2x128xf32>
    %492 = math.exp %491 : vector<2x128xf32>
    %cst_96 = arith.constant 1.000000e+00 : f32
    %493 = vector.broadcast %cst_96 : f32 to vector<2x128xf32>
    %494 = arith.addf %493, %492 : vector<2x128xf32>
    %495 = tpu.reciprocal %494 {approx = true} : vector<2x128xf32> -> vector<2x128xf32>
    %496 = vector.extract_strided_slice %495 {offsets = [0, 0], sizes = [2, 32], strides = [1, 1]} : vector<2x128xf32> to vector<2x32xf32>
    %497 = vector.extract_strided_slice %495 {offsets = [0, 32], sizes = [2, 32], strides = [1, 1]} : vector<2x128xf32> to vector<2x32xf32>
    %498 = vector.extract_strided_slice %495 {offsets = [0, 64], sizes = [2, 32], strides = [1, 1]} : vector<2x128xf32> to vector<2x32xf32>
    %cst_97 = arith.constant 2.000000e+00 : f32
    %499 = vector.broadcast %cst_97 : f32 to vector<2x32xf32>
    %500 = arith.mulf %499, %498 : vector<2x32xf32>
    %cst_98 = arith.constant 1.000000e+00 : f32
    %501 = vector.broadcast %cst_98 : f32 to vector<2x32xf32>
    %502 = arith.subf %500, %501 : vector<2x32xf32>
    %503 = vector.extract_strided_slice %495 {offsets = [0, 96], sizes = [2, 32], strides = [1, 1]} : vector<2x128xf32> to vector<2x32xf32>
    %504 = arith.mulf %497, %478 : vector<2x32xf32>
    %505 = arith.mulf %496, %502 : vector<2x32xf32>
    %506 = arith.addf %504, %505 : vector<2x32xf32>
    %507 = math.tanh %506 : vector<2x32xf32>
    %508 = arith.mulf %503, %507 : vector<2x32xf32>
    %509 = vector.broadcast %11 : vector<1x32xf32> to vector<2x32xf32>
    %510 = arith.mulf %508, %509 : vector<2x32xf32>
    %cst_99 = arith.constant dense<0.000000e+00> : vector<2xf32>
    %511 = vector.multi_reduction <add>, %510, %cst_99 [1] : vector<2x32xf32> to vector<2xf32>
    %512 = vector.shape_cast %511 : vector<2xf32> to vector<2x1xf32>
    %513 = vector.broadcast %12 : vector<1x1xf32> to vector<2x1xf32>
    %514 = arith.addf %512, %513 : vector<2x1xf32>
    %c0_100 = arith.constant 0 : index
    %c5 = arith.constant 5 : index
    %515 = vector.load %arg2[%c0_100, %c5] : memref<2x16xf32, #tpu.memory_space<vmem>>, vector<2x1xf32>
    tpu.vector_store %arg2[%c0_100, %c5], %514 {strides = array<i32>} : memref<2x16xf32, #tpu.memory_space<vmem>>, vector<2x1xf32>,
    %cst_101 = arith.constant dense<0.000000e+00> : vector<2x128xf32>
    %516 = tpu.matmul %508, %1, %cst_101 {dimension_numbers = #tpu.dot_dimension_numbers<[1], [0], [0], [1], [0, 0, 1, 1], [], []>} : vector<2x32xf32>, vector<32x128xf32>, vector<2x128xf32> -> vector<2x128xf32>
    %517 = arith.addf %298, %516 : vector<2x128xf32>
    %cst_102 = arith.constant 0.000000e+00 : f32
    %518 = vector.broadcast %cst_102 : f32 to vector<2x128xf32>
    %519 = arith.subf %518, %517 : vector<2x128xf32>
    %520 = math.exp %519 : vector<2x128xf32>
    %cst_103 = arith.constant 1.000000e+00 : f32
    %521 = vector.broadcast %cst_103 : f32 to vector<2x128xf32>
    %522 = arith.addf %521, %520 : vector<2x128xf32>
    %523 = tpu.reciprocal %522 {approx = true} : vector<2x128xf32> -> vector<2x128xf32>
    %524 = vector.extract_strided_slice %523 {offsets = [0, 0], sizes = [2, 32], strides = [1, 1]} : vector<2x128xf32> to vector<2x32xf32>
    %525 = vector.extract_strided_slice %523 {offsets = [0, 32], sizes = [2, 32], strides = [1, 1]} : vector<2x128xf32> to vector<2x32xf32>
    %526 = vector.extract_strided_slice %523 {offsets = [0, 64], sizes = [2, 32], strides = [1, 1]} : vector<2x128xf32> to vector<2x32xf32>
    %cst_104 = arith.constant 2.000000e+00 : f32
    %527 = vector.broadcast %cst_104 : f32 to vector<2x32xf32>
    %528 = arith.mulf %527, %526 : vector<2x32xf32>
    %cst_105 = arith.constant 1.000000e+00 : f32
    %529 = vector.broadcast %cst_105 : f32 to vector<2x32xf32>
    %530 = arith.subf %528, %529 : vector<2x32xf32>
    %531 = vector.extract_strided_slice %523 {offsets = [0, 96], sizes = [2, 32], strides = [1, 1]} : vector<2x128xf32> to vector<2x32xf32>
    %532 = arith.mulf %525, %506 : vector<2x32xf32>
    %533 = arith.mulf %524, %530 : vector<2x32xf32>
    %534 = arith.addf %532, %533 : vector<2x32xf32>
    %535 = math.tanh %534 : vector<2x32xf32>
    %536 = arith.mulf %531, %535 : vector<2x32xf32>
    %537 = vector.broadcast %11 : vector<1x32xf32> to vector<2x32xf32>
    %538 = arith.mulf %536, %537 : vector<2x32xf32>
    %cst_106 = arith.constant dense<0.000000e+00> : vector<2xf32>
    %539 = vector.multi_reduction <add>, %538, %cst_106 [1] : vector<2x32xf32> to vector<2xf32>
    %540 = vector.shape_cast %539 : vector<2xf32> to vector<2x1xf32>
    %541 = vector.broadcast %12 : vector<1x1xf32> to vector<2x1xf32>
    %542 = arith.addf %540, %541 : vector<2x1xf32>
    %c0_107 = arith.constant 0 : index
    %c6 = arith.constant 6 : index
    %543 = vector.load %arg2[%c0_107, %c6] : memref<2x16xf32, #tpu.memory_space<vmem>>, vector<2x1xf32>
    tpu.vector_store %arg2[%c0_107, %c6], %542 {strides = array<i32>} : memref<2x16xf32, #tpu.memory_space<vmem>>, vector<2x1xf32>,
    %cst_108 = arith.constant dense<0.000000e+00> : vector<2x128xf32>
    %544 = tpu.matmul %536, %1, %cst_108 {dimension_numbers = #tpu.dot_dimension_numbers<[1], [0], [0], [1], [0, 0, 1, 1], [], []>} : vector<2x32xf32>, vector<32x128xf32>, vector<2x128xf32> -> vector<2x128xf32>
    %545 = arith.addf %304, %544 : vector<2x128xf32>
    %cst_109 = arith.constant 0.000000e+00 : f32
    %546 = vector.broadcast %cst_109 : f32 to vector<2x128xf32>
    %547 = arith.subf %546, %545 : vector<2x128xf32>
    %548 = math.exp %547 : vector<2x128xf32>
    %cst_110 = arith.constant 1.000000e+00 : f32
    %549 = vector.broadcast %cst_110 : f32 to vector<2x128xf32>
    %550 = arith.addf %549, %548 : vector<2x128xf32>
    %551 = tpu.reciprocal %550 {approx = true} : vector<2x128xf32> -> vector<2x128xf32>
    %552 = vector.extract_strided_slice %551 {offsets = [0, 0], sizes = [2, 32], strides = [1, 1]} : vector<2x128xf32> to vector<2x32xf32>
    %553 = vector.extract_strided_slice %551 {offsets = [0, 32], sizes = [2, 32], strides = [1, 1]} : vector<2x128xf32> to vector<2x32xf32>
    %554 = vector.extract_strided_slice %551 {offsets = [0, 64], sizes = [2, 32], strides = [1, 1]} : vector<2x128xf32> to vector<2x32xf32>
    %cst_111 = arith.constant 2.000000e+00 : f32
    %555 = vector.broadcast %cst_111 : f32 to vector<2x32xf32>
    %556 = arith.mulf %555, %554 : vector<2x32xf32>
    %cst_112 = arith.constant 1.000000e+00 : f32
    %557 = vector.broadcast %cst_112 : f32 to vector<2x32xf32>
    %558 = arith.subf %556, %557 : vector<2x32xf32>
    %559 = vector.extract_strided_slice %551 {offsets = [0, 96], sizes = [2, 32], strides = [1, 1]} : vector<2x128xf32> to vector<2x32xf32>
    %560 = arith.mulf %553, %534 : vector<2x32xf32>
    %561 = arith.mulf %552, %558 : vector<2x32xf32>
    %562 = arith.addf %560, %561 : vector<2x32xf32>
    %563 = math.tanh %562 : vector<2x32xf32>
    %564 = arith.mulf %559, %563 : vector<2x32xf32>
    %565 = vector.broadcast %11 : vector<1x32xf32> to vector<2x32xf32>
    %566 = arith.mulf %564, %565 : vector<2x32xf32>
    %cst_113 = arith.constant dense<0.000000e+00> : vector<2xf32>
    %567 = vector.multi_reduction <add>, %566, %cst_113 [1] : vector<2x32xf32> to vector<2xf32>
    %568 = vector.shape_cast %567 : vector<2xf32> to vector<2x1xf32>
    %569 = vector.broadcast %12 : vector<1x1xf32> to vector<2x1xf32>
    %570 = arith.addf %568, %569 : vector<2x1xf32>
    %c0_114 = arith.constant 0 : index
    %c7 = arith.constant 7 : index
    %571 = vector.load %arg2[%c0_114, %c7] : memref<2x16xf32, #tpu.memory_space<vmem>>, vector<2x1xf32>
    tpu.vector_store %arg2[%c0_114, %c7], %570 {strides = array<i32>} : memref<2x16xf32, #tpu.memory_space<vmem>>, vector<2x1xf32>,
    %cst_115 = arith.constant dense<0.000000e+00> : vector<2x128xf32>
    %572 = tpu.matmul %564, %1, %cst_115 {dimension_numbers = #tpu.dot_dimension_numbers<[1], [0], [0], [1], [0, 0, 1, 1], [], []>} : vector<2x32xf32>, vector<32x128xf32>, vector<2x128xf32> -> vector<2x128xf32>
    %573 = arith.addf %310, %572 : vector<2x128xf32>
    %cst_116 = arith.constant 0.000000e+00 : f32
    %574 = vector.broadcast %cst_116 : f32 to vector<2x128xf32>
    %575 = arith.subf %574, %573 : vector<2x128xf32>
    %576 = math.exp %575 : vector<2x128xf32>
    %cst_117 = arith.constant 1.000000e+00 : f32
    %577 = vector.broadcast %cst_117 : f32 to vector<2x128xf32>
    %578 = arith.addf %577, %576 : vector<2x128xf32>
    %579 = tpu.reciprocal %578 {approx = true} : vector<2x128xf32> -> vector<2x128xf32>
    %580 = vector.extract_strided_slice %579 {offsets = [0, 0], sizes = [2, 32], strides = [1, 1]} : vector<2x128xf32> to vector<2x32xf32>
    %581 = vector.extract_strided_slice %579 {offsets = [0, 32], sizes = [2, 32], strides = [1, 1]} : vector<2x128xf32> to vector<2x32xf32>
    %582 = vector.extract_strided_slice %579 {offsets = [0, 64], sizes = [2, 32], strides = [1, 1]} : vector<2x128xf32> to vector<2x32xf32>
    %cst_118 = arith.constant 2.000000e+00 : f32
    %583 = vector.broadcast %cst_118 : f32 to vector<2x32xf32>
    %584 = arith.mulf %583, %582 : vector<2x32xf32>
    %cst_119 = arith.constant 1.000000e+00 : f32
    %585 = vector.broadcast %cst_119 : f32 to vector<2x32xf32>
    %586 = arith.subf %584, %585 : vector<2x32xf32>
    %587 = vector.extract_strided_slice %579 {offsets = [0, 96], sizes = [2, 32], strides = [1, 1]} : vector<2x128xf32> to vector<2x32xf32>
    %588 = arith.mulf %581, %562 : vector<2x32xf32>
    %589 = arith.mulf %580, %586 : vector<2x32xf32>
    %590 = arith.addf %588, %589 : vector<2x32xf32>
    %591 = math.tanh %590 : vector<2x32xf32>
    %592 = arith.mulf %587, %591 : vector<2x32xf32>
    %593 = vector.broadcast %11 : vector<1x32xf32> to vector<2x32xf32>
    %594 = arith.mulf %592, %593 : vector<2x32xf32>
    %cst_120 = arith.constant dense<0.000000e+00> : vector<2xf32>
    %595 = vector.multi_reduction <add>, %594, %cst_120 [1] : vector<2x32xf32> to vector<2xf32>
    %596 = vector.shape_cast %595 : vector<2xf32> to vector<2x1xf32>
    %597 = vector.broadcast %12 : vector<1x1xf32> to vector<2x1xf32>
    %598 = arith.addf %596, %597 : vector<2x1xf32>
    %c0_121 = arith.constant 0 : index
    %c8_122 = arith.constant 8 : index
    %599 = vector.load %arg2[%c0_121, %c8_122] : memref<2x16xf32, #tpu.memory_space<vmem>>, vector<2x1xf32>
    tpu.vector_store %arg2[%c0_121, %c8_122], %598 {strides = array<i32>} : memref<2x16xf32, #tpu.memory_space<vmem>>, vector<2x1xf32>,
    %cst_123 = arith.constant dense<0.000000e+00> : vector<2x128xf32>
    %600 = tpu.matmul %592, %1, %cst_123 {dimension_numbers = #tpu.dot_dimension_numbers<[1], [0], [0], [1], [0, 0, 1, 1], [], []>} : vector<2x32xf32>, vector<32x128xf32>, vector<2x128xf32> -> vector<2x128xf32>
    %601 = arith.addf %316, %600 : vector<2x128xf32>
    %cst_124 = arith.constant 0.000000e+00 : f32
    %602 = vector.broadcast %cst_124 : f32 to vector<2x128xf32>
    %603 = arith.subf %602, %601 : vector<2x128xf32>
    %604 = math.exp %603 : vector<2x128xf32>
    %cst_125 = arith.constant 1.000000e+00 : f32
    %605 = vector.broadcast %cst_125 : f32 to vector<2x128xf32>
    %606 = arith.addf %605, %604 : vector<2x128xf32>
    %607 = tpu.reciprocal %606 {approx = true} : vector<2x128xf32> -> vector<2x128xf32>
    %608 = vector.extract_strided_slice %607 {offsets = [0, 0], sizes = [2, 32], strides = [1, 1]} : vector<2x128xf32> to vector<2x32xf32>
    %609 = vector.extract_strided_slice %607 {offsets = [0, 32], sizes = [2, 32], strides = [1, 1]} : vector<2x128xf32> to vector<2x32xf32>
    %610 = vector.extract_strided_slice %607 {offsets = [0, 64], sizes = [2, 32], strides = [1, 1]} : vector<2x128xf32> to vector<2x32xf32>
    %cst_126 = arith.constant 2.000000e+00 : f32
    %611 = vector.broadcast %cst_126 : f32 to vector<2x32xf32>
    %612 = arith.mulf %611, %610 : vector<2x32xf32>
    %cst_127 = arith.constant 1.000000e+00 : f32
    %613 = vector.broadcast %cst_127 : f32 to vector<2x32xf32>
    %614 = arith.subf %612, %613 : vector<2x32xf32>
    %615 = vector.extract_strided_slice %607 {offsets = [0, 96], sizes = [2, 32], strides = [1, 1]} : vector<2x128xf32> to vector<2x32xf32>
    %616 = arith.mulf %609, %590 : vector<2x32xf32>
    %617 = arith.mulf %608, %614 : vector<2x32xf32>
    %618 = arith.addf %616, %617 : vector<2x32xf32>
    %619 = math.tanh %618 : vector<2x32xf32>
    %620 = arith.mulf %615, %619 : vector<2x32xf32>
    %621 = vector.broadcast %11 : vector<1x32xf32> to vector<2x32xf32>
    %622 = arith.mulf %620, %621 : vector<2x32xf32>
    %cst_128 = arith.constant dense<0.000000e+00> : vector<2xf32>
    %623 = vector.multi_reduction <add>, %622, %cst_128 [1] : vector<2x32xf32> to vector<2xf32>
    %624 = vector.shape_cast %623 : vector<2xf32> to vector<2x1xf32>
    %625 = vector.broadcast %12 : vector<1x1xf32> to vector<2x1xf32>
    %626 = arith.addf %624, %625 : vector<2x1xf32>
    %c0_129 = arith.constant 0 : index
    %c9 = arith.constant 9 : index
    %627 = vector.load %arg2[%c0_129, %c9] : memref<2x16xf32, #tpu.memory_space<vmem>>, vector<2x1xf32>
    tpu.vector_store %arg2[%c0_129, %c9], %626 {strides = array<i32>} : memref<2x16xf32, #tpu.memory_space<vmem>>, vector<2x1xf32>,
    %cst_130 = arith.constant dense<0.000000e+00> : vector<2x128xf32>
    %628 = tpu.matmul %620, %1, %cst_130 {dimension_numbers = #tpu.dot_dimension_numbers<[1], [0], [0], [1], [0, 0, 1, 1], [], []>} : vector<2x32xf32>, vector<32x128xf32>, vector<2x128xf32> -> vector<2x128xf32>
    %629 = arith.addf %322, %628 : vector<2x128xf32>
    %cst_131 = arith.constant 0.000000e+00 : f32
    %630 = vector.broadcast %cst_131 : f32 to vector<2x128xf32>
    %631 = arith.subf %630, %629 : vector<2x128xf32>
    %632 = math.exp %631 : vector<2x128xf32>
    %cst_132 = arith.constant 1.000000e+00 : f32
    %633 = vector.broadcast %cst_132 : f32 to vector<2x128xf32>
    %634 = arith.addf %633, %632 : vector<2x128xf32>
    %635 = tpu.reciprocal %634 {approx = true} : vector<2x128xf32> -> vector<2x128xf32>
    %636 = vector.extract_strided_slice %635 {offsets = [0, 0], sizes = [2, 32], strides = [1, 1]} : vector<2x128xf32> to vector<2x32xf32>
    %637 = vector.extract_strided_slice %635 {offsets = [0, 32], sizes = [2, 32], strides = [1, 1]} : vector<2x128xf32> to vector<2x32xf32>
    %638 = vector.extract_strided_slice %635 {offsets = [0, 64], sizes = [2, 32], strides = [1, 1]} : vector<2x128xf32> to vector<2x32xf32>
    %cst_133 = arith.constant 2.000000e+00 : f32
    %639 = vector.broadcast %cst_133 : f32 to vector<2x32xf32>
    %640 = arith.mulf %639, %638 : vector<2x32xf32>
    %cst_134 = arith.constant 1.000000e+00 : f32
    %641 = vector.broadcast %cst_134 : f32 to vector<2x32xf32>
    %642 = arith.subf %640, %641 : vector<2x32xf32>
    %643 = vector.extract_strided_slice %635 {offsets = [0, 96], sizes = [2, 32], strides = [1, 1]} : vector<2x128xf32> to vector<2x32xf32>
    %644 = arith.mulf %637, %618 : vector<2x32xf32>
    %645 = arith.mulf %636, %642 : vector<2x32xf32>
    %646 = arith.addf %644, %645 : vector<2x32xf32>
    %647 = math.tanh %646 : vector<2x32xf32>
    %648 = arith.mulf %643, %647 : vector<2x32xf32>
    %649 = vector.broadcast %11 : vector<1x32xf32> to vector<2x32xf32>
    %650 = arith.mulf %648, %649 : vector<2x32xf32>
    %cst_135 = arith.constant dense<0.000000e+00> : vector<2xf32>
    %651 = vector.multi_reduction <add>, %650, %cst_135 [1] : vector<2x32xf32> to vector<2xf32>
    %652 = vector.shape_cast %651 : vector<2xf32> to vector<2x1xf32>
    %653 = vector.broadcast %12 : vector<1x1xf32> to vector<2x1xf32>
    %654 = arith.addf %652, %653 : vector<2x1xf32>
    %c0_136 = arith.constant 0 : index
    %c10 = arith.constant 10 : index
    %655 = vector.load %arg2[%c0_136, %c10] : memref<2x16xf32, #tpu.memory_space<vmem>>, vector<2x1xf32>
    tpu.vector_store %arg2[%c0_136, %c10], %654 {strides = array<i32>} : memref<2x16xf32, #tpu.memory_space<vmem>>, vector<2x1xf32>,
    %cst_137 = arith.constant dense<0.000000e+00> : vector<2x128xf32>
    %656 = tpu.matmul %648, %1, %cst_137 {dimension_numbers = #tpu.dot_dimension_numbers<[1], [0], [0], [1], [0, 0, 1, 1], [], []>} : vector<2x32xf32>, vector<32x128xf32>, vector<2x128xf32> -> vector<2x128xf32>
    %657 = arith.addf %328, %656 : vector<2x128xf32>
    %cst_138 = arith.constant 0.000000e+00 : f32
    %658 = vector.broadcast %cst_138 : f32 to vector<2x128xf32>
    %659 = arith.subf %658, %657 : vector<2x128xf32>
    %660 = math.exp %659 : vector<2x128xf32>
    %cst_139 = arith.constant 1.000000e+00 : f32
    %661 = vector.broadcast %cst_139 : f32 to vector<2x128xf32>
    %662 = arith.addf %661, %660 : vector<2x128xf32>
    %663 = tpu.reciprocal %662 {approx = true} : vector<2x128xf32> -> vector<2x128xf32>
    %664 = vector.extract_strided_slice %663 {offsets = [0, 0], sizes = [2, 32], strides = [1, 1]} : vector<2x128xf32> to vector<2x32xf32>
    %665 = vector.extract_strided_slice %663 {offsets = [0, 32], sizes = [2, 32], strides = [1, 1]} : vector<2x128xf32> to vector<2x32xf32>
    %666 = vector.extract_strided_slice %663 {offsets = [0, 64], sizes = [2, 32], strides = [1, 1]} : vector<2x128xf32> to vector<2x32xf32>
    %cst_140 = arith.constant 2.000000e+00 : f32
    %667 = vector.broadcast %cst_140 : f32 to vector<2x32xf32>
    %668 = arith.mulf %667, %666 : vector<2x32xf32>
    %cst_141 = arith.constant 1.000000e+00 : f32
    %669 = vector.broadcast %cst_141 : f32 to vector<2x32xf32>
    %670 = arith.subf %668, %669 : vector<2x32xf32>
    %671 = vector.extract_strided_slice %663 {offsets = [0, 96], sizes = [2, 32], strides = [1, 1]} : vector<2x128xf32> to vector<2x32xf32>
    %672 = arith.mulf %665, %646 : vector<2x32xf32>
    %673 = arith.mulf %664, %670 : vector<2x32xf32>
    %674 = arith.addf %672, %673 : vector<2x32xf32>
    %675 = math.tanh %674 : vector<2x32xf32>
    %676 = arith.mulf %671, %675 : vector<2x32xf32>
    %677 = vector.broadcast %11 : vector<1x32xf32> to vector<2x32xf32>
    %678 = arith.mulf %676, %677 : vector<2x32xf32>
    %cst_142 = arith.constant dense<0.000000e+00> : vector<2xf32>
    %679 = vector.multi_reduction <add>, %678, %cst_142 [1] : vector<2x32xf32> to vector<2xf32>
    %680 = vector.shape_cast %679 : vector<2xf32> to vector<2x1xf32>
    %681 = vector.broadcast %12 : vector<1x1xf32> to vector<2x1xf32>
    %682 = arith.addf %680, %681 : vector<2x1xf32>
    %c0_143 = arith.constant 0 : index
    %c11 = arith.constant 11 : index
    %683 = vector.load %arg2[%c0_143, %c11] : memref<2x16xf32, #tpu.memory_space<vmem>>, vector<2x1xf32>
    tpu.vector_store %arg2[%c0_143, %c11], %682 {strides = array<i32>} : memref<2x16xf32, #tpu.memory_space<vmem>>, vector<2x1xf32>,
    %cst_144 = arith.constant dense<0.000000e+00> : vector<2x128xf32>
    %684 = tpu.matmul %676, %1, %cst_144 {dimension_numbers = #tpu.dot_dimension_numbers<[1], [0], [0], [1], [0, 0, 1, 1], [], []>} : vector<2x32xf32>, vector<32x128xf32>, vector<2x128xf32> -> vector<2x128xf32>
    %685 = arith.addf %334, %684 : vector<2x128xf32>
    %cst_145 = arith.constant 0.000000e+00 : f32
    %686 = vector.broadcast %cst_145 : f32 to vector<2x128xf32>
    %687 = arith.subf %686, %685 : vector<2x128xf32>
    %688 = math.exp %687 : vector<2x128xf32>
    %cst_146 = arith.constant 1.000000e+00 : f32
    %689 = vector.broadcast %cst_146 : f32 to vector<2x128xf32>
    %690 = arith.addf %689, %688 : vector<2x128xf32>
    %691 = tpu.reciprocal %690 {approx = true} : vector<2x128xf32> -> vector<2x128xf32>
    %692 = vector.extract_strided_slice %691 {offsets = [0, 0], sizes = [2, 32], strides = [1, 1]} : vector<2x128xf32> to vector<2x32xf32>
    %693 = vector.extract_strided_slice %691 {offsets = [0, 32], sizes = [2, 32], strides = [1, 1]} : vector<2x128xf32> to vector<2x32xf32>
    %694 = vector.extract_strided_slice %691 {offsets = [0, 64], sizes = [2, 32], strides = [1, 1]} : vector<2x128xf32> to vector<2x32xf32>
    %cst_147 = arith.constant 2.000000e+00 : f32
    %695 = vector.broadcast %cst_147 : f32 to vector<2x32xf32>
    %696 = arith.mulf %695, %694 : vector<2x32xf32>
    %cst_148 = arith.constant 1.000000e+00 : f32
    %697 = vector.broadcast %cst_148 : f32 to vector<2x32xf32>
    %698 = arith.subf %696, %697 : vector<2x32xf32>
    %699 = vector.extract_strided_slice %691 {offsets = [0, 96], sizes = [2, 32], strides = [1, 1]} : vector<2x128xf32> to vector<2x32xf32>
    %700 = arith.mulf %693, %674 : vector<2x32xf32>
    %701 = arith.mulf %692, %698 : vector<2x32xf32>
    %702 = arith.addf %700, %701 : vector<2x32xf32>
    %703 = math.tanh %702 : vector<2x32xf32>
    %704 = arith.mulf %699, %703 : vector<2x32xf32>
    %705 = vector.broadcast %11 : vector<1x32xf32> to vector<2x32xf32>
    %706 = arith.mulf %704, %705 : vector<2x32xf32>
    %cst_149 = arith.constant dense<0.000000e+00> : vector<2xf32>
    %707 = vector.multi_reduction <add>, %706, %cst_149 [1] : vector<2x32xf32> to vector<2xf32>
    %708 = vector.shape_cast %707 : vector<2xf32> to vector<2x1xf32>
    %709 = vector.broadcast %12 : vector<1x1xf32> to vector<2x1xf32>
    %710 = arith.addf %708, %709 : vector<2x1xf32>
    %c0_150 = arith.constant 0 : index
    %c12 = arith.constant 12 : index
    %711 = vector.load %arg2[%c0_150, %c12] : memref<2x16xf32, #tpu.memory_space<vmem>>, vector<2x1xf32>
    tpu.vector_store %arg2[%c0_150, %c12], %710 {strides = array<i32>} : memref<2x16xf32, #tpu.memory_space<vmem>>, vector<2x1xf32>,
    %cst_151 = arith.constant dense<0.000000e+00> : vector<2x128xf32>
    %712 = tpu.matmul %704, %1, %cst_151 {dimension_numbers = #tpu.dot_dimension_numbers<[1], [0], [0], [1], [0, 0, 1, 1], [], []>} : vector<2x32xf32>, vector<32x128xf32>, vector<2x128xf32> -> vector<2x128xf32>
    %713 = arith.addf %340, %712 : vector<2x128xf32>
    %cst_152 = arith.constant 0.000000e+00 : f32
    %714 = vector.broadcast %cst_152 : f32 to vector<2x128xf32>
    %715 = arith.subf %714, %713 : vector<2x128xf32>
    %716 = math.exp %715 : vector<2x128xf32>
    %cst_153 = arith.constant 1.000000e+00 : f32
    %717 = vector.broadcast %cst_153 : f32 to vector<2x128xf32>
    %718 = arith.addf %717, %716 : vector<2x128xf32>
    %719 = tpu.reciprocal %718 {approx = true} : vector<2x128xf32> -> vector<2x128xf32>
    %720 = vector.extract_strided_slice %719 {offsets = [0, 0], sizes = [2, 32], strides = [1, 1]} : vector<2x128xf32> to vector<2x32xf32>
    %721 = vector.extract_strided_slice %719 {offsets = [0, 32], sizes = [2, 32], strides = [1, 1]} : vector<2x128xf32> to vector<2x32xf32>
    %722 = vector.extract_strided_slice %719 {offsets = [0, 64], sizes = [2, 32], strides = [1, 1]} : vector<2x128xf32> to vector<2x32xf32>
    %cst_154 = arith.constant 2.000000e+00 : f32
    %723 = vector.broadcast %cst_154 : f32 to vector<2x32xf32>
    %724 = arith.mulf %723, %722 : vector<2x32xf32>
    %cst_155 = arith.constant 1.000000e+00 : f32
    %725 = vector.broadcast %cst_155 : f32 to vector<2x32xf32>
    %726 = arith.subf %724, %725 : vector<2x32xf32>
    %727 = vector.extract_strided_slice %719 {offsets = [0, 96], sizes = [2, 32], strides = [1, 1]} : vector<2x128xf32> to vector<2x32xf32>
    %728 = arith.mulf %721, %702 : vector<2x32xf32>
    %729 = arith.mulf %720, %726 : vector<2x32xf32>
    %730 = arith.addf %728, %729 : vector<2x32xf32>
    %731 = math.tanh %730 : vector<2x32xf32>
    %732 = arith.mulf %727, %731 : vector<2x32xf32>
    %733 = vector.broadcast %11 : vector<1x32xf32> to vector<2x32xf32>
    %734 = arith.mulf %732, %733 : vector<2x32xf32>
    %cst_156 = arith.constant dense<0.000000e+00> : vector<2xf32>
    %735 = vector.multi_reduction <add>, %734, %cst_156 [1] : vector<2x32xf32> to vector<2xf32>
    %736 = vector.shape_cast %735 : vector<2xf32> to vector<2x1xf32>
    %737 = vector.broadcast %12 : vector<1x1xf32> to vector<2x1xf32>
    %738 = arith.addf %736, %737 : vector<2x1xf32>
    %c0_157 = arith.constant 0 : index
    %c13 = arith.constant 13 : index
    %739 = vector.load %arg2[%c0_157, %c13] : memref<2x16xf32, #tpu.memory_space<vmem>>, vector<2x1xf32>
    tpu.vector_store %arg2[%c0_157, %c13], %738 {strides = array<i32>} : memref<2x16xf32, #tpu.memory_space<vmem>>, vector<2x1xf32>,
    %cst_158 = arith.constant dense<0.000000e+00> : vector<2x128xf32>
    %740 = tpu.matmul %732, %1, %cst_158 {dimension_numbers = #tpu.dot_dimension_numbers<[1], [0], [0], [1], [0, 0, 1, 1], [], []>} : vector<2x32xf32>, vector<32x128xf32>, vector<2x128xf32> -> vector<2x128xf32>
    %741 = arith.addf %346, %740 : vector<2x128xf32>
    %cst_159 = arith.constant 0.000000e+00 : f32
    %742 = vector.broadcast %cst_159 : f32 to vector<2x128xf32>
    %743 = arith.subf %742, %741 : vector<2x128xf32>
    %744 = math.exp %743 : vector<2x128xf32>
    %cst_160 = arith.constant 1.000000e+00 : f32
    %745 = vector.broadcast %cst_160 : f32 to vector<2x128xf32>
    %746 = arith.addf %745, %744 : vector<2x128xf32>
    %747 = tpu.reciprocal %746 {approx = true} : vector<2x128xf32> -> vector<2x128xf32>
    %748 = vector.extract_strided_slice %747 {offsets = [0, 0], sizes = [2, 32], strides = [1, 1]} : vector<2x128xf32> to vector<2x32xf32>
    %749 = vector.extract_strided_slice %747 {offsets = [0, 32], sizes = [2, 32], strides = [1, 1]} : vector<2x128xf32> to vector<2x32xf32>
    %750 = vector.extract_strided_slice %747 {offsets = [0, 64], sizes = [2, 32], strides = [1, 1]} : vector<2x128xf32> to vector<2x32xf32>
    %cst_161 = arith.constant 2.000000e+00 : f32
    %751 = vector.broadcast %cst_161 : f32 to vector<2x32xf32>
    %752 = arith.mulf %751, %750 : vector<2x32xf32>
    %cst_162 = arith.constant 1.000000e+00 : f32
    %753 = vector.broadcast %cst_162 : f32 to vector<2x32xf32>
    %754 = arith.subf %752, %753 : vector<2x32xf32>
    %755 = vector.extract_strided_slice %747 {offsets = [0, 96], sizes = [2, 32], strides = [1, 1]} : vector<2x128xf32> to vector<2x32xf32>
    %756 = arith.mulf %749, %730 : vector<2x32xf32>
    %757 = arith.mulf %748, %754 : vector<2x32xf32>
    %758 = arith.addf %756, %757 : vector<2x32xf32>
    %759 = math.tanh %758 : vector<2x32xf32>
    %760 = arith.mulf %755, %759 : vector<2x32xf32>
    %761 = vector.broadcast %11 : vector<1x32xf32> to vector<2x32xf32>
    %762 = arith.mulf %760, %761 : vector<2x32xf32>
    %cst_163 = arith.constant dense<0.000000e+00> : vector<2xf32>
    %763 = vector.multi_reduction <add>, %762, %cst_163 [1] : vector<2x32xf32> to vector<2xf32>
    %764 = vector.shape_cast %763 : vector<2xf32> to vector<2x1xf32>
    %765 = vector.broadcast %12 : vector<1x1xf32> to vector<2x1xf32>
    %766 = arith.addf %764, %765 : vector<2x1xf32>
    %c0_164 = arith.constant 0 : index
    %c14 = arith.constant 14 : index
    %767 = vector.load %arg2[%c0_164, %c14] : memref<2x16xf32, #tpu.memory_space<vmem>>, vector<2x1xf32>
    tpu.vector_store %arg2[%c0_164, %c14], %766 {strides = array<i32>} : memref<2x16xf32, #tpu.memory_space<vmem>>, vector<2x1xf32>,
    %cst_165 = arith.constant dense<0.000000e+00> : vector<2x128xf32>
    %768 = tpu.matmul %760, %1, %cst_165 {dimension_numbers = #tpu.dot_dimension_numbers<[1], [0], [0], [1], [0, 0, 1, 1], [], []>} : vector<2x32xf32>, vector<32x128xf32>, vector<2x128xf32> -> vector<2x128xf32>
    %769 = arith.addf %352, %768 : vector<2x128xf32>
    %cst_166 = arith.constant 0.000000e+00 : f32
    %770 = vector.broadcast %cst_166 : f32 to vector<2x128xf32>
    %771 = arith.subf %770, %769 : vector<2x128xf32>
    %772 = math.exp %771 : vector<2x128xf32>
    %cst_167 = arith.constant 1.000000e+00 : f32
    %773 = vector.broadcast %cst_167 : f32 to vector<2x128xf32>
    %774 = arith.addf %773, %772 : vector<2x128xf32>
    %775 = tpu.reciprocal %774 {approx = true} : vector<2x128xf32> -> vector<2x128xf32>
    %776 = vector.extract_strided_slice %775 {offsets = [0, 0], sizes = [2, 32], strides = [1, 1]} : vector<2x128xf32> to vector<2x32xf32>
    %777 = vector.extract_strided_slice %775 {offsets = [0, 32], sizes = [2, 32], strides = [1, 1]} : vector<2x128xf32> to vector<2x32xf32>
    %778 = vector.extract_strided_slice %775 {offsets = [0, 64], sizes = [2, 32], strides = [1, 1]} : vector<2x128xf32> to vector<2x32xf32>
    %cst_168 = arith.constant 2.000000e+00 : f32
    %779 = vector.broadcast %cst_168 : f32 to vector<2x32xf32>
    %780 = arith.mulf %779, %778 : vector<2x32xf32>
    %cst_169 = arith.constant 1.000000e+00 : f32
    %781 = vector.broadcast %cst_169 : f32 to vector<2x32xf32>
    %782 = arith.subf %780, %781 : vector<2x32xf32>
    %783 = vector.extract_strided_slice %775 {offsets = [0, 96], sizes = [2, 32], strides = [1, 1]} : vector<2x128xf32> to vector<2x32xf32>
    %784 = arith.mulf %777, %758 : vector<2x32xf32>
    %785 = arith.mulf %776, %782 : vector<2x32xf32>
    %786 = arith.addf %784, %785 : vector<2x32xf32>
    %787 = math.tanh %786 : vector<2x32xf32>
    %788 = arith.mulf %783, %787 : vector<2x32xf32>
    %789 = vector.broadcast %11 : vector<1x32xf32> to vector<2x32xf32>
    %790 = arith.mulf %788, %789 : vector<2x32xf32>
    %cst_170 = arith.constant dense<0.000000e+00> : vector<2xf32>
    %791 = vector.multi_reduction <add>, %790, %cst_170 [1] : vector<2x32xf32> to vector<2xf32>
    %792 = vector.shape_cast %791 : vector<2xf32> to vector<2x1xf32>
    %793 = vector.broadcast %12 : vector<1x1xf32> to vector<2x1xf32>
    %794 = arith.addf %792, %793 : vector<2x1xf32>
    %c0_171 = arith.constant 0 : index
    %c15 = arith.constant 15 : index
    %795 = vector.load %arg2[%c0_171, %c15] : memref<2x16xf32, #tpu.memory_space<vmem>>, vector<2x1xf32>
    tpu.vector_store %arg2[%c0_171, %c15], %794 {strides = array<i32>} : memref<2x16xf32, #tpu.memory_space<vmem>>, vector<2x1xf32>,
    return
  }
}

</mosaic_0001>

<llo_original>
// kernel: closed_form_forward.1
$region0: #{closed_form_forward.1}
  #allocation0 [shape = 'u32[]', space=smem, size = 0x4, offset = 0x4, fixed_abs, tag = 'smem constant byte address 0x4 - core index']
  #allocation1 [shape = 'u32[144,128]{1,0:T(1,128)}', space=vmem, size = 0x12000, scoped, tag = 'internal scratch']
  %s0 = inlined_call_operand.vmem [shape: f32[2,8], index: 0, kind: input, shape index: {}]
  %s1 = inlined_call_operand.hbm [shape: f32[240,256], index: 1, kind: input, shape index: {}]
  %s2 = inlined_call_operand.hbm [shape: f32[2,16], index: 2, kind: output, shape index: {}]
  %s3 = sld [smem:[#allocation0]]
  $region22: #{closed_form_forward.1} parent=0
    _
  %s5 = ssub.s32 1, %s3
  %s6 = scalar_select 0, %s5, %s3
  $region1: #{closed_form_forward.1} parent=0
    #allocation2 [shape = 'u8[245760]{0}', space=vmem, size = 0x3c000, scoped, tag = 'input window, operand 1, single buffered']
    #allocation3 [shape = 's32[1]{0}', space=sflag, size = 0x4, scoped, tag = 'scoped memory for closed_form_forward.1']
    #allocation4 [shape = 's32[1]{0}', space=sflag, size = 0x4, scoped, tag = 'scoped memory for closed_form_forward.1']
    #allocation5 [shape = 'u8[1024]{0}', space=vmem, size = 0x400, scoped, tag = 'output window, operand 0, single buffered']
    %7 = vsyncpa [#allocation3], 0
    %8 = vsyncpa [#allocation4], 0
    // Predicated region
    $region2: #{closed_form_forward.1} parent=1 // pred_check
      _
    $region3: #{closed_form_forward.1} parent=1 // pred_check_branch
      %10 = sbr.rel (0) target = $region5
    $region4: #{closed_form_forward.1} parent=1 // pred_region
      _
    $region5: #{closed_form_forward.1} parent=1 // pred_fallthru
      _
    // Predicated region
    $region6: #{closed_form_forward.1} parent=1 // pred_check
      _
    $region7: #{closed_form_forward.1} parent=1 // pred_check_branch
      %12 = sbr.rel (0) target = $region9
    $region8: #{closed_form_forward.1} parent=1 // pred_region
      %s14 = ssub.s32 7680, 7680
      %15 = vsyncadd [#allocation3], %s14
      %s16 = sshll.u32 [#allocation2], 4
      %s17 = int_to_ptr.vmem [resolvable:$true] %s16
      %22 = dma.hbm_to_vmem [thread:$0]  %s1, 7680, %s17, [#allocation3], 256, 256, 16
    $region9: #{closed_form_forward.1} parent=1 // pred_fallthru
      _
    // Predicated region
    $region10: #{closed_form_forward.1} parent=1 // pred_check
      _
    $region11: #{closed_form_forward.1} parent=1 // pred_check_branch
      %24 = sbr.rel (0) target = $region13
    $region12: #{closed_form_forward.1} parent=1 // pred_region
      %25 = dma.done [#allocation3], 7680
    $region13: #{closed_form_forward.1} parent=1 // pred_fallthru
      _
    %v26 = vld [vmem:[#allocation2] sm:$0xff]
    %v27 = vld [vmem:[#allocation2 + $0x8] sm:$0xff]
    %v28 = vld [vmem:[#allocation2 + $0x10] sm:$0xff]
    %v29 = vld [vmem:[#allocation2 + $0x18] sm:$0xff]
    %v30 = vld [vmem:[#allocation2 + $0x20] sm:$0xff]
    %v31 = vld [vmem:[#allocation2 + $0x28] sm:$0xff]
    %v32 = vld [vmem:[#allocation2 + $0x30] sm:$0xff]
    %v33 = vld [vmem:[#allocation2 + $0x38] sm:$0xff]
    %v34 = vld [vmem:[#allocation2 + $0x40] sm:$0xff]
    %v35 = vld [vmem:[#allocation2 + $0x48] sm:$0xff]
    %v36 = vld [vmem:[#allocation2 + $0x50] sm:$0xff]
    %v37 = vld [vmem:[#allocation2 + $0x58] sm:$0xff]
    %v38 = vld [vmem:[#allocation2 + $0x60] sm:$0xff]
    %v39 = vld [vmem:[#allocation2 + $0x68] sm:$0xff]
    %v40 = vld [vmem:[#allocation2 + $0x70] sm:$0xff]
    %v41 = vld [vmem:[#allocation2 + $0x78] sm:$0xff]
    %v42 = vld [vmem:[#allocation2 + $0x80] sm:$0xff]
    %v43 = vld [vmem:[#allocation2 + $0x90] sm:$0xff]
    %v44 = vld [vmem:[#allocation2 + $0xa0] sm:$0xff]
    %v45 = vld [vmem:[#allocation2 + $0xb0] sm:$0xff]
    %v46 = vld [vmem:[#allocation2 + $0xc0] sm:$0xff]
    %v47 = vld [vmem:[#allocation2 + $0xd0] sm:$0xff]
    %v48 = vld [vmem:[#allocation2 + $0xe0] sm:$0xff]
    %v49 = vld [vmem:[#allocation2 + $0xf0] sm:$0xff]
    %v50 = vld [vmem:[#allocation2 + $0x100] sm:$0xff]
    %v51 = vld [vmem:[#allocation2 + $0x110] sm:$0xff]
    %v52 = vld [vmem:[#allocation2 + $0x120] sm:$0xff]
    %v53 = vld [vmem:[#allocation2 + $0x130] sm:$0xff]
    %v54 = vld [vmem:[#allocation2 + $0x140] sm:$0xff]
    %v55 = vld [vmem:[#allocation2 + $0x150] sm:$0xff]
    %v56 = vld [vmem:[#allocation2 + $0x160] sm:$0xff]
    %v57 = vld [vmem:[#allocation2 + $0x170] sm:$0xff]
    %v58 = vld [vmem:[#allocation2 + $0x180] sm:$0xff]
    %v59 = vld [vmem:[#allocation2 + $0x190] sm:$0xff]
    %v60 = vld [vmem:[#allocation2 + $0x1a0] sm:$0xff]
    %v61 = vld [vmem:[#allocation2 + $0x1b0] sm:$0xff]
    %v62 = vld [vmem:[#allocation2 + $0x1c0] sm:$0xff]
    %s63 = scalar_lea.vmem [#allocation2], 464
    %v64 = vld [vmem:[%s63] ss:$8 sm:$0x3]
    %s65 = scalar_lea.vmem [#allocation2], 465
    %v66 = vld [vmem:[%s65] ss:$8 sm:$0x3]
    %v67 = vld [vmem:[#allocation2 + $0x1d2] ss:$0 sm:$0xff]
    %v68 = vld [vmem:[#allocation2 + $0x1d3] ss:$0 sm:$0xff]
    %v69 = vld [vmem:[#allocation2 + $0x1d4] ss:$0 sm:$0xff]
    %v70 = vld [vmem:[#allocation2 + $0x1d5] ss:$0 sm:$0xff]
    %v71 = vld [vmem:[#allocation2 + $0x1d6] ss:$0 sm:$0xff]
    %v72 = vld [vmem:[#allocation2 + $0x1d7] ss:$0 sm:$0xff]
    %v73 = vld [vmem:[%s0] sm:$0x3]
    %75 = vset.pattern.permute.xlu0 0
    %76 = vperm.xlu0 %75, %v73
    %v77 = vpop.permute.xlu0 %76
    %v80 = vlaneseq
    %v81 = vshrl.u32 %v80, 7
    %v82 = vsub.s32 0, %v81
    %v83 = vrot.slane %v64, %v82
    %v84 = vlaneseq
    %v85 = vshrl.u32 %v84, 7
    %v86 = vsub.s32 1, %v85
    %v87 = vrot.slane %v64, %v86
    %v90 = vmul.f32 %v77, %v83
    %v91 = vmul.f32 %v77, %v87
    %v93 = vlaneseq
    %v94 = vshrl.u32 %v93, 7
    %v95 = vsub.s32 0, %v94
    %v96 = vrot.slane %v66, %v95
    %v97 = vlaneseq
    %v98 = vshrl.u32 %v97, 7
    %v99 = vsub.s32 1, %v98
    %v100 = vrot.slane %v66, %v99
    %v103 = vadd.f32 %v90, %v96
    %v104 = vadd.f32 %v91, %v100
    %105 = vset.pattern.permute.xlu0 1
    %106 = vperm.xlu0 %105, %v73
    %v107 = vpop.permute.xlu0 %106
    %v109 = vmul.f32 %v107, %v83
    %v110 = vmul.f32 %v107, %v87
    %v111 = vadd.f32 %v109, %v96
    %v112 = vadd.f32 %v110, %v100
    %113 = vset.pattern.permute.xlu0 2
    %114 = vperm.xlu0 %113, %v73
    %v115 = vpop.permute.xlu0 %114
    %v117 = vmul.f32 %v115, %v83
    %v118 = vmul.f32 %v115, %v87
    %v119 = vadd.f32 %v117, %v96
    %v120 = vadd.f32 %v118, %v100
    %121 = vset.pattern.permute.xlu0 3
    %122 = vperm.xlu0 %121, %v73
    %v123 = vpop.permute.xlu0 %122
    %v125 = vmul.f32 %v123, %v83
    %v126 = vmul.f32 %v123, %v87
    %v127 = vadd.f32 %v125, %v96
    %v128 = vadd.f32 %v126, %v100
    %129 = vset.pattern.permute.xlu0 4
    %130 = vperm.xlu0 %129, %v73
    %v131 = vpop.permute.xlu0 %130
    %v133 = vmul.f32 %v131, %v83
    %v134 = vmul.f32 %v131, %v87
    %v135 = vadd.f32 %v133, %v96
    %v136 = vadd.f32 %v134, %v100
    %137 = vset.pattern.permute.xlu0 5
    %138 = vperm.xlu0 %137, %v73
    %v139 = vpop.permute.xlu0 %138
    %v141 = vmul.f32 %v139, %v83
    %v142 = vmul.f32 %v139, %v87
    %v143 = vadd.f32 %v141, %v96
    %v144 = vadd.f32 %v142, %v100
    %145 = vset.pattern.permute.xlu0 6
    %146 = vperm.xlu0 %145, %v73
    %v147 = vpop.permute.xlu0 %146
    %v149 = vmul.f32 %v147, %v83
    %v150 = vmul.f32 %v147, %v87
    %v151 = vadd.f32 %v149, %v96
    %v152 = vadd.f32 %v150, %v100
    %153 = vset.pattern.permute.xlu0 7
    %154 = vperm.xlu0 %153, %v73
    %v155 = vpop.permute.xlu0 %154
    %v157 = vmul.f32 %v155, %v83
    %v158 = vmul.f32 %v155, %v87
    %v159 = vadd.f32 %v157, %v96
    %v160 = vadd.f32 %v158, %v100
    %v161 = vsub.f32 0.0, %v103
    %v162 = vsub.f32 0.0, %v104
    %v163 = vmul.f32 %v161, 1.442695
    %v164 = vpow.pop %v163
    %v165 = vmul.f32 %v162, 1.442695
    %v166 = vpow.pop %v165
    %v167 = vadd.f32 %v164, 1.0
    %v168 = vadd.f32 %v166, 1.0
    %v169 = vrcp.pop %v167
    %v170 = vrcp.pop %v168
    %v171 = vmul.f32 %v170, 2.0
    %v172 = vsub.f32 %v171, 1.0
    %v173 = vmul.f32 %v169, %v172
    %v174 = vtanh.pop %v173
    %176 = vrot.lane.b32.xlu0 %v174, 64
    %v177 = vpop.permute.xlu0 %176
    %v179 = vmul.f32 %v170, %v177
    %181 = vrot.lane.b32.xlu0 %v179, 64
    %v182 = vpop.permute.xlu0 %181
    %vm183 = vcmask 523264
    %v184 = vsel %vm183, %v182, 0
    %186 = vmatprep.subr.mxu0 %v27
    %187 = vmatpush1.msra.mxu0 %v26
    %188 = vmatprep.subr.mxu0 %v29
    %189 = vmatpush1.msra.mxu0 %v28
    %190 = vmatprep.subr.mxu0 %v31
    %191 = vmatpush1.msra.mxu0 %v30
    %192 = vmatprep.subr.mxu0 %v33
    %193 = vmatpush1.msra.mxu0 %v32
    %194 = vmatprep.subr.mxu0 %v35
    %195 = vmatpush1.msra.mxu0 %v34
    %196 = vmatprep.subr.mxu0 %v37
    %197 = vmatpush1.msra.mxu0 %v36
    %198 = vmatprep.subr.mxu0 %v39
    %199 = vmatpush1.msra.mxu0 %v38
    %200 = vmatprep.subr.mxu0 %v41
    %201 = vmatpush1.msra.mxu0 %v40
    %202 = vmatprep.subr.mxu0 0.0
    %203 = vmatpush1.msra.mxu0 0.0
    %204 = vmatprep.subr.mxu0 0.0
    %205 = vmatpush1.msra.mxu0 0.0
    %206 = vmatprep.subr.mxu0 0.0
    %207 = vmatpush1.msra.mxu0 0.0
    %208 = vmatprep.subr.mxu0 0.0
    %209 = vmatpush1.msra.mxu0 0.0
    %210 = vmatprep.subr.mxu0 0.0
    %211 = vmatpush1.msra.mxu0 0.0
    %212 = vmatprep.subr.mxu0 0.0
    %213 = vmatpush1.msra.mxu0 0.0
    %214 = vmatprep.subr.mxu0 0.0
    %215 = vmatpush1.msra.mxu0 0.0
    %216 = vmatprep.subr.mxu0 0.0
    %217 = vmatpush1.msra.mxu0 0.0
    %218 = vmatprep.subr.mxu0 0.0
    %219 = vmatpush1.msra.mxu0 0.0
    %220 = vmatprep.subr.mxu0 0.0
    %221 = vmatpush1.msra.mxu0 0.0
    %222 = vmatprep.subr.mxu0 0.0
    %223 = vmatpush1.msra.mxu0 0.0
    %224 = vmatprep.subr.mxu0 0.0
    %225 = vmatpush1.msra.mxu0 0.0
    %226 = vmatprep.subr.mxu0 0.0
    %227 = vmatpush1.msra.mxu0 0.0
    %228 = vmatprep.subr.mxu0 0.0
    %229 = vmatpush1.msra.mxu0 0.0
    %230 = vmatprep.subr.mxu0 0.0
    %231 = vmatpush1.msra.mxu0 0.0
    %232 = vmatprep.subr.mxu0 0.0
    %233 = vmatpush1.msra.mxu0 0.0
    %234 = vmatprep.subr.mxu0 0.0
    %235 = vmatpush1.msra.mxu0 0.0
    %236 = vmatprep.subr.mxu0 0.0
    %237 = vmatpush1.msra.mxu0 0.0
    %238 = vmatprep.subr.mxu0 0.0
    %239 = vmatpush1.msra.mxu0 0.0
    %240 = vmatprep.subr.mxu0 0.0
    %241 = vmatpush1.msra.mxu0 0.0
    %242 = vmatprep.subr.mxu0 0.0
    %243 = vmatpush1.msra.mxu0 0.0
    %244 = vmatprep.subr.mxu0 0.0
    %245 = vmatpush1.msra.mxu0 0.0
    %246 = vmatprep.subr.mxu0 0.0
    %247 = vmatpush1.msra.mxu0 0.0
    %248 = vmatprep.subr.mxu0 0.0
    %249 = vmatpush1.msra.mxu0 0.0
    %250 = vmatprep.mubr.f32.mxu0 0.0
    %251 = vmatmul.mubr.f32.gmra.mrb[0].mxu0 %v184
    %v252 = vpop.f32.mrb[0].mxu0
    %v253 = vadd.f32 0.0, %v252
    %v254 = vpop.f32.mrb[0].mxu0
    %v255 = vadd.f32 0.0, %v254
    %256 = vdwg.mxu0
    %v257 = vadd.f32 %v111, %v253
    %v258 = vadd.f32 %v112, %v255
    %v259 = vsub.f32 0.0, %v257
    %v260 = vsub.f32 0.0, %v258
    %v261 = vmul.f32 %v259, 1.442695
    %v262 = vpow.pop %v261
    %v263 = vmul.f32 %v260, 1.442695
    %v264 = vpow.pop %v263
    %v265 = vadd.f32 %v262, 1.0
    %v266 = vadd.f32 %v264, 1.0
    %v267 = vrcp.pop %v265
    %v268 = vrcp.pop %v266
    %v269 = vmul.f32 %v268, 2.0
    %v270 = vsub.f32 %v269, 1.0
    %272 = vrot.lane.b32.xlu0 %v173, 64
    %v273 = vpop.permute.xlu0 %272
    %v275 = vmul.f32 %v267, %v273
    %v276 = vmul.f32 %v267, %v270
    %278 = vrot.lane.b32.xlu0 %v276, 64
    %v279 = vpop.permute.xlu0 %278
    %v281 = vadd.f32 %v275, %v279
    %v282 = vtanh.pop %v281
    %v283 = vmul.f32 %v268, %v282
    %285 = vrot.lane.b32.xlu0 %v283, 64
    %v286 = vpop.permute.xlu0 %285
    %v287 = vsel %vm183, %v286, 0
    %289 = vmatprep.subr.mxu0 %v27
    %290 = vmatpush1.msra.mxu0 %v26
    %291 = vmatprep.subr.mxu0 %v29
    %292 = vmatpush1.msra.mxu0 %v28
    %293 = vmatprep.subr.mxu0 %v31
    %294 = vmatpush1.msra.mxu0 %v30
    %295 = vmatprep.subr.mxu0 %v33
    %296 = vmatpush1.msra.mxu0 %v32
    %297 = vmatprep.subr.mxu0 %v35
    %298 = vmatpush1.msra.mxu0 %v34
    %299 = vmatprep.subr.mxu0 %v37
    %300 = vmatpush1.msra.mxu0 %v36
    %301 = vmatprep.subr.mxu0 %v39
    %302 = vmatpush1.msra.mxu0 %v38
    %303 = vmatprep.subr.mxu0 %v41
    %304 = vmatpush1.msra.mxu0 %v40
    %305 = vmatprep.subr.mxu0 0.0
    %306 = vmatpush1.msra.mxu0 0.0
    %307 = vmatprep.subr.mxu0 0.0
    %308 = vmatpush1.msra.mxu0 0.0
    %309 = vmatprep.subr.mxu0 0.0
    %310 = vmatpush1.msra.mxu0 0.0
    %311 = vmatprep.subr.mxu0 0.0
    %312 = vmatpush1.msra.mxu0 0.0
    %313 = vmatprep.subr.mxu0 0.0
    %314 = vmatpush1.msra.mxu0 0.0
    %315 = vmatprep.subr.mxu0 0.0
    %316 = vmatpush1.msra.mxu0 0.0
    %317 = vmatprep.subr.mxu0 0.0
    %318 = vmatpush1.msra.mxu0 0.0
    %319 = vmatprep.subr.mxu0 0.0
    %320 = vmatpush1.msra.mxu0 0.0
    %321 = vmatprep.subr.mxu0 0.0
    %322 = vmatpush1.msra.mxu0 0.0
    %323 = vmatprep.subr.mxu0 0.0
    %324 = vmatpush1.msra.mxu0 0.0
    %325 = vmatprep.subr.mxu0 0.0
    %326 = vmatpush1.msra.mxu0 0.0
    %327 = vmatprep.subr.mxu0 0.0
    %328 = vmatpush1.msra.mxu0 0.0
    %329 = vmatprep.subr.mxu0 0.0
    %330 = vmatpush1.msra.mxu0 0.0
    %331 = vmatprep.subr.mxu0 0.0
    %332 = vmatpush1.msra.mxu0 0.0
    %333 = vmatprep.subr.mxu0 0.0
    %334 = vmatpush1.msra.mxu0 0.0
    %335 = vmatprep.subr.mxu0 0.0
    %336 = vmatpush1.msra.mxu0 0.0
    %337 = vmatprep.subr.mxu0 0.0
    %338 = vmatpush1.msra.mxu0 0.0
    %339 = vmatprep.subr.mxu0 0.0
    %340 = vmatpush1.msra.mxu0 0.0
    %341 = vmatprep.subr.mxu0 0.0
    %342 = vmatpush1.msra.mxu0 0.0
    %343 = vmatprep.subr.mxu0 0.0
    %344 = vmatpush1.msra.mxu0 0.0
    %345 = vmatprep.subr.mxu0 0.0
    %346 = vmatpush1.msra.mxu0 0.0
    %347 = vmatprep.subr.mxu0 0.0
    %348 = vmatpush1.msra.mxu0 0.0
    %349 = vmatprep.subr.mxu0 0.0
    %350 = vmatpush1.msra.mxu0 0.0
    %351 = vmatprep.subr.mxu0 0.0
    %352 = vmatpush1.msra.mxu0 0.0
    %353 = vmatprep.mubr.f32.mxu0 0.0
    %354 = vmatmul.mubr.f32.gmra.mrb[0].mxu0 %v287
    %v355 = vpop.f32.mrb[0].mxu0
    %v356 = vadd.f32 0.0, %v355
    %v357 = vpop.f32.mrb[0].mxu0
    %v358 = vadd.f32 0.0, %v357
    %359 = vdwg.mxu0
    %v360 = vadd.f32 %v119, %v356
    %v361 = vadd.f32 %v120, %v358
    %v362 = vsub.f32 0.0, %v360
    %v363 = vsub.f32 0.0, %v361
    %v364 = vmul.f32 %v362, 1.442695
    %v365 = vpow.pop %v364
    %v366 = vmul.f32 %v363, 1.442695
    %v367 = vpow.pop %v366
    %v368 = vadd.f32 %v365, 1.0
    %v369 = vadd.f32 %v367, 1.0
    %v370 = vrcp.pop %v368
    %v371 = vrcp.pop %v369
    %v372 = vmul.f32 %v371, 2.0
    %v373 = vsub.f32 %v372, 1.0
    %v374 = vmul.f32 %v370, %v281
    %v375 = vmul.f32 %v370, %v373
    %377 = vrot.lane.b32.xlu0 %v375, 64
    %v378 = vpop.permute.xlu0 %377
    %v380 = vadd.f32 %v374, %v378
    %v381 = vtanh.pop %v380
    %v382 = vmul.f32 %v371, %v381
    %384 = vrot.lane.b32.xlu0 %v382, 64
    %v385 = vpop.permute.xlu0 %384
    %v386 = vsel %vm183, %v385, 0
    %388 = vmatprep.subr.mxu0 %v27
    %389 = vmatpush1.msra.mxu0 %v26
    %390 = vmatprep.subr.mxu0 %v29
    %391 = vmatpush1.msra.mxu0 %v28
    %392 = vmatprep.subr.mxu0 %v31
    %393 = vmatpush1.msra.mxu0 %v30
    %394 = vmatprep.subr.mxu0 %v33
    %395 = vmatpush1.msra.mxu0 %v32
    %396 = vmatprep.subr.mxu0 %v35
    %397 = vmatpush1.msra.mxu0 %v34
    %398 = vmatprep.subr.mxu0 %v37
    %399 = vmatpush1.msra.mxu0 %v36
    %400 = vmatprep.subr.mxu0 %v39
    %401 = vmatpush1.msra.mxu0 %v38
    %402 = vmatprep.subr.mxu0 %v41
    %403 = vmatpush1.msra.mxu0 %v40
    %404 = vmatprep.subr.mxu0 0.0
    %405 = vmatpush1.msra.mxu0 0.0
    %406 = vmatprep.subr.mxu0 0.0
    %407 = vmatpush1.msra.mxu0 0.0
    %408 = vmatprep.subr.mxu0 0.0
    %409 = vmatpush1.msra.mxu0 0.0
    %410 = vmatprep.subr.mxu0 0.0
    %411 = vmatpush1.msra.mxu0 0.0
    %412 = vmatprep.subr.mxu0 0.0
    %413 = vmatpush1.msra.mxu0 0.0
    %414 = vmatprep.subr.mxu0 0.0
    %415 = vmatpush1.msra.mxu0 0.0
    %416 = vmatprep.subr.mxu0 0.0
    %417 = vmatpush1.msra.mxu0 0.0
    %418 = vmatprep.subr.mxu0 0.0
    %419 = vmatpush1.msra.mxu0 0.0
    %420 = vmatprep.subr.mxu0 0.0
    %421 = vmatpush1.msra.mxu0 0.0
    %422 = vmatprep.subr.mxu0 0.0
    %423 = vmatpush1.msra.mxu0 0.0
    %424 = vmatprep.subr.mxu0 0.0
    %425 = vmatpush1.msra.mxu0 0.0
    %426 = vmatprep.subr.mxu0 0.0
    %427 = vmatpush1.msra.mxu0 0.0
    %428 = vmatprep.subr.mxu0 0.0
    %429 = vmatpush1.msra.mxu0 0.0
    %430 = vmatprep.subr.mxu0 0.0
    %431 = vmatpush1.msra.mxu0 0.0
    %432 = vmatprep.subr.mxu0 0.0
    %433 = vmatpush1.msra.mxu0 0.0
    %434 = vmatprep.subr.mxu0 0.0
    %435 = vmatpush1.msra.mxu0 0.0
    %436 = vmatprep.subr.mxu0 0.0
    %437 = vmatpush1.msra.mxu0 0.0
    %438 = vmatprep.subr.mxu0 0.0
    %439 = vmatpush1.msra.mxu0 0.0
    %440 = vmatprep.subr.mxu0 0.0
    %441 = vmatpush1.msra.mxu0 0.0
    %442 = vmatprep.subr.mxu0 0.0
    %443 = vmatpush1.msra.mxu0 0.0
    %444 = vmatprep.subr.mxu0 0.0
    %445 = vmatpush1.msra.mxu0 0.0
    %446 = vmatprep.subr.mxu0 0.0
    %447 = vmatpush1.msra.mxu0 0.0
    %448 = vmatprep.subr.mxu0 0.0
    %449 = vmatpush1.msra.mxu0 0.0
    %450 = vmatprep.subr.mxu0 0.0
    %451 = vmatpush1.msra.mxu0 0.0
    %452 = vmatprep.mubr.f32.mxu0 0.0
    %453 = vmatmul.mubr.f32.gmra.mrb[0].mxu0 %v386
    %v454 = vpop.f32.mrb[0].mxu0
    %v455 = vadd.f32 0.0, %v454
    %v456 = vpop.f32.mrb[0].mxu0
    %v457 = vadd.f32 0.0, %v456
    %458 = vdwg.mxu0
    %v459 = vadd.f32 %v127, %v455
    %v460 = vadd.f32 %v128, %v457
    %v461 = vsub.f32 0.0, %v459
    %v462 = vsub.f32 0.0, %v460
    %v463 = vmul.f32 %v461, 1.442695
    %v464 = vpow.pop %v463
    %v465 = vmul.f32 %v462, 1.442695
    %v466 = vpow.pop %v465
    %v467 = vadd.f32 %v464, 1.0
    %v468 = vadd.f32 %v466, 1.0
    %v469 = vrcp.pop %v467
    %v470 = vrcp.pop %v468
    %v471 = vmul.f32 %v470, 2.0
    %v472 = vsub.f32 %v471, 1.0
    %v473 = vmul.f32 %v469, %v380
    %v474 = vmul.f32 %v469, %v472
    %476 = vrot.lane.b32.xlu0 %v474, 64
    %v477 = vpop.permute.xlu0 %476
    %v479 = vadd.f32 %v473, %v477
    %v480 = vtanh.pop %v479
    %v481 = vmul.f32 %v470, %v480
    %483 = vrot.lane.b32.xlu0 %v481, 64
    %v484 = vpop.permute.xlu0 %483
    %v485 = vsel %vm183, %v484, 0
    %487 = vmatprep.subr.mxu0 %v27
    %488 = vmatpush1.msra.mxu0 %v26
    %489 = vmatprep.subr.mxu0 %v29
    %490 = vmatpush1.msra.mxu0 %v28
    %491 = vmatprep.subr.mxu0 %v31
    %492 = vmatpush1.msra.mxu0 %v30
    %493 = vmatprep.subr.mxu0 %v33
    %494 = vmatpush1.msra.mxu0 %v32
    %495 = vmatprep.subr.mxu0 %v35
    %496 = vmatpush1.msra.mxu0 %v34
    %497 = vmatprep.subr.mxu0 %v37
    %498 = vmatpush1.msra.mxu0 %v36
    %499 = vmatprep.subr.mxu0 %v39
    %500 = vmatpush1.msra.mxu0 %v38
    %501 = vmatprep.subr.mxu0 %v41
    %502 = vmatpush1.msra.mxu0 %v40
    %503 = vmatprep.subr.mxu0 0.0
    %504 = vmatpush1.msra.mxu0 0.0
    %505 = vmatprep.subr.mxu0 0.0
    %506 = vmatpush1.msra.mxu0 0.0
    %507 = vmatprep.subr.mxu0 0.0
    %508 = vmatpush1.msra.mxu0 0.0
    %509 = vmatprep.subr.mxu0 0.0
    %510 = vmatpush1.msra.mxu0 0.0
    %511 = vmatprep.subr.mxu0 0.0
    %512 = vmatpush1.msra.mxu0 0.0
    %513 = vmatprep.subr.mxu0 0.0
    %514 = vmatpush1.msra.mxu0 0.0
    %515 = vmatprep.subr.mxu0 0.0
    %516 = vmatpush1.msra.mxu0 0.0
    %517 = vmatprep.subr.mxu0 0.0
    %518 = vmatpush1.msra.mxu0 0.0
    %519 = vmatprep.subr.mxu0 0.0
    %520 = vmatpush1.msra.mxu0 0.0
    %521 = vmatprep.subr.mxu0 0.0
    %522 = vmatpush1.msra.mxu0 0.0
    %523 = vmatprep.subr.mxu0 0.0
    %524 = vmatpush1.msra.mxu0 0.0
    %525 = vmatprep.subr.mxu0 0.0
    %526 = vmatpush1.msra.mxu0 0.0
    %527 = vmatprep.subr.mxu0 0.0
    %528 = vmatpush1.msra.mxu0 0.0
    %529 = vmatprep.subr.mxu0 0.0
    %530 = vmatpush1.msra.mxu0 0.0
    %531 = vmatprep.subr.mxu0 0.0
    %532 = vmatpush1.msra.mxu0 0.0
    %533 = vmatprep.subr.mxu0 0.0
    %534 = vmatpush1.msra.mxu0 0.0
    %535 = vmatprep.subr.mxu0 0.0
    %536 = vmatpush1.msra.mxu0 0.0
    %537 = vmatprep.subr.mxu0 0.0
    %538 = vmatpush1.msra.mxu0 0.0
    %539 = vmatprep.subr.mxu0 0.0
    %540 = vmatpush1.msra.mxu0 0.0
    %541 = vmatprep.subr.mxu0 0.0
    %542 = vmatpush1.msra.mxu0 0.0
    %543 = vmatprep.subr.mxu0 0.0
    %544 = vmatpush1.msra.mxu0 0.0
    %545 = vmatprep.subr.mxu0 0.0
    %546 = vmatpush1.msra.mxu0 0.0
    %547 = vmatprep.subr.mxu0 0.0
    %548 = vmatpush1.msra.mxu0 0.0
    %549 = vmatprep.subr.mxu0 0.0
    %550 = vmatpush1.msra.mxu0 0.0
    %551 = vmatprep.mubr.f32.mxu0 0.0
    %552 = vmatmul.mubr.f32.gmra.mrb[0].mxu0 %v485
    %v553 = vpop.f32.mrb[0].mxu0
    %v554 = vadd.f32 0.0, %v553
    %v555 = vpop.f32.mrb[0].mxu0
    %v556 = vadd.f32 0.0, %v555
    %557 = vdwg.mxu0
    %v558 = vadd.f32 %v135, %v554
    %v559 = vadd.f32 %v136, %v556
    %v560 = vsub.f32 0.0, %v558
    %v561 = vsub.f32 0.0, %v559
    %v562 = vmul.f32 %v560, 1.442695
    %v563 = vpow.pop %v562
    %v564 = vmul.f32 %v561, 1.442695
    %v565 = vpow.pop %v564
    %v566 = vadd.f32 %v563, 1.0
    %v567 = vadd.f32 %v565, 1.0
    %v568 = vrcp.pop %v566
    %v569 = vrcp.pop %v567
    %v570 = vmul.f32 %v569, 2.0
    %v571 = vsub.f32 %v570, 1.0
    %v572 = vmul.f32 %v568, %v479
    %v573 = vmul.f32 %v568, %v571
    %575 = vrot.lane.b32.xlu0 %v573, 64
    %v576 = vpop.permute.xlu0 %575
    %v578 = vadd.f32 %v572, %v576
    %v579 = vtanh.pop %v578
    %v580 = vmul.f32 %v569, %v579
    %582 = vrot.lane.b32.xlu0 %v580, 64
    %v583 = vpop.permute.xlu0 %582
    %v584 = vsel %vm183, %v583, 0
    %586 = vmatprep.subr.mxu0 %v27
    %587 = vmatpush1.msra.mxu0 %v26
    %588 = vmatprep.subr.mxu0 %v29
    %589 = vmatpush1.msra.mxu0 %v28
    %590 = vmatprep.subr.mxu0 %v31
    %591 = vmatpush1.msra.mxu0 %v30
    %592 = vmatprep.subr.mxu0 %v33
    %593 = vmatpush1.msra.mxu0 %v32
    %594 = vmatprep.subr.mxu0 %v35
    %595 = vmatpush1.msra.mxu0 %v34
    %596 = vmatprep.subr.mxu0 %v37
    %597 = vmatpush1.msra.mxu0 %v36
    %598 = vmatprep.subr.mxu0 %v39
    %599 = vmatpush1.msra.mxu0 %v38
    %600 = vmatprep.subr.mxu0 %v41
    %601 = vmatpush1.msra.mxu0 %v40
    %602 = vmatprep.subr.mxu0 0.0
    %603 = vmatpush1.msra.mxu0 0.0
    %604 = vmatprep.subr.mxu0 0.0
    %605 = vmatpush1.msra.mxu0 0.0
    %606 = vmatprep.subr.mxu0 0.0
    %607 = vmatpush1.msra.mxu0 0.0
    %608 = vmatprep.subr.mxu0 0.0
    %609 = vmatpush1.msra.mxu0 0.0
    %610 = vmatprep.subr.mxu0 0.0
    %611 = vmatpush1.msra.mxu0 0.0
    %612 = vmatprep.subr.mxu0 0.0
    %613 = vmatpush1.msra.mxu0 0.0
    %614 = vmatprep.subr.mxu0 0.0
    %615 = vmatpush1.msra.mxu0 0.0
    %616 = vmatprep.subr.mxu0 0.0
    %617 = vmatpush1.msra.mxu0 0.0
    %618 = vmatprep.subr.mxu0 0.0
    %619 = vmatpush1.msra.mxu0 0.0
    %620 = vmatprep.subr.mxu0 0.0
    %621 = vmatpush1.msra.mxu0 0.0
    %622 = vmatprep.subr.mxu0 0.0
    %623 = vmatpush1.msra.mxu0 0.0
    %624 = vmatprep.subr.mxu0 0.0
    %625 = vmatpush1.msra.mxu0 0.0
    %626 = vmatprep.subr.mxu0 0.0
    %627 = vmatpush1.msra.mxu0 0.0
    %628 = vmatprep.subr.mxu0 0.0
    %629 = vmatpush1.msra.mxu0 0.0
    %630 = vmatprep.subr.mxu0 0.0
    %631 = vmatpush1.msra.mxu0 0.0
    %632 = vmatprep.subr.mxu0 0.0
    %633 = vmatpush1.msra.mxu0 0.0
    %634 = vmatprep.subr.mxu0 0.0
    %635 = vmatpush1.msra.mxu0 0.0
    %636 = vmatprep.subr.mxu0 0.0
    %637 = vmatpush1.msra.mxu0 0.0
    %638 = vmatprep.subr.mxu0 0.0
    %639 = vmatpush1.msra.mxu0 0.0
    %640 = vmatprep.subr.mxu0 0.0
    %641 = vmatpush1.msra.mxu0 0.0
    %642 = vmatprep.subr.mxu0 0.0
    %643 = vmatpush1.msra.mxu0 0.0
    %644 = vmatprep.subr.mxu0 0.0
    %645 = vmatpush1.msra.mxu0 0.0
    %646 = vmatprep.subr.mxu0 0.0
    %647 = vmatpush1.msra.mxu0 0.0
    %648 = vmatprep.subr.mxu0 0.0
    %649 = vmatpush1.msra.mxu0 0.0
    %650 = vmatprep.mubr.f32.mxu0 0.0
    %651 = vmatmul.mubr.f32.gmra.mrb[0].mxu0 %v584
    %v652 = vpop.f32.mrb[0].mxu0
    %v653 = vadd.f32 0.0, %v652
    %v654 = vpop.f32.mrb[0].mxu0
    %v655 = vadd.f32 0.0, %v654
    %656 = vdwg.mxu0
    %v657 = vadd.f32 %v143, %v653
    %v658 = vadd.f32 %v144, %v655
    %v659 = vsub.f32 0.0, %v657
    %v660 = vsub.f32 0.0, %v658
    %v661 = vmul.f32 %v659, 1.442695
    %v662 = vpow.pop %v661
    %v663 = vmul.f32 %v660, 1.442695
    %v664 = vpow.pop %v663
    %v665 = vadd.f32 %v662, 1.0
    %v666 = vadd.f32 %v664, 1.0
    %v667 = vrcp.pop %v665
    %v668 = vrcp.pop %v666
    %v669 = vmul.f32 %v668, 2.0
    %v670 = vsub.f32 %v669, 1.0
    %v671 = vmul.f32 %v667, %v578
    %v672 = vmul.f32 %v667, %v670
    %674 = vrot.lane.b32.xlu0 %v672, 64
    %v675 = vpop.permute.xlu0 %674
    %v677 = vadd.f32 %v671, %v675
    %v678 = vtanh.pop %v677
    %v679 = vmul.f32 %v668, %v678
    %681 = vrot.lane.b32.xlu0 %v679, 64
    %v682 = vpop.permute.xlu0 %681
    %v683 = vsel %vm183, %v682, 0
    %685 = vmatprep.subr.mxu0 %v27
    %686 = vmatpush1.msra.mxu0 %v26
    %687 = vmatprep.subr.mxu0 %v29
    %688 = vmatpush1.msra.mxu0 %v28
    %689 = vmatprep.subr.mxu0 %v31
    %690 = vmatpush1.msra.mxu0 %v30
    %691 = vmatprep.subr.mxu0 %v33
    %692 = vmatpush1.msra.mxu0 %v32
    %693 = vmatprep.subr.mxu0 %v35
    %694 = vmatpush1.msra.mxu0 %v34
    %695 = vmatprep.subr.mxu0 %v37
    %696 = vmatpush1.msra.mxu0 %v36
    %697 = vmatprep.subr.mxu0 %v39
    %698 = vmatpush1.msra.mxu0 %v38
    %699 = vmatprep.subr.mxu0 %v41
    %700 = vmatpush1.msra.mxu0 %v40
    %701 = vmatprep.subr.mxu0 0.0
    %702 = vmatpush1.msra.mxu0 0.0
    %703 = vmatprep.subr.mxu0 0.0
    %704 = vmatpush1.msra.mxu0 0.0
    %705 = vmatprep.subr.mxu0 0.0
    %706 = vmatpush1.msra.mxu0 0.0
    %707 = vmatprep.subr.mxu0 0.0
    %708 = vmatpush1.msra.mxu0 0.0
    %709 = vmatprep.subr.mxu0 0.0
    %710 = vmatpush1.msra.mxu0 0.0
    %711 = vmatprep.subr.mxu0 0.0
    %712 = vmatpush1.msra.mxu0 0.0
    %713 = vmatprep.subr.mxu0 0.0
    %714 = vmatpush1.msra.mxu0 0.0
    %715 = vmatprep.subr.mxu0 0.0
    %716 = vmatpush1.msra.mxu0 0.0
    %717 = vmatprep.subr.mxu0 0.0
    %718 = vmatpush1.msra.mxu0 0.0
    %719 = vmatprep.subr.mxu0 0.0
    %720 = vmatpush1.msra.mxu0 0.0
    %721 = vmatprep.subr.mxu0 0.0
    %722 = vmatpush1.msra.mxu0 0.0
    %723 = vmatprep.subr.mxu0 0.0
    %724 = vmatpush1.msra.mxu0 0.0
    %725 = vmatprep.subr.mxu0 0.0
    %726 = vmatpush1.msra.mxu0 0.0
    %727 = vmatprep.subr.mxu0 0.0
    %728 = vmatpush1.msra.mxu0 0.0
    %729 = vmatprep.subr.mxu0 0.0
    %730 = vmatpush1.msra.mxu0 0.0
    %731 = vmatprep.subr.mxu0 0.0
    %732 = vmatpush1.msra.mxu0 0.0
    %733 = vmatprep.subr.mxu0 0.0
    %734 = vmatpush1.msra.mxu0 0.0
    %735 = vmatprep.subr.mxu0 0.0
    %736 = vmatpush1.msra.mxu0 0.0
    %737 = vmatprep.subr.mxu0 0.0
    %738 = vmatpush1.msra.mxu0 0.0
    %739 = vmatprep.subr.mxu0 0.0
    %740 = vmatpush1.msra.mxu0 0.0
    %741 = vmatprep.subr.mxu0 0.0
    %742 = vmatpush1.msra.mxu0 0.0
    %743 = vmatprep.subr.mxu0 0.0
    %744 = vmatpush1.msra.mxu0 0.0
    %745 = vmatprep.subr.mxu0 0.0
    %746 = vmatpush1.msra.mxu0 0.0
    %747 = vmatprep.subr.mxu0 0.0
    %748 = vmatpush1.msra.mxu0 0.0
    %749 = vmatprep.mubr.f32.mxu0 0.0
    %750 = vmatmul.mubr.f32.gmra.mrb[0].mxu0 %v683
    %v751 = vpop.f32.mrb[0].mxu0
    %v752 = vadd.f32 0.0, %v751
    %v753 = vpop.f32.mrb[0].mxu0
    %v754 = vadd.f32 0.0, %v753
    %755 = vdwg.mxu0
    %v756 = vadd.f32 %v151, %v752
    %v757 = vadd.f32 %v152, %v754
    %v758 = vsub.f32 0.0, %v756
    %v759 = vsub.f32 0.0, %v757
    %v760 = vmul.f32 %v758, 1.442695
    %v761 = vpow.pop %v760
    %v762 = vmul.f32 %v759, 1.442695
    %v763 = vpow.pop %v762
    %v764 = vadd.f32 %v761, 1.0
    %v765 = vadd.f32 %v763, 1.0
    %v766 = vrcp.pop %v764
    %v767 = vrcp.pop %v765
    %v768 = vmul.f32 %v767, 2.0
    %v769 = vsub.f32 %v768, 1.0
    %v770 = vmul.f32 %v766, %v677
    %v771 = vmul.f32 %v766, %v769
    %773 = vrot.lane.b32.xlu0 %v771, 64
    %v774 = vpop.permute.xlu0 %773
    %v776 = vadd.f32 %v770, %v774
    %v777 = vtanh.pop %v776
    %v778 = vmul.f32 %v767, %v777
    %780 = vrot.lane.b32.xlu0 %v778, 64
    %v781 = vpop.permute.xlu0 %780
    %v782 = vsel %vm183, %v781, 0
    %784 = vmatprep.subr.mxu0 %v27
    %785 = vmatpush1.msra.mxu0 %v26
    %786 = vmatprep.subr.mxu0 %v29
    %787 = vmatpush1.msra.mxu0 %v28
    %788 = vmatprep.subr.mxu0 %v31
    %789 = vmatpush1.msra.mxu0 %v30
    %790 = vmatprep.subr.mxu0 %v33
    %791 = vmatpush1.msra.mxu0 %v32
    %792 = vmatprep.subr.mxu0 %v35
    %793 = vmatpush1.msra.mxu0 %v34
    %794 = vmatprep.subr.mxu0 %v37
    %795 = vmatpush1.msra.mxu0 %v36
    %796 = vmatprep.subr.mxu0 %v39
    %797 = vmatpush1.msra.mxu0 %v38
    %798 = vmatprep.subr.mxu0 %v41
    %799 = vmatpush1.msra.mxu0 %v40
    %800 = vmatprep.subr.mxu0 0.0
    %801 = vmatpush1.msra.mxu0 0.0
    %802 = vmatprep.subr.mxu0 0.0
    %803 = vmatpush1.msra.mxu0 0.0
    %804 = vmatprep.subr.mxu0 0.0
    %805 = vmatpush1.msra.mxu0 0.0
    %806 = vmatprep.subr.mxu0 0.0
    %807 = vmatpush1.msra.mxu0 0.0
    %808 = vmatprep.subr.mxu0 0.0
    %809 = vmatpush1.msra.mxu0 0.0
    %810 = vmatprep.subr.mxu0 0.0
    %811 = vmatpush1.msra.mxu0 0.0
    %812 = vmatprep.subr.mxu0 0.0
    %813 = vmatpush1.msra.mxu0 0.0
    %814 = vmatprep.subr.mxu0 0.0
    %815 = vmatpush1.msra.mxu0 0.0
    %816 = vmatprep.subr.mxu0 0.0
    %817 = vmatpush1.msra.mxu0 0.0
    %818 = vmatprep.subr.mxu0 0.0
    %819 = vmatpush1.msra.mxu0 0.0
    %820 = vmatprep.subr.mxu0 0.0
    %821 = vmatpush1.msra.mxu0 0.0
    %822 = vmatprep.subr.mxu0 0.0
    %823 = vmatpush1.msra.mxu0 0.0
    %824 = vmatprep.subr.mxu0 0.0
    %825 = vmatpush1.msra.mxu0 0.0
    %826 = vmatprep.subr.mxu0 0.0
    %827 = vmatpush1.msra.mxu0 0.0
    %828 = vmatprep.subr.mxu0 0.0
    %829 = vmatpush1.msra.mxu0 0.0
    %830 = vmatprep.subr.mxu0 0.0
    %831 = vmatpush1.msra.mxu0 0.0
    %832 = vmatprep.subr.mxu0 0.0
    %833 = vmatpush1.msra.mxu0 0.0
    %834 = vmatprep.subr.mxu0 0.0
    %835 = vmatpush1.msra.mxu0 0.0
    %836 = vmatprep.subr.mxu0 0.0
    %837 = vmatpush1.msra.mxu0 0.0
    %838 = vmatprep.subr.mxu0 0.0
    %839 = vmatpush1.msra.mxu0 0.0
    %840 = vmatprep.subr.mxu0 0.0
    %841 = vmatpush1.msra.mxu0 0.0
    %842 = vmatprep.subr.mxu0 0.0
    %843 = vmatpush1.msra.mxu0 0.0
    %844 = vmatprep.subr.mxu0 0.0
    %845 = vmatpush1.msra.mxu0 0.0
    %846 = vmatprep.subr.mxu0 0.0
    %847 = vmatpush1.msra.mxu0 0.0
    %848 = vmatprep.mubr.f32.mxu0 0.0
    %849 = vmatmul.mubr.f32.gmra.mrb[0].mxu0 %v782
    %v850 = vpop.f32.mrb[0].mxu0
    %v851 = vadd.f32 0.0, %v850
    %v852 = vpop.f32.mrb[0].mxu0
    %v853 = vadd.f32 0.0, %v852
    %854 = vdwg.mxu0
    %v855 = vadd.f32 %v159, %v851
    %v856 = vadd.f32 %v160, %v853
    %v857 = vsub.f32 0.0, %v855
    %v858 = vsub.f32 0.0, %v856
    %v859 = vmul.f32 %v857, 1.442695
    %v860 = vpow.pop %v859
    %v861 = vmul.f32 %v858, 1.442695
    %v862 = vpow.pop %v861
    %v863 = vadd.f32 %v860, 1.0
    %v864 = vadd.f32 %v862, 1.0
    %v865 = vrcp.pop %v863
    %v866 = vrcp.pop %v864
    %v867 = vmul.f32 %v866, 2.0
    %v868 = vsub.f32 %v867, 1.0
    %v869 = vmul.f32 %v865, %v776
    %v870 = vmul.f32 %v865, %v868
    %872 = vrot.lane.b32.xlu0 %v870, 64
    %v873 = vpop.permute.xlu0 %872
    %v875 = vadd.f32 %v869, %v873
    %v876 = vtanh.pop %v875
    %v877 = vmul.f32 %v866, %v876
    %879 = vrot.lane.b32.xlu0 %v877, 64
    %v880 = vpop.permute.xlu0 %879
    %v881 = vsel %vm183, %v880, 0
    %883 = vmatprep.subr.mxu0 0.0
    %884 = vmatpush1.msra.mxu0 %v46
    %885 = vmatprep.subr.mxu0 0.0
    %886 = vmatpush1.msra.mxu0 %v47
    %887 = vmatprep.subr.mxu0 0.0
    %888 = vmatpush1.msra.mxu0 %v48
    %889 = vmatprep.subr.mxu0 0.0
    %890 = vmatpush1.msra.mxu0 %v49
    %891 = vmatprep.subr.mxu0 0.0
    %892 = vmatpush1.msra.mxu0 %v50
    %893 = vmatprep.subr.mxu0 0.0
    %894 = vmatpush1.msra.mxu0 %v51
    %895 = vmatprep.subr.mxu0 0.0
    %896 = vmatpush1.msra.mxu0 %v52
    %897 = vmatprep.subr.mxu0 0.0
    %898 = vmatpush1.msra.mxu0 %v53
    %899 = vmatprep.subr.mxu0 0.0
    %900 = vmatpush1.msra.mxu0 0.0
    %901 = vmatprep.subr.mxu0 0.0
    %902 = vmatpush1.msra.mxu0 0.0
    %903 = vmatprep.subr.mxu0 0.0
    %904 = vmatpush1.msra.mxu0 0.0
    %905 = vmatprep.subr.mxu0 0.0
    %906 = vmatpush1.msra.mxu0 0.0
    %907 = vmatprep.subr.mxu0 0.0
    %908 = vmatpush1.msra.mxu0 0.0
    %909 = vmatprep.subr.mxu0 0.0
    %910 = vmatpush1.msra.mxu0 0.0
    %911 = vmatprep.subr.mxu0 0.0
    %912 = vmatpush1.msra.mxu0 0.0
    %913 = vmatprep.subr.mxu0 0.0
    %914 = vmatpush1.msra.mxu0 0.0
    %915 = vmatprep.subr.mxu0 0.0
    %916 = vmatpush1.msra.mxu0 0.0
    %917 = vmatprep.subr.mxu0 0.0
    %918 = vmatpush1.msra.mxu0 0.0
    %919 = vmatprep.subr.mxu0 0.0
    %920 = vmatpush1.msra.mxu0 0.0
    %921 = vmatprep.subr.mxu0 0.0
    %922 = vmatpush1.msra.mxu0 0.0
    %923 = vmatprep.subr.mxu0 0.0
    %924 = vmatpush1.msra.mxu0 0.0
    %925 = vmatprep.subr.mxu0 0.0
    %926 = vmatpush1.msra.mxu0 0.0
    %927 = vmatprep.subr.mxu0 0.0
    %928 = vmatpush1.msra.mxu0 0.0
    %929 = vmatprep.subr.mxu0 0.0
    %930 = vmatpush1.msra.mxu0 0.0
    %931 = vmatprep.subr.mxu0 0.0
    %932 = vmatpush1.msra.mxu0 0.0
    %933 = vmatprep.subr.mxu0 0.0
    %934 = vmatpush1.msra.mxu0 0.0
    %935 = vmatprep.subr.mxu0 0.0
    %936 = vmatpush1.msra.mxu0 0.0
    %937 = vmatprep.subr.mxu0 0.0
    %938 = vmatpush1.msra.mxu0 0.0
    %939 = vmatprep.subr.mxu0 0.0
    %940 = vmatpush1.msra.mxu0 0.0
    %941 = vmatprep.subr.mxu0 0.0
    %942 = vmatpush1.msra.mxu0 0.0
    %943 = vmatprep.subr.mxu0 0.0
    %944 = vmatpush1.msra.mxu0 0.0
    %945 = vmatprep.subr.mxu0 0.0
    %946 = vmatpush1.msra.mxu0 0.0
    %947 = vmatprep.mubr.f32.mxu0 0.0
    %948 = vmatmul.mubr.f32.gmra.mrb[0].mxu0 %v881
    %v949 = vpop.f32.mrb[0].mxu0
    %v950 = vadd.f32 %v69, %v949
    %v951 = vpop.f32.mrb[0].mxu0
    %952 = vdwg.mxu0
    %v953 = vmax.f32 %v950, 0.0
    %v955 = vsel %vm183, %v953, 0
    %957 = vmatprep.subr.mxu0 0.0
    %958 = vmatpush1.msra.mxu0 %v54
    %959 = vmatprep.subr.mxu0 0.0
    %960 = vmatpush1.msra.mxu0 %v55
    %961 = vmatprep.subr.mxu0 0.0
    %962 = vmatpush1.msra.mxu0 %v56
    %963 = vmatprep.subr.mxu0 0.0
    %964 = vmatpush1.msra.mxu0 %v57
    %965 = vmatprep.subr.mxu0 0.0
    %966 = vmatpush1.msra.mxu0 %v58
    %967 = vmatprep.subr.mxu0 0.0
    %968 = vmatpush1.msra.mxu0 %v59
    %969 = vmatprep.subr.mxu0 0.0
    %970 = vmatpush1.msra.mxu0 %v60
    %971 = vmatprep.subr.mxu0 0.0
    %972 = vmatpush1.msra.mxu0 %v61
    %973 = vmatprep.subr.mxu0 0.0
    %974 = vmatpush1.msra.mxu0 0.0
    %975 = vmatprep.subr.mxu0 0.0
    %976 = vmatpush1.msra.mxu0 0.0
    %977 = vmatprep.subr.mxu0 0.0
    %978 = vmatpush1.msra.mxu0 0.0
    %979 = vmatprep.subr.mxu0 0.0
    %980 = vmatpush1.msra.mxu0 0.0
    %981 = vmatprep.subr.mxu0 0.0
    %982 = vmatpush1.msra.mxu0 0.0
    %983 = vmatprep.subr.mxu0 0.0
    %984 = vmatpush1.msra.mxu0 0.0
    %985 = vmatprep.subr.mxu0 0.0
    %986 = vmatpush1.msra.mxu0 0.0
    %987 = vmatprep.subr.mxu0 0.0
    %988 = vmatpush1.msra.mxu0 0.0
    %989 = vmatprep.subr.mxu0 0.0
    %990 = vmatpush1.msra.mxu0 0.0
    %991 = vmatprep.subr.mxu0 0.0
    %992 = vmatpush1.msra.mxu0 0.0
    %993 = vmatprep.subr.mxu0 0.0
    %994 = vmatpush1.msra.mxu0 0.0
    %995 = vmatprep.subr.mxu0 0.0
    %996 = vmatpush1.msra.mxu0 0.0
    %997 = vmatprep.subr.mxu0 0.0
    %998 = vmatpush1.msra.mxu0 0.0
    %999 = vmatprep.subr.mxu0 0.0
    %1000 = vmatpush1.msra.mxu0 0.0
    %1001 = vmatprep.subr.mxu0 0.0
    %1002 = vmatpush1.msra.mxu0 0.0
    %1003 = vmatprep.subr.mxu0 0.0
    %1004 = vmatpush1.msra.mxu0 0.0
    %1005 = vmatprep.subr.mxu0 0.0
    %1006 = vmatpush1.msra.mxu0 0.0
    %1007 = vmatprep.subr.mxu0 0.0
    %1008 = vmatpush1.msra.mxu0 0.0
    %1009 = vmatprep.subr.mxu0 0.0
    %1010 = vmatpush1.msra.mxu0 0.0
    %1011 = vmatprep.subr.mxu0 0.0
    %1012 = vmatpush1.msra.mxu0 0.0
    %1013 = vmatprep.subr.mxu0 0.0
    %1014 = vmatpush1.msra.mxu0 0.0
    %1015 = vmatprep.subr.mxu0 0.0
    %1016 = vmatpush1.msra.mxu0 0.0
    %1017 = vmatprep.subr.mxu0 0.0
    %1018 = vmatpush1.msra.mxu0 0.0
    %1019 = vmatprep.subr.mxu0 0.0
    %1020 = vmatpush1.msra.mxu0 0.0
    %1021 = vmatprep.mubr.f32.mxu0 0.0
    %1022 = vmatmul.mubr.f32.gmra.mrb[0].mxu0 %v955
    %v1023 = vpop.f32.mrb[0].mxu0
    %v1024 = vadd.f32 %v70, %v1023
    %v1025 = vpop.f32.mrb[0].mxu0
    %1026 = vdwg.mxu0
    %1028 = vset.pattern.permute.xlu0 0
    %1029 = vperm.xlu0 %1028, %v1024
    %v1030 = vpop.permute.xlu0 %1029
    %v1032 = vmul.f32 %v1030, %v72
    %1034 = vrot.lane.b32.xlu0 %v72, 120
    %v1035 = vpop.permute.xlu0 %1034
    %v1037 = vadd.f32 %v1032, %v1035
    %v1038 = vand.u32 2147483647, %v1037
    %vm1039 = vcmp.le.f32.partialorder %v1038, 0.7853982
    %vm1040 = vcmp.lt.s32.totalorder %v1037, 0
    %v1041 = vand.u32 %v1037, 2139095040
    %v1042 = vshrl.u32 %v1041, 23
    %v1043 = vsub.s32 %v1042, 127
    %v1044 = vand.u32 2147483647, %v1037
    %v1045 = vand.u32 %v1044, 8388607
    %v1046 = vor.u32 %v1045, 8388608
    %v1047 = vsub.s32 0, %v1046
    %v1048 = vadd.s32 %v1043, 1
    %vm1049 = vcmp.gt.s32.totalorder %v1048, 0
    %v1050 = vsel %vm1049, %v1048, 0
    %v1051 = vshrl.u32 %v1050, 5
    %v1052 = vand.u32 %v1050, 31
    %v1053 = vsub.s32 32, %v1052
    %v1054 = vshrl.u32 683565275, %v1053
    %v1055 = vshll.u32 683565275, %v1052
    %v1056 = vshrl.u32 2475754826, %v1053
    %v1057 = vor.u32 %v1055, %v1056
    %v1058 = vshll.u32 2475754826, %v1052
    %v1059 = vshrl.u32 2131351028, %v1053
    %v1060 = vor.u32 %v1058, %v1059
    %v1061 = vshll.u32 2131351028, %v1052
    %v1062 = vshrl.u32 2102212464, %v1053
    %v1063 = vor.u32 %v1061, %v1062
    %v1064 = vshll.u32 2102212464, %v1052
    %v1065 = vshrl.u32 920167782, %v1053
    %v1066 = vor.u32 %v1064, %v1065
    %v1067 = vshll.u32 920167782, %v1052
    %v1068 = vshrl.u32 1326507024, %v1053
    %v1069 = vor.u32 %v1067, %v1068
    %vm1070 = vcmp.lt.s32.totalorder %v1051, 1
    %vm1071 = vcmp.lt.s32.totalorder %v1051, 2
    %vm1072 = vcmp.lt.s32.totalorder %v1051, 3
    %vm1073 = vcmp.lt.s32.totalorder %v1051, 4
    %v1074 = vsel %vm1070, %v1054, %v1057
    %v1075 = vsel %vm1073, %v1063, 2102212464
    %v1076 = vsel %vm1072, %v1060, %v1075
    %v1077 = vsel %vm1071, %v1074, %v1076
    %v1078 = vsel %vm1070, %v1057, %v1060
    %v1079 = vsel %vm1073, %v1066, 920167782
    %v1080 = vsel %vm1072, %v1063, %v1079
    %v1081 = vsel %vm1071, %v1078, %v1080
    %v1082 = vsel %vm1070, %v1060, %v1063
    %v1083 = vsel %vm1073, %v1069, 1326507024
    %v1084 = vsel %vm1072, %v1066, %v1083
    %v1085 = vsel %vm1071, %v1082, %v1084
    %v1086 = vshll.u32 %v1046, 8
    %v1087 = vmul.u32.u64.compose %v1086, %v1085
    %v1088 = vextract.low.u32 %v1087
    %v1089 = vextract.high.u32 %v1087
    %v1090 = vmul.u32.u64.compose %v1086, %v1081
    %v1091 = vextract.low.u32 %v1090
    %v1092 = vextract.high.u32 %v1090
    %v1093 = vmul.u32 %v1086, %v1077
    %v1094 = vadd.s32 %v1089, %v1091
    %vm1095 = vc.u32 %v1089, %v1091
    %v1096 = vadd.s32 %v1092, 1
    %v1097 = vsel %vm1095, %v1096, %v1092
    %v1098 = vadd.s32 %v1093, %v1097
    %v1099 = vadd.s32 %v1098, 536870912
    %v1100 = vshrl.u32 %v1099, 30
    %v1101 = vshll.u32 %v1100, 30
    %v1102 = vsub.s32 %v1098, %v1101
    %vm1103 = vcmp.lt.s32.totalorder %v1102, 0
    %v1104 = vsub.s32 0, %v1102
    %v1105 = vsel %vm1103, %v1104, %v1102
    %v1106 = vclz %v1105
    %v1107 = vsub.s32 %v1106, 2
    %vm1108 = vcmp.gt.s32.totalorder 0, %v1107
    %v1109 = vsel %vm1108, 0, %v1107
    %v1110 = vsub.s32 32, %v1109
    %v1111 = vshll.u32 %v1102, %v1109
    %v1112 = vshrl.u32 %v1094, %v1110
    %v1113 = vor.u32 %v1111, %v1112
    %v1114 = vsub.s32 4294967266, %v1109
    %v1115 = vadd.s32 %v1114, 127
    %v1116 = vshll.u32 %v1115, 23
    %v1117 = vor.u32 4788187, %v1116
    %v1118 = vand.u32 2147483647, %v1117
    %v1120 = vcvt.s32.f32 %v1113
    %v1121 = vmul.f32 %v1120, %v1118
    %v1122 = vxor.u32 %v1121, 2147483648
    %v1123 = vsel %vm1040, %v1122, %v1121
    %v1124 = vsub.s32 4, %v1100
    %v1125 = vsel %vm1040, %v1124, %v1100
    %v1126 = vsel %vm1039, %v1037, %v1123
    %v1127 = vsel %vm1039, 0, %v1125
    %v1128 = vcosq.f32.pop %v1126
    %v1129 = vsinq.f32.pop %v1126
    %vm1130 = vweird.f32 %v1037
    %v1131 = vand.u32 %v1127, 3
    %vm1132 = vcmp.lt.s32.totalorder %v1131, 2
    %vm1133 = vcmp.eq.s32.totalorder %v1131, 0
    %v1134 = vxor.u32 %v1129, 2147483648
    %v1135 = vsel %vm1133, %v1128, %v1134
    %vm1136 = vcmp.eq.s32.totalorder %v1131, 2
    %v1137 = vxor.u32 %v1128, 2147483648
    %v1138 = vsel %vm1136, %v1137, %v1129
    %v1139 = vsel %vm1132, %v1135, %v1138
    %v1140 = vsel %vm1130, nan, %v1139
    %1142 = vrot.lane.b32.xlu0 %v1140, 1
    %v1143 = vpop.permute.xlu0 %1142
    %v1145 = vmul.f32 %v1024, %v1143
    %1147 = vrot.lane.b32.xlu0 %v1145, 124
    %v1148 = vpop.permute.xlu0 %1147
    %v1150 = vadd.f32 %v1145, %v1148
    %1151 = vrot.lane.b32.xlu0 %v1140, 5
    %v1152 = vpop.permute.xlu0 %1151
    %v1154 = vmul.f32 %v1024, %v1152
    %1155 = vrot.lane.b32.xlu0 %v1140, 125
    %v1156 = vpop.permute.xlu0 %1155
    %v1158 = vmul.f32 %v1024, %v1156
    %1160 = vrot.lane.b32.xlu0 %v1158, 4
    %v1161 = vpop.permute.xlu0 %1160
    %v1163 = vsub.f32 %v1154, %v1161
    %1165 = vrot.lane.b32.xlu0 %v1150, 127
    %v1166 = vpop.permute.xlu0 %1165
    %1169 = vrot.lane.b32.xlu0 %v1163, 127
    %v1170 = vpop.permute.xlu0 %1169
    %vm1172 = vcmask 31744
    %v1173 = vsel %vm1172, %v1166, %v1170
    %vm1174 = vcmask 64512
    %v1176 = vsel %vm1174, %v1173, 0
    %1178 = vmatprep.subr.mxu0 0.0
    %1179 = vmatpush1.msra.mxu0 %v62
    %1180 = vmatprep.subr.mxu0 0.0
    %1181 = vmatpush1.msra.mxu0 0.0
    %1182 = vmatprep.subr.mxu0 0.0
    %1183 = vmatpush1.msra.mxu0 0.0
    %1184 = vmatprep.subr.mxu0 0.0
    %1185 = vmatpush1.msra.mxu0 0.0
    %1186 = vmatprep.subr.mxu0 0.0
    %1187 = vmatpush1.msra.mxu0 0.0
    %1188 = vmatprep.subr.mxu0 0.0
    %1189 = vmatpush1.msra.mxu0 0.0
    %1190 = vmatprep.subr.mxu0 0.0
    %1191 = vmatpush1.msra.mxu0 0.0
    %1192 = vmatprep.subr.mxu0 0.0
    %1193 = vmatpush1.msra.mxu0 0.0
    %1194 = vmatprep.subr.mxu0 0.0
    %1195 = vmatpush1.msra.mxu0 0.0
    %1196 = vmatprep.subr.mxu0 0.0
    %1197 = vmatpush1.msra.mxu0 0.0
    %1198 = vmatprep.subr.mxu0 0.0
    %1199 = vmatpush1.msra.mxu0 0.0
    %1200 = vmatprep.subr.mxu0 0.0
    %1201 = vmatpush1.msra.mxu0 0.0
    %1202 = vmatprep.subr.mxu0 0.0
    %1203 = vmatpush1.msra.mxu0 0.0
    %1204 = vmatprep.subr.mxu0 0.0
    %1205 = vmatpush1.msra.mxu0 0.0
    %1206 = vmatprep.subr.mxu0 0.0
    %1207 = vmatpush1.msra.mxu0 0.0
    %1208 = vmatprep.subr.mxu0 0.0
    %1209 = vmatpush1.msra.mxu0 0.0
    %1210 = vmatprep.subr.mxu0 0.0
    %1211 = vmatpush1.msra.mxu0 0.0
    %1212 = vmatprep.subr.mxu0 0.0
    %1213 = vmatpush1.msra.mxu0 0.0
    %1214 = vmatprep.subr.mxu0 0.0
    %1215 = vmatpush1.msra.mxu0 0.0
    %1216 = vmatprep.subr.mxu0 0.0
    %1217 = vmatpush1.msra.mxu0 0.0
    %1218 = vmatprep.subr.mxu0 0.0
    %1219 = vmatpush1.msra.mxu0 0.0
    %1220 = vmatprep.subr.mxu0 0.0
    %1221 = vmatpush1.msra.mxu0 0.0
    %1222 = vmatprep.subr.mxu0 0.0
    %1223 = vmatpush1.msra.mxu0 0.0
    %1224 = vmatprep.subr.mxu0 0.0
    %1225 = vmatpush1.msra.mxu0 0.0
    %1226 = vmatprep.subr.mxu0 0.0
    %1227 = vmatpush1.msra.mxu0 0.0
    %1228 = vmatprep.subr.mxu0 0.0
    %1229 = vmatpush1.msra.mxu0 0.0
    %1230 = vmatprep.subr.mxu0 0.0
    %1231 = vmatpush1.msra.mxu0 0.0
    %1232 = vmatprep.subr.mxu0 0.0
    %1233 = vmatpush1.msra.mxu0 0.0
    %1234 = vmatprep.subr.mxu0 0.0
    %1235 = vmatpush1.msra.mxu0 0.0
    %1236 = vmatprep.subr.mxu0 0.0
    %1237 = vmatpush1.msra.mxu0 0.0
    %1238 = vmatprep.subr.mxu0 0.0
    %1239 = vmatpush1.msra.mxu0 0.0
    %1240 = vmatprep.subr.mxu0 0.0
    %1241 = vmatpush1.msra.mxu0 0.0
    %1242 = vmatprep.mubr.f32.mxu0 0.0
    %1243 = vmatmul.mubr.f32.gmra.mrb[0].mxu0 %v1176
    %v1244 = vpop.f32.mrb[0].mxu0
    %v1245 = vadd.f32 0.0, %v1244
    %v1246 = vpop.f32.mrb[0].mxu0
    %1247 = vdwg.mxu0
    %1248 = vset.pattern.permute.xlu0 9
    %1249 = vperm.xlu0 %1248, %v1024
    %v1250 = vpop.permute.xlu0 %1249
    %v1252 = vadd.f32 %v1250, %v1245
    %1254 = vset.pattern.permute.xlu0 0
    %1255 = vperm.xlu0 %1254, %v1252
    %v1256 = vpop.permute.xlu0 %1255
    %v1258 = vmul.f32 %v1256, %v67
    %v1259 = vadd.f32 %v1258, %v68
    %1260 = vset.pattern.permute.xlu0 1
    %1261 = vperm.xlu0 %1260, %v1252
    %v1262 = vpop.permute.xlu0 %1261
    %v1264 = vmul.f32 %v1262, %v67
    %v1265 = vadd.f32 %v1264, %v68
    %1266 = vset.pattern.permute.xlu0 2
    %1267 = vperm.xlu0 %1266, %v1252
    %v1268 = vpop.permute.xlu0 %1267
    %v1270 = vmul.f32 %v1268, %v67
    %v1271 = vadd.f32 %v1270, %v68
    %1272 = vset.pattern.permute.xlu0 3
    %1273 = vperm.xlu0 %1272, %v1252
    %v1274 = vpop.permute.xlu0 %1273
    %v1276 = vmul.f32 %v1274, %v67
    %v1277 = vadd.f32 %v1276, %v68
    %1278 = vset.pattern.permute.xlu0 4
    %1279 = vperm.xlu0 %1278, %v1252
    %v1280 = vpop.permute.xlu0 %1279
    %v1282 = vmul.f32 %v1280, %v67
    %v1283 = vadd.f32 %v1282, %v68
    %1284 = vset.pattern.permute.xlu0 5
    %1285 = vperm.xlu0 %1284, %v1252
    %v1286 = vpop.permute.xlu0 %1285
    %v1288 = vmul.f32 %v1286, %v67
    %v1289 = vadd.f32 %v1288, %v68
    %1290 = vset.pattern.permute.xlu0 6
    %1291 = vperm.xlu0 %1290, %v1252
    %v1292 = vpop.permute.xlu0 %1291
    %v1294 = vmul.f32 %v1292, %v67
    %v1295 = vadd.f32 %v1294, %v68
    %1296 = vset.pattern.permute.xlu0 7
    %1297 = vperm.xlu0 %1296, %v1252
    %v1298 = vpop.permute.xlu0 %1297
    %v1300 = vmul.f32 %v1298, %v67
    %v1301 = vadd.f32 %v1300, %v68
    %1302 = vset.pattern.permute.xlu0 8
    %1303 = vperm.xlu0 %1302, %v1252
    %v1304 = vpop.permute.xlu0 %1303
    %v1306 = vmul.f32 %v1304, %v67
    %v1307 = vadd.f32 %v1306, %v68
    %1308 = vset.pattern.permute.xlu0 9
    %1309 = vperm.xlu0 %1308, %v1252
    %v1310 = vpop.permute.xlu0 %1309
    %v1312 = vmul.f32 %v1310, %v67
    %v1313 = vadd.f32 %v1312, %v68
    %1314 = vset.pattern.permute.xlu0 10
    %1315 = vperm.xlu0 %1314, %v1252
    %v1316 = vpop.permute.xlu0 %1315
    %v1318 = vmul.f32 %v1316, %v67
    %v1319 = vadd.f32 %v1318, %v68
    %1320 = vset.pattern.permute.xlu0 11
    %1321 = vperm.xlu0 %1320, %v1252
    %v1322 = vpop.permute.xlu0 %1321
    %v1324 = vmul.f32 %v1322, %v67
    %v1325 = vadd.f32 %v1324, %v68
    %1326 = vset.pattern.permute.xlu0 12
    %1327 = vperm.xlu0 %1326, %v1252
    %v1328 = vpop.permute.xlu0 %1327
    %v1330 = vmul.f32 %v1328, %v67
    %v1331 = vadd.f32 %v1330, %v68
    %1332 = vset.pattern.permute.xlu0 13
    %1333 = vperm.xlu0 %1332, %v1252
    %v1334 = vpop.permute.xlu0 %1333
    %v1336 = vmul.f32 %v1334, %v67
    %v1337 = vadd.f32 %v1336, %v68
    %1338 = vset.pattern.permute.xlu0 14
    %1339 = vperm.xlu0 %1338, %v1252
    %v1340 = vpop.permute.xlu0 %1339
    %v1342 = vmul.f32 %v1340, %v67
    %v1343 = vadd.f32 %v1342, %v68
    %1344 = vset.pattern.permute.xlu0 15
    %1345 = vperm.xlu0 %1344, %v1252
    %v1346 = vpop.permute.xlu0 %1345
    %v1348 = vmul.f32 %v1346, %v67
    %v1349 = vadd.f32 %v1348, %v68
    %v1350 = vsub.f32 0.0, %v1259
    %v1351 = vmul.f32 %v1350, 1.442695
    %v1352 = vpow.pop %v1351
    %v1353 = vadd.f32 %v1352, 1.0
    %v1354 = vrcp.pop %v1353
    %v1355 = vmul.f32 %v1354, 2.0
    %v1356 = vsub.f32 %v1355, 1.0
    %1358 = vrot.lane.b32.xlu0 %v1356, 64
    %v1359 = vpop.permute.xlu0 %1358
    %v1361 = vmul.f32 %v1354, %v1359
    %v1362 = vtanh.pop %v1361
    %1364 = vrot.lane.b32.xlu0 %v1362, 96
    %v1365 = vpop.permute.xlu0 %1364
    %v1367 = vmul.f32 %v1354, %v1365
    %1369 = vrot.lane.b32.xlu0 %v71, 96
    %v1370 = vpop.permute.xlu0 %1369
    %v1372 = vmul.f32 %v1367, %v1370
    %1374 = vrot.lane.b32.xlu0 %v1372, 32
    %v1375 = vpop.permute.xlu0 %1374
    %vm1377 = vcmask 254976
    %v1378 = vsel %vm1377, %v1375, 0.0
    %1379 = vadd.xlane.f32.xlu0 %v1378
    %v1380 = vpop.xlane.xlu0 %1379
    %v1381 = vadd.f32 %v1380, %v71
    %1383 = vrot.lane.b32.xlu0 %v1381, 96
    %v1384 = vpop.permute.xlu0 %1383
    %vm1386 = vcmask 1024
    %1387 = vst.msk [vmem:[#allocation5] sm:$0x3] %vm1386, %v1384
    %1389 = vrot.lane.b32.xlu0 %v1367, 32
    %v1390 = vpop.permute.xlu0 %1389
    %vm1391 = vcmask 261120
    %v1392 = vsel %vm1391, %v1390, 0
    %1394 = vmatprep.subr.mxu0 0.0
    %1395 = vmatpush1.msra.mxu0 %v42
    %1396 = vmatprep.subr.mxu0 0.0
    %1397 = vmatpush1.msra.mxu0 %v43
    %1398 = vmatprep.subr.mxu0 0.0
    %1399 = vmatpush1.msra.mxu0 %v44
    %1400 = vmatprep.subr.mxu0 0.0
    %1401 = vmatpush1.msra.mxu0 %v45
    %1402 = vmatprep.subr.mxu0 0.0
    %1403 = vmatpush1.msra.mxu0 0.0
    %1404 = vmatprep.subr.mxu0 0.0
    %1405 = vmatpush1.msra.mxu0 0.0
    %1406 = vmatprep.subr.mxu0 0.0
    %1407 = vmatpush1.msra.mxu0 0.0
    %1408 = vmatprep.subr.mxu0 0.0
    %1409 = vmatpush1.msra.mxu0 0.0
    %1410 = vmatprep.subr.mxu0 0.0
    %1411 = vmatpush1.msra.mxu0 0.0
    %1412 = vmatprep.subr.mxu0 0.0
    %1413 = vmatpush1.msra.mxu0 0.0
    %1414 = vmatprep.subr.mxu0 0.0
    %1415 = vmatpush1.msra.mxu0 0.0
    %1416 = vmatprep.subr.mxu0 0.0
    %1417 = vmatpush1.msra.mxu0 0.0
    %1418 = vmatprep.subr.mxu0 0.0
    %1419 = vmatpush1.msra.mxu0 0.0
    %1420 = vmatprep.subr.mxu0 0.0
    %1421 = vmatpush1.msra.mxu0 0.0
    %1422 = vmatprep.subr.mxu0 0.0
    %1423 = vmatpush1.msra.mxu0 0.0
    %1424 = vmatprep.subr.mxu0 0.0
    %1425 = vmatpush1.msra.mxu0 0.0
    %1426 = vmatprep.subr.mxu0 0.0
    %1427 = vmatpush1.msra.mxu0 0.0
    %1428 = vmatprep.subr.mxu0 0.0
    %1429 = vmatpush1.msra.mxu0 0.0
    %1430 = vmatprep.subr.mxu0 0.0
    %1431 = vmatpush1.msra.mxu0 0.0
    %1432 = vmatprep.subr.mxu0 0.0
    %1433 = vmatpush1.msra.mxu0 0.0
    %1434 = vmatprep.subr.mxu0 0.0
    %1435 = vmatpush1.msra.mxu0 0.0
    %1436 = vmatprep.subr.mxu0 0.0
    %1437 = vmatpush1.msra.mxu0 0.0
    %1438 = vmatprep.subr.mxu0 0.0
    %1439 = vmatpush1.msra.mxu0 0.0
    %1440 = vmatprep.subr.mxu0 0.0
    %1441 = vmatpush1.msra.mxu0 0.0
    %1442 = vmatprep.subr.mxu0 0.0
    %1443 = vmatpush1.msra.mxu0 0.0
    %1444 = vmatprep.subr.mxu0 0.0
    %1445 = vmatpush1.msra.mxu0 0.0
    %1446 = vmatprep.subr.mxu0 0.0
    %1447 = vmatpush1.msra.mxu0 0.0
    %1448 = vmatprep.subr.mxu0 0.0
    %1449 = vmatpush1.msra.mxu0 0.0
    %1450 = vmatprep.subr.mxu0 0.0
    %1451 = vmatpush1.msra.mxu0 0.0
    %1452 = vmatprep.subr.mxu0 0.0
    %1453 = vmatpush1.msra.mxu0 0.0
    %1454 = vmatprep.subr.mxu0 0.0
    %1455 = vmatpush1.msra.mxu0 0.0
    %1456 = vmatprep.subr.mxu0 0.0
    %1457 = vmatpush1.msra.mxu0 0.0
    %1458 = vmatprep.mubr.f32.mxu0 0.0
    %1459 = vmatmul.mubr.f32.gmra.mrb[0].mxu0 %v1392
    %v1460 = vpop.f32.mrb[0].mxu0
    %v1461 = vadd.f32 0.0, %v1460
    %v1462 = vpop.f32.mrb[0].mxu0
    %1463 = vdwg.mxu0
    %v1464 = vadd.f32 %v1265, %v1461
    %v1465 = vsub.f32 0.0, %v1464
    %v1466 = vmul.f32 %v1465, 1.442695
    %v1467 = vpow.pop %v1466
    %v1468 = vadd.f32 %v1467, 1.0
    %v1469 = vrcp.pop %v1468
    %v1470 = vmul.f32 %v1469, 2.0
    %v1471 = vsub.f32 %v1470, 1.0
    %1473 = vrot.lane.b32.xlu0 %v1361, 32
    %v1474 = vpop.permute.xlu0 %1473
    %v1476 = vmul.f32 %v1469, %v1474
    %1478 = vrot.lane.b32.xlu0 %v1471, 64
    %v1479 = vpop.permute.xlu0 %1478
    %v1481 = vmul.f32 %v1469, %v1479
    %1483 = vrot.lane.b32.xlu0 %v1481, 32
    %v1484 = vpop.permute.xlu0 %1483
    %v1486 = vadd.f32 %v1476, %v1484
    %v1487 = vtanh.pop %v1486
    %1489 = vrot.lane.b32.xlu0 %v1487, 64
    %v1490 = vpop.permute.xlu0 %1489
    %v1492 = vmul.f32 %v1469, %v1490
    %v1493 = vmul.f32 %v1492, %v1370
    %1495 = vrot.lane.b32.xlu0 %v1493, 32
    %v1496 = vpop.permute.xlu0 %1495
    %v1498 = vsel %vm1377, %v1496, 0.0
    %1499 = vadd.xlane.f32.xlu0 %v1498
    %v1500 = vpop.xlane.xlu0 %1499
    %v1501 = vadd.f32 %v1500, %v71
    %1503 = vrot.lane.b32.xlu0 %v1501, 97
    %v1504 = vpop.permute.xlu0 %1503
    %vm1506 = vcmask 9224
    %1507 = vst.msk [vmem:[#allocation5] sm:$0x3] %vm1506, %v1504
    %1509 = vrot.lane.b32.xlu0 %v1492, 32
    %v1510 = vpop.permute.xlu0 %1509
    %v1511 = vsel %vm1391, %v1510, 0
    %1513 = vmatprep.subr.mxu0 0.0
    %1514 = vmatpush1.msra.mxu0 %v42
    %1515 = vmatprep.subr.mxu0 0.0
    %1516 = vmatpush1.msra.mxu0 %v43
    %1517 = vmatprep.subr.mxu0 0.0
    %1518 = vmatpush1.msra.mxu0 %v44
    %1519 = vmatprep.subr.mxu0 0.0
    %1520 = vmatpush1.msra.mxu0 %v45
    %1521 = vmatprep.subr.mxu0 0.0
    %1522 = vmatpush1.msra.mxu0 0.0
    %1523 = vmatprep.subr.mxu0 0.0
    %1524 = vmatpush1.msra.mxu0 0.0
    %1525 = vmatprep.subr.mxu0 0.0
    %1526 = vmatpush1.msra.mxu0 0.0
    %1527 = vmatprep.subr.mxu0 0.0
    %1528 = vmatpush1.msra.mxu0 0.0
    %1529 = vmatprep.subr.mxu0 0.0
    %1530 = vmatpush1.msra.mxu0 0.0
    %1531 = vmatprep.subr.mxu0 0.0
    %1532 = vmatpush1.msra.mxu0 0.0
    %1533 = vmatprep.subr.mxu0 0.0
    %1534 = vmatpush1.msra.mxu0 0.0
    %1535 = vmatprep.subr.mxu0 0.0
    %1536 = vmatpush1.msra.mxu0 0.0
    %1537 = vmatprep.subr.mxu0 0.0
    %1538 = vmatpush1.msra.mxu0 0.0
    %1539 = vmatprep.subr.mxu0 0.0
    %1540 = vmatpush1.msra.mxu0 0.0
    %1541 = vmatprep.subr.mxu0 0.0
    %1542 = vmatpush1.msra.mxu0 0.0
    %1543 = vmatprep.subr.mxu0 0.0
    %1544 = vmatpush1.msra.mxu0 0.0
    %1545 = vmatprep.subr.mxu0 0.0
    %1546 = vmatpush1.msra.mxu0 0.0
    %1547 = vmatprep.subr.mxu0 0.0
    %1548 = vmatpush1.msra.mxu0 0.0
    %1549 = vmatprep.subr.mxu0 0.0
    %1550 = vmatpush1.msra.mxu0 0.0
    %1551 = vmatprep.subr.mxu0 0.0
    %1552 = vmatpush1.msra.mxu0 0.0
    %1553 = vmatprep.subr.mxu0 0.0
    %1554 = vmatpush1.msra.mxu0 0.0
    %1555 = vmatprep.subr.mxu0 0.0
    %1556 = vmatpush1.msra.mxu0 0.0
    %1557 = vmatprep.subr.mxu0 0.0
    %1558 = vmatpush1.msra.mxu0 0.0
    %1559 = vmatprep.subr.mxu0 0.0
    %1560 = vmatpush1.msra.mxu0 0.0
    %1561 = vmatprep.subr.mxu0 0.0
    %1562 = vmatpush1.msra.mxu0 0.0
    %1563 = vmatprep.subr.mxu0 0.0
    %1564 = vmatpush1.msra.mxu0 0.0
    %1565 = vmatprep.subr.mxu0 0.0
    %1566 = vmatpush1.msra.mxu0 0.0
    %1567 = vmatprep.subr.mxu0 0.0
    %1568 = vmatpush1.msra.mxu0 0.0
    %1569 = vmatprep.subr.mxu0 0.0
    %1570 = vmatpush1.msra.mxu0 0.0
    %1571 = vmatprep.subr.mxu0 0.0
    %1572 = vmatpush1.msra.mxu0 0.0
    %1573 = vmatprep.subr.mxu0 0.0
    %1574 = vmatpush1.msra.mxu0 0.0
    %1575 = vmatprep.subr.mxu0 0.0
    %1576 = vmatpush1.msra.mxu0 0.0
    %1577 = vmatprep.mubr.f32.mxu0 0.0
    %1578 = vmatmul.mubr.f32.gmra.mrb[0].mxu0 %v1511
    %v1579 = vpop.f32.mrb[0].mxu0
    %v1580 = vadd.f32 0.0, %v1579
    %v1581 = vpop.f32.mrb[0].mxu0
    %1582 = vdwg.mxu0
    %v1583 = vadd.f32 %v1271, %v1580
    %v1584 = vsub.f32 0.0, %v1583
    %v1585 = vmul.f32 %v1584, 1.442695
    %v1586 = vpow.pop %v1585
    %v1587 = vadd.f32 %v1586, 1.0
    %v1588 = vrcp.pop %v1587
    %v1589 = vmul.f32 %v1588, 2.0
    %v1590 = vsub.f32 %v1589, 1.0
    %v1591 = vmul.f32 %v1588, %v1486
    %1593 = vrot.lane.b32.xlu0 %v1590, 64
    %v1594 = vpop.permute.xlu0 %1593
    %v1596 = vmul.f32 %v1588, %v1594
    %1598 = vrot.lane.b32.xlu0 %v1596, 32
    %v1599 = vpop.permute.xlu0 %1598
    %v1601 = vadd.f32 %v1591, %v1599
    %v1602 = vtanh.pop %v1601
    %1604 = vrot.lane.b32.xlu0 %v1602, 64
    %v1605 = vpop.permute.xlu0 %1604
    %v1607 = vmul.f32 %v1588, %v1605
    %v1608 = vmul.f32 %v1607, %v1370
    %1610 = vrot.lane.b32.xlu0 %v1608, 32
    %v1611 = vpop.permute.xlu0 %1610
    %v1613 = vsel %vm1377, %v1611, 0.0
    %1614 = vadd.xlane.f32.xlu0 %v1613
    %v1615 = vpop.xlane.xlu0 %1614
    %v1616 = vadd.f32 %v1615, %v71
    %1618 = vrot.lane.b32.xlu0 %v1616, 98
    %v1619 = vpop.permute.xlu0 %1618
    %vm1621 = vcmask 17424
    %1622 = vst.msk [vmem:[#allocation5] sm:$0x3] %vm1621, %v1619
    %1624 = vrot.lane.b32.xlu0 %v1607, 32
    %v1625 = vpop.permute.xlu0 %1624
    %v1626 = vsel %vm1391, %v1625, 0
    %1628 = vmatprep.subr.mxu0 0.0
    %1629 = vmatpush1.msra.mxu0 %v42
    %1630 = vmatprep.subr.mxu0 0.0
    %1631 = vmatpush1.msra.mxu0 %v43
    %1632 = vmatprep.subr.mxu0 0.0
    %1633 = vmatpush1.msra.mxu0 %v44
    %1634 = vmatprep.subr.mxu0 0.0
    %1635 = vmatpush1.msra.mxu0 %v45
    %1636 = vmatprep.subr.mxu0 0.0
    %1637 = vmatpush1.msra.mxu0 0.0
    %1638 = vmatprep.subr.mxu0 0.0
    %1639 = vmatpush1.msra.mxu0 0.0
    %1640 = vmatprep.subr.mxu0 0.0
    %1641 = vmatpush1.msra.mxu0 0.0
    %1642 = vmatprep.subr.mxu0 0.0
    %1643 = vmatpush1.msra.mxu0 0.0
    %1644 = vmatprep.subr.mxu0 0.0
    %1645 = vmatpush1.msra.mxu0 0.0
    %1646 = vmatprep.subr.mxu0 0.0
    %1647 = vmatpush1.msra.mxu0 0.0
    %1648 = vmatprep.subr.mxu0 0.0
    %1649 = vmatpush1.msra.mxu0 0.0
    %1650 = vmatprep.subr.mxu0 0.0
    %1651 = vmatpush1.msra.mxu0 0.0
    %1652 = vmatprep.subr.mxu0 0.0
    %1653 = vmatpush1.msra.mxu0 0.0
    %1654 = vmatprep.subr.mxu0 0.0
    %1655 = vmatpush1.msra.mxu0 0.0
    %1656 = vmatprep.subr.mxu0 0.0
    %1657 = vmatpush1.msra.mxu0 0.0
    %1658 = vmatprep.subr.mxu0 0.0
    %1659 = vmatpush1.msra.mxu0 0.0
    %1660 = vmatprep.subr.mxu0 0.0
    %1661 = vmatpush1.msra.mxu0 0.0
    %1662 = vmatprep.subr.mxu0 0.0
    %1663 = vmatpush1.msra.mxu0 0.0
    %1664 = vmatprep.subr.mxu0 0.0
    %1665 = vmatpush1.msra.mxu0 0.0
    %1666 = vmatprep.subr.mxu0 0.0
    %1667 = vmatpush1.msra.mxu0 0.0
    %1668 = vmatprep.subr.mxu0 0.0
    %1669 = vmatpush1.msra.mxu0 0.0
    %1670 = vmatprep.subr.mxu0 0.0
    %1671 = vmatpush1.msra.mxu0 0.0
    %1672 = vmatprep.subr.mxu0 0.0
    %1673 = vmatpush1.msra.mxu0 0.0
    %1674 = vmatprep.subr.mxu0 0.0
    %1675 = vmatpush1.msra.mxu0 0.0
    %1676 = vmatprep.subr.mxu0 0.0
    %1677 = vmatpush1.msra.mxu0 0.0
    %1678 = vmatprep.subr.mxu0 0.0
    %1679 = vmatpush1.msra.mxu0 0.0
    %1680 = vmatprep.subr.mxu0 0.0
    %1681 = vmatpush1.msra.mxu0 0.0
    %1682 = vmatprep.subr.mxu0 0.0
    %1683 = vmatpush1.msra.mxu0 0.0
    %1684 = vmatprep.subr.mxu0 0.0
    %1685 = vmatpush1.msra.mxu0 0.0
    %1686 = vmatprep.subr.mxu0 0.0
    %1687 = vmatpush1.msra.mxu0 0.0
    %1688 = vmatprep.subr.mxu0 0.0
    %1689 = vmatpush1.msra.mxu0 0.0
    %1690 = vmatprep.subr.mxu0 0.0
    %1691 = vmatpush1.msra.mxu0 0.0
    %1692 = vmatprep.mubr.f32.mxu0 0.0
    %1693 = vmatmul.mubr.f32.gmra.mrb[0].mxu0 %v1626
    %v1694 = vpop.f32.mrb[0].mxu0
    %v1695 = vadd.f32 0.0, %v1694
    %v1696 = vpop.f32.mrb[0].mxu0
    %1697 = vdwg.mxu0
    %v1698 = vadd.f32 %v1277, %v1695
    %v1699 = vsub.f32 0.0, %v1698
    %v1700 = vmul.f32 %v1699, 1.442695
    %v1701 = vpow.pop %v1700
    %v1702 = vadd.f32 %v1701, 1.0
    %v1703 = vrcp.pop %v1702
    %v1704 = vmul.f32 %v1703, 2.0
    %v1705 = vsub.f32 %v1704, 1.0
    %v1706 = vmul.f32 %v1703, %v1601
    %1708 = vrot.lane.b32.xlu0 %v1705, 64
    %v1709 = vpop.permute.xlu0 %1708
    %v1711 = vmul.f32 %v1703, %v1709
    %1713 = vrot.lane.b32.xlu0 %v1711, 32
    %v1714 = vpop.permute.xlu0 %1713
    %v1716 = vadd.f32 %v1706, %v1714
    %v1717 = vtanh.pop %v1716
    %1719 = vrot.lane.b32.xlu0 %v1717, 64
    %v1720 = vpop.permute.xlu0 %1719
    %v1722 = vmul.f32 %v1703, %v1720
    %v1723 = vmul.f32 %v1722, %v1370
    %1725 = vrot.lane.b32.xlu0 %v1723, 32
    %v1726 = vpop.permute.xlu0 %1725
    %v1728 = vsel %vm1377, %v1726, 0.0
    %1729 = vadd.xlane.f32.xlu0 %v1728
    %v1730 = vpop.xlane.xlu0 %1729
    %v1731 = vadd.f32 %v1730, %v71
    %1733 = vrot.lane.b32.xlu0 %v1731, 99
    %v1734 = vpop.permute.xlu0 %1733
    %vm1736 = vcmask 25624
    %1737 = vst.msk [vmem:[#allocation5] sm:$0x3] %vm1736, %v1734
    %1739 = vrot.lane.b32.xlu0 %v1722, 32
    %v1740 = vpop.permute.xlu0 %1739
    %v1741 = vsel %vm1391, %v1740, 0
    %1743 = vmatprep.subr.mxu0 0.0
    %1744 = vmatpush1.msra.mxu0 %v42
    %1745 = vmatprep.subr.mxu0 0.0
    %1746 = vmatpush1.msra.mxu0 %v43
    %1747 = vmatprep.subr.mxu0 0.0
    %1748 = vmatpush1.msra.mxu0 %v44
    %1749 = vmatprep.subr.mxu0 0.0
    %1750 = vmatpush1.msra.mxu0 %v45
    %1751 = vmatprep.subr.mxu0 0.0
    %1752 = vmatpush1.msra.mxu0 0.0
    %1753 = vmatprep.subr.mxu0 0.0
    %1754 = vmatpush1.msra.mxu0 0.0
    %1755 = vmatprep.subr.mxu0 0.0
    %1756 = vmatpush1.msra.mxu0 0.0
    %1757 = vmatprep.subr.mxu0 0.0
    %1758 = vmatpush1.msra.mxu0 0.0
    %1759 = vmatprep.subr.mxu0 0.0
    %1760 = vmatpush1.msra.mxu0 0.0
    %1761 = vmatprep.subr.mxu0 0.0
    %1762 = vmatpush1.msra.mxu0 0.0
    %1763 = vmatprep.subr.mxu0 0.0
    %1764 = vmatpush1.msra.mxu0 0.0
    %1765 = vmatprep.subr.mxu0 0.0
    %1766 = vmatpush1.msra.mxu0 0.0
    %1767 = vmatprep.subr.mxu0 0.0
    %1768 = vmatpush1.msra.mxu0 0.0
    %1769 = vmatprep.subr.mxu0 0.0
    %1770 = vmatpush1.msra.mxu0 0.0
    %1771 = vmatprep.subr.mxu0 0.0
    %1772 = vmatpush1.msra.mxu0 0.0
    %1773 = vmatprep.subr.mxu0 0.0
    %1774 = vmatpush1.msra.mxu0 0.0
    %1775 = vmatprep.subr.mxu0 0.0
    %1776 = vmatpush1.msra.mxu0 0.0
    %1777 = vmatprep.subr.mxu0 0.0
    %1778 = vmatpush1.msra.mxu0 0.0
    %1779 = vmatprep.subr.mxu0 0.0
    %1780 = vmatpush1.msra.mxu0 0.0
    %1781 = vmatprep.subr.mxu0 0.0
    %1782 = vmatpush1.msra.mxu0 0.0
    %1783 = vmatprep.subr.mxu0 0.0
    %1784 = vmatpush1.msra.mxu0 0.0
    %1785 = vmatprep.subr.mxu0 0.0
    %1786 = vmatpush1.msra.mxu0 0.0
    %1787 = vmatprep.subr.mxu0 0.0
    %1788 = vmatpush1.msra.mxu0 0.0
    %1789 = vmatprep.subr.mxu0 0.0
    %1790 = vmatpush1.msra.mxu0 0.0
    %1791 = vmatprep.subr.mxu0 0.0
    %1792 = vmatpush1.msra.mxu0 0.0
    %1793 = vmatprep.subr.mxu0 0.0
    %1794 = vmatpush1.msra.mxu0 0.0
    %1795 = vmatprep.subr.mxu0 0.0
    %1796 = vmatpush1.msra.mxu0 0.0
    %1797 = vmatprep.subr.mxu0 0.0
    %1798 = vmatpush1.msra.mxu0 0.0
    %1799 = vmatprep.subr.mxu0 0.0
    %1800 = vmatpush1.msra.mxu0 0.0
    %1801 = vmatprep.subr.mxu0 0.0
    %1802 = vmatpush1.msra.mxu0 0.0
    %1803 = vmatprep.subr.mxu0 0.0
    %1804 = vmatpush1.msra.mxu0 0.0
    %1805 = vmatprep.subr.mxu0 0.0
    %1806 = vmatpush1.msra.mxu0 0.0
    %1807 = vmatprep.mubr.f32.mxu0 0.0
    %1808 = vmatmul.mubr.f32.gmra.mrb[0].mxu0 %v1741
    %v1809 = vpop.f32.mrb[0].mxu0
    %v1810 = vadd.f32 0.0, %v1809
    %v1811 = vpop.f32.mrb[0].mxu0
    %1812 = vdwg.mxu0
    %v1813 = vadd.f32 %v1283, %v1810
    %v1814 = vsub.f32 0.0, %v1813
    %v1815 = vmul.f32 %v1814, 1.442695
    %v1816 = vpow.pop %v1815
    %v1817 = vadd.f32 %v1816, 1.0
    %v1818 = vrcp.pop %v1817
    %v1819 = vmul.f32 %v1818, 2.0
    %v1820 = vsub.f32 %v1819, 1.0
    %v1821 = vmul.f32 %v1818, %v1716
    %1823 = vrot.lane.b32.xlu0 %v1820, 64
    %v1824 = vpop.permute.xlu0 %1823
    %v1826 = vmul.f32 %v1818, %v1824
    %1828 = vrot.lane.b32.xlu0 %v1826, 32
    %v1829 = vpop.permute.xlu0 %1828
    %v1831 = vadd.f32 %v1821, %v1829
    %v1832 = vtanh.pop %v1831
    %1834 = vrot.lane.b32.xlu0 %v1832, 64
    %v1835 = vpop.permute.xlu0 %1834
    %v1837 = vmul.f32 %v1818, %v1835
    %v1838 = vmul.f32 %v1837, %v1370
    %1840 = vrot.lane.b32.xlu0 %v1838, 32
    %v1841 = vpop.permute.xlu0 %1840
    %v1843 = vsel %vm1377, %v1841, 0.0
    %1844 = vadd.xlane.f32.xlu0 %v1843
    %v1845 = vpop.xlane.xlu0 %1844
    %v1846 = vadd.f32 %v1845, %v71
    %1848 = vrot.lane.b32.xlu0 %v1846, 100
    %v1849 = vpop.permute.xlu0 %1848
    %vm1851 = vcmask 33824
    %1852 = vst.msk [vmem:[#allocation5] sm:$0x3] %vm1851, %v1849
    %1854 = vrot.lane.b32.xlu0 %v1837, 32
    %v1855 = vpop.permute.xlu0 %1854
    %v1856 = vsel %vm1391, %v1855, 0
    %1858 = vmatprep.subr.mxu0 0.0
    %1859 = vmatpush1.msra.mxu0 %v42
    %1860 = vmatprep.subr.mxu0 0.0
    %1861 = vmatpush1.msra.mxu0 %v43
    %1862 = vmatprep.subr.mxu0 0.0
    %1863 = vmatpush1.msra.mxu0 %v44
    %1864 = vmatprep.subr.mxu0 0.0
    %1865 = vmatpush1.msra.mxu0 %v45
    %1866 = vmatprep.subr.mxu0 0.0
    %1867 = vmatpush1.msra.mxu0 0.0
    %1868 = vmatprep.subr.mxu0 0.0
    %1869 = vmatpush1.msra.mxu0 0.0
    %1870 = vmatprep.subr.mxu0 0.0
    %1871 = vmatpush1.msra.mxu0 0.0
    %1872 = vmatprep.subr.mxu0 0.0
    %1873 = vmatpush1.msra.mxu0 0.0
    %1874 = vmatprep.subr.mxu0 0.0
    %1875 = vmatpush1.msra.mxu0 0.0
    %1876 = vmatprep.subr.mxu0 0.0
    %1877 = vmatpush1.msra.mxu0 0.0
    %1878 = vmatprep.subr.mxu0 0.0
    %1879 = vmatpush1.msra.mxu0 0.0
    %1880 = vmatprep.subr.mxu0 0.0
    %1881 = vmatpush1.msra.mxu0 0.0
    %1882 = vmatprep.subr.mxu0 0.0
    %1883 = vmatpush1.msra.mxu0 0.0
    %1884 = vmatprep.subr.mxu0 0.0
    %1885 = vmatpush1.msra.mxu0 0.0
    %1886 = vmatprep.subr.mxu0 0.0
    %1887 = vmatpush1.msra.mxu0 0.0
    %1888 = vmatprep.subr.mxu0 0.0
    %1889 = vmatpush1.msra.mxu0 0.0
    %1890 = vmatprep.subr.mxu0 0.0
    %1891 = vmatpush1.msra.mxu0 0.0
    %1892 = vmatprep.subr.mxu0 0.0
    %1893 = vmatpush1.msra.mxu0 0.0
    %1894 = vmatprep.subr.mxu0 0.0
    %1895 = vmatpush1.msra.mxu0 0.0
    %1896 = vmatprep.subr.mxu0 0.0
    %1897 = vmatpush1.msra.mxu0 0.0
    %1898 = vmatprep.subr.mxu0 0.0
    %1899 = vmatpush1.msra.mxu0 0.0
    %1900 = vmatprep.subr.mxu0 0.0
    %1901 = vmatpush1.msra.mxu0 0.0
    %1902 = vmatprep.subr.mxu0 0.0
    %1903 = vmatpush1.msra.mxu0 0.0
    %1904 = vmatprep.subr.mxu0 0.0
    %1905 = vmatpush1.msra.mxu0 0.0
    %1906 = vmatprep.subr.mxu0 0.0
    %1907 = vmatpush1.msra.mxu0 0.0
    %1908 = vmatprep.subr.mxu0 0.0
    %1909 = vmatpush1.msra.mxu0 0.0
    %1910 = vmatprep.subr.mxu0 0.0
    %1911 = vmatpush1.msra.mxu0 0.0
    %1912 = vmatprep.subr.mxu0 0.0
    %1913 = vmatpush1.msra.mxu0 0.0
    %1914 = vmatprep.subr.mxu0 0.0
    %1915 = vmatpush1.msra.mxu0 0.0
    %1916 = vmatprep.subr.mxu0 0.0
    %1917 = vmatpush1.msra.mxu0 0.0
    %1918 = vmatprep.subr.mxu0 0.0
    %1919 = vmatpush1.msra.mxu0 0.0
    %1920 = vmatprep.subr.mxu0 0.0
    %1921 = vmatpush1.msra.mxu0 0.0
    %1922 = vmatprep.mubr.f32.mxu0 0.0
    %1923 = vmatmul.mubr.f32.gmra.mrb[0].mxu0 %v1856
    %v1924 = vpop.f32.mrb[0].mxu0
    %v1925 = vadd.f32 0.0, %v1924
    %v1926 = vpop.f32.mrb[0].mxu0
    %1927 = vdwg.mxu0
    %v1928 = vadd.f32 %v1289, %v1925
    %v1929 = vsub.f32 0.0, %v1928
    %v1930 = vmul.f32 %v1929, 1.442695
    %v1931 = vpow.pop %v1930
    %v1932 = vadd.f32 %v1931, 1.0
    %v1933 = vrcp.pop %v1932
    %v1934 = vmul.f32 %v1933, 2.0
    %v1935 = vsub.f32 %v1934, 1.0
    %v1936 = vmul.f32 %v1933, %v1831
    %1938 = vrot.lane.b32.xlu0 %v1935, 64
    %v1939 = vpop.permute.xlu0 %1938
    %v1941 = vmul.f32 %v1933, %v1939
    %1943 = vrot.lane.b32.xlu0 %v1941, 32
    %v1944 = vpop.permute.xlu0 %1943
    %v1946 = vadd.f32 %v1936, %v1944
    %v1947 = vtanh.pop %v1946
    %1949 = vrot.lane.b32.xlu0 %v1947, 64
    %v1950 = vpop.permute.xlu0 %1949
    %v1952 = vmul.f32 %v1933, %v1950
    %v1953 = vmul.f32 %v1952, %v1370
    %1955 = vrot.lane.b32.xlu0 %v1953, 32
    %v1956 = vpop.permute.xlu0 %1955
    %v1958 = vsel %vm1377, %v1956, 0.0
    %1959 = vadd.xlane.f32.xlu0 %v1958
    %v1960 = vpop.xlane.xlu0 %1959
    %v1961 = vadd.f32 %v1960, %v71
    %1963 = vrot.lane.b32.xlu0 %v1961, 101
    %v1964 = vpop.permute.xlu0 %1963
    %vm1966 = vcmask 42024
    %1967 = vst.msk [vmem:[#allocation5] sm:$0x3] %vm1966, %v1964
    %1969 = vrot.lane.b32.xlu0 %v1952, 32
    %v1970 = vpop.permute.xlu0 %1969
    %v1971 = vsel %vm1391, %v1970, 0
    %1973 = vmatprep.subr.mxu0 0.0
    %1974 = vmatpush1.msra.mxu0 %v42
    %1975 = vmatprep.subr.mxu0 0.0
    %1976 = vmatpush1.msra.mxu0 %v43
    %1977 = vmatprep.subr.mxu0 0.0
    %1978 = vmatpush1.msra.mxu0 %v44
    %1979 = vmatprep.subr.mxu0 0.0
    %1980 = vmatpush1.msra.mxu0 %v45
    %1981 = vmatprep.subr.mxu0 0.0
    %1982 = vmatpush1.msra.mxu0 0.0
    %1983 = vmatprep.subr.mxu0 0.0
    %1984 = vmatpush1.msra.mxu0 0.0
    %1985 = vmatprep.subr.mxu0 0.0
    %1986 = vmatpush1.msra.mxu0 0.0
    %1987 = vmatprep.subr.mxu0 0.0
    %1988 = vmatpush1.msra.mxu0 0.0
    %1989 = vmatprep.subr.mxu0 0.0
    %1990 = vmatpush1.msra.mxu0 0.0
    %1991 = vmatprep.subr.mxu0 0.0
    %1992 = vmatpush1.msra.mxu0 0.0
    %1993 = vmatprep.subr.mxu0 0.0
    %1994 = vmatpush1.msra.mxu0 0.0
    %1995 = vmatprep.subr.mxu0 0.0
    %1996 = vmatpush1.msra.mxu0 0.0
    %1997 = vmatprep.subr.mxu0 0.0
    %1998 = vmatpush1.msra.mxu0 0.0
    %1999 = vmatprep.subr.mxu0 0.0
    %2000 = vmatpush1.msra.mxu0 0.0
    %2001 = vmatprep.subr.mxu0 0.0
    %2002 = vmatpush1.msra.mxu0 0.0
    %2003 = vmatprep.subr.mxu0 0.0
    %2004 = vmatpush1.msra.mxu0 0.0
    %2005 = vmatprep.subr.mxu0 0.0
    %2006 = vmatpush1.msra.mxu0 0.0
    %2007 = vmatprep.subr.mxu0 0.0
    %2008 = vmatpush1.msra.mxu0 0.0
    %2009 = vmatprep.subr.mxu0 0.0
    %2010 = vmatpush1.msra.mxu0 0.0
    %2011 = vmatprep.subr.mxu0 0.0
    %2012 = vmatpush1.msra.mxu0 0.0
    %2013 = vmatprep.subr.mxu0 0.0
    %2014 = vmatpush1.msra.mxu0 0.0
    %2015 = vmatprep.subr.mxu0 0.0
    %2016 = vmatpush1.msra.mxu0 0.0
    %2017 = vmatprep.subr.mxu0 0.0
    %2018 = vmatpush1.msra.mxu0 0.0
    %2019 = vmatprep.subr.mxu0 0.0
    %2020 = vmatpush1.msra.mxu0 0.0
    %2021 = vmatprep.subr.mxu0 0.0
    %2022 = vmatpush1.msra.mxu0 0.0
    %2023 = vmatprep.subr.mxu0 0.0
    %2024 = vmatpush1.msra.mxu0 0.0
    %2025 = vmatprep.subr.mxu0 0.0
    %2026 = vmatpush1.msra.mxu0 0.0
    %2027 = vmatprep.subr.mxu0 0.0
    %2028 = vmatpush1.msra.mxu0 0.0
    %2029 = vmatprep.subr.mxu0 0.0
    %2030 = vmatpush1.msra.mxu0 0.0
    %2031 = vmatprep.subr.mxu0 0.0
    %2032 = vmatpush1.msra.mxu0 0.0
    %2033 = vmatprep.subr.mxu0 0.0
    %2034 = vmatpush1.msra.mxu0 0.0
    %2035 = vmatprep.subr.mxu0 0.0
    %2036 = vmatpush1.msra.mxu0 0.0
    %2037 = vmatprep.mubr.f32.mxu0 0.0
    %2038 = vmatmul.mubr.f32.gmra.mrb[0].mxu0 %v1971
    %v2039 = vpop.f32.mrb[0].mxu0
    %v2040 = vadd.f32 0.0, %v2039
    %v2041 = vpop.f32.mrb[0].mxu0
    %2042 = vdwg.mxu0
    %v2043 = vadd.f32 %v1295, %v2040
    %v2044 = vsub.f32 0.0, %v2043
    %v2045 = vmul.f32 %v2044, 1.442695
    %v2046 = vpow.pop %v2045
    %v2047 = vadd.f32 %v2046, 1.0
    %v2048 = vrcp.pop %v2047
    %v2049 = vmul.f32 %v2048, 2.0
    %v2050 = vsub.f32 %v2049, 1.0
    %v2051 = vmul.f32 %v2048, %v1946
    %2053 = vrot.lane.b32.xlu0 %v2050, 64
    %v2054 = vpop.permute.xlu0 %2053
    %v2056 = vmul.f32 %v2048, %v2054
    %2058 = vrot.lane.b32.xlu0 %v2056, 32
    %v2059 = vpop.permute.xlu0 %2058
    %v2061 = vadd.f32 %v2051, %v2059
    %v2062 = vtanh.pop %v2061
    %2064 = vrot.lane.b32.xlu0 %v2062, 64
    %v2065 = vpop.permute.xlu0 %2064
    %v2067 = vmul.f32 %v2048, %v2065
    %v2068 = vmul.f32 %v2067, %v1370
    %2070 = vrot.lane.b32.xlu0 %v2068, 32
    %v2071 = vpop.permute.xlu0 %2070
    %v2073 = vsel %vm1377, %v2071, 0.0
    %2074 = vadd.xlane.f32.xlu0 %v2073
    %v2075 = vpop.xlane.xlu0 %2074
    %v2076 = vadd.f32 %v2075, %v71
    %2078 = vrot.lane.b32.xlu0 %v2076, 102
    %v2079 = vpop.permute.xlu0 %2078
    %vm2081 = vcmask 50224
    %2082 = vst.msk [vmem:[#allocation5] sm:$0x3] %vm2081, %v2079
    %2084 = vrot.lane.b32.xlu0 %v2067, 32
    %v2085 = vpop.permute.xlu0 %2084
    %v2086 = vsel %vm1391, %v2085, 0
    %2088 = vmatprep.subr.mxu0 0.0
    %2089 = vmatpush1.msra.mxu0 %v42
    %2090 = vmatprep.subr.mxu0 0.0
    %2091 = vmatpush1.msra.mxu0 %v43
    %2092 = vmatprep.subr.mxu0 0.0
    %2093 = vmatpush1.msra.mxu0 %v44
    %2094 = vmatprep.subr.mxu0 0.0
    %2095 = vmatpush1.msra.mxu0 %v45
    %2096 = vmatprep.subr.mxu0 0.0
    %2097 = vmatpush1.msra.mxu0 0.0
    %2098 = vmatprep.subr.mxu0 0.0
    %2099 = vmatpush1.msra.mxu0 0.0
    %2100 = vmatprep.subr.mxu0 0.0
    %2101 = vmatpush1.msra.mxu0 0.0
    %2102 = vmatprep.subr.mxu0 0.0
    %2103 = vmatpush1.msra.mxu0 0.0
    %2104 = vmatprep.subr.mxu0 0.0
    %2105 = vmatpush1.msra.mxu0 0.0
    %2106 = vmatprep.subr.mxu0 0.0
    %2107 = vmatpush1.msra.mxu0 0.0
    %2108 = vmatprep.subr.mxu0 0.0
    %2109 = vmatpush1.msra.mxu0 0.0
    %2110 = vmatprep.subr.mxu0 0.0
    %2111 = vmatpush1.msra.mxu0 0.0
    %2112 = vmatprep.subr.mxu0 0.0
    %2113 = vmatpush1.msra.mxu0 0.0
    %2114 = vmatprep.subr.mxu0 0.0
    %2115 = vmatpush1.msra.mxu0 0.0
    %2116 = vmatprep.subr.mxu0 0.0
    %2117 = vmatpush1.msra.mxu0 0.0
    %2118 = vmatprep.subr.mxu0 0.0
    %2119 = vmatpush1.msra.mxu0 0.0
    %2120 = vmatprep.subr.mxu0 0.0
    %2121 = vmatpush1.msra.mxu0 0.0
    %2122 = vmatprep.subr.mxu0 0.0
    %2123 = vmatpush1.msra.mxu0 0.0
    %2124 = vmatprep.subr.mxu0 0.0
    %2125 = vmatpush1.msra.mxu0 0.0
    %2126 = vmatprep.subr.mxu0 0.0
    %2127 = vmatpush1.msra.mxu0 0.0
    %2128 = vmatprep.subr.mxu0 0.0
    %2129 = vmatpush1.msra.mxu0 0.0
    %2130 = vmatprep.subr.mxu0 0.0
    %2131 = vmatpush1.msra.mxu0 0.0
    %2132 = vmatprep.subr.mxu0 0.0
    %2133 = vmatpush1.msra.mxu0 0.0
    %2134 = vmatprep.subr.mxu0 0.0
    %2135 = vmatpush1.msra.mxu0 0.0
    %2136 = vmatprep.subr.mxu0 0.0
    %2137 = vmatpush1.msra.mxu0 0.0
    %2138 = vmatprep.subr.mxu0 0.0
    %2139 = vmatpush1.msra.mxu0 0.0
    %2140 = vmatprep.subr.mxu0 0.0
    %2141 = vmatpush1.msra.mxu0 0.0
    %2142 = vmatprep.subr.mxu0 0.0
    %2143 = vmatpush1.msra.mxu0 0.0
    %2144 = vmatprep.subr.mxu0 0.0
    %2145 = vmatpush1.msra.mxu0 0.0
    %2146 = vmatprep.subr.mxu0 0.0
    %2147 = vmatpush1.msra.mxu0 0.0
    %2148 = vmatprep.subr.mxu0 0.0
    %2149 = vmatpush1.msra.mxu0 0.0
    %2150 = vmatprep.subr.mxu0 0.0
    %2151 = vmatpush1.msra.mxu0 0.0
    %2152 = vmatprep.mubr.f32.mxu0 0.0
    %2153 = vmatmul.mubr.f32.gmra.mrb[0].mxu0 %v2086
    %v2154 = vpop.f32.mrb[0].mxu0
    %v2155 = vadd.f32 0.0, %v2154
    %v2156 = vpop.f32.mrb[0].mxu0
    %2157 = vdwg.mxu0
    %v2158 = vadd.f32 %v1301, %v2155
    %v2159 = vsub.f32 0.0, %v2158
    %v2160 = vmul.f32 %v2159, 1.442695
    %v2161 = vpow.pop %v2160
    %v2162 = vadd.f32 %v2161, 1.0
    %v2163 = vrcp.pop %v2162
    %v2164 = vmul.f32 %v2163, 2.0
    %v2165 = vsub.f32 %v2164, 1.0
    %v2166 = vmul.f32 %v2163, %v2061
    %2168 = vrot.lane.b32.xlu0 %v2165, 64
    %v2169 = vpop.permute.xlu0 %2168
    %v2171 = vmul.f32 %v2163, %v2169
    %2173 = vrot.lane.b32.xlu0 %v2171, 32
    %v2174 = vpop.permute.xlu0 %2173
    %v2176 = vadd.f32 %v2166, %v2174
    %v2177 = vtanh.pop %v2176
    %2179 = vrot.lane.b32.xlu0 %v2177, 64
    %v2180 = vpop.permute.xlu0 %2179
    %v2182 = vmul.f32 %v2163, %v2180
    %v2183 = vmul.f32 %v2182, %v1370
    %2185 = vrot.lane.b32.xlu0 %v2183, 32
    %v2186 = vpop.permute.xlu0 %2185
    %v2188 = vsel %vm1377, %v2186, 0.0
    %2189 = vadd.xlane.f32.xlu0 %v2188
    %v2190 = vpop.xlane.xlu0 %2189
    %v2191 = vadd.f32 %v2190, %v71
    %2193 = vrot.lane.b32.xlu0 %v2191, 103
    %v2194 = vpop.permute.xlu0 %2193
    %vm2196 = vcmask 58424
    %2197 = vst.msk [vmem:[#allocation5] sm:$0x3] %vm2196, %v2194
    %2199 = vrot.lane.b32.xlu0 %v2182, 32
    %v2200 = vpop.permute.xlu0 %2199
    %v2201 = vsel %vm1391, %v2200, 0
    %2203 = vmatprep.subr.mxu0 0.0
    %2204 = vmatpush1.msra.mxu0 %v42
    %2205 = vmatprep.subr.mxu0 0.0
    %2206 = vmatpush1.msra.mxu0 %v43
    %2207 = vmatprep.subr.mxu0 0.0
    %2208 = vmatpush1.msra.mxu0 %v44
    %2209 = vmatprep.subr.mxu0 0.0
    %2210 = vmatpush1.msra.mxu0 %v45
    %2211 = vmatprep.subr.mxu0 0.0
    %2212 = vmatpush1.msra.mxu0 0.0
    %2213 = vmatprep.subr.mxu0 0.0
    %2214 = vmatpush1.msra.mxu0 0.0
    %2215 = vmatprep.subr.mxu0 0.0
    %2216 = vmatpush1.msra.mxu0 0.0
    %2217 = vmatprep.subr.mxu0 0.0
    %2218 = vmatpush1.msra.mxu0 0.0
    %2219 = vmatprep.subr.mxu0 0.0
    %2220 = vmatpush1.msra.mxu0 0.0
    %2221 = vmatprep.subr.mxu0 0.0
    %2222 = vmatpush1.msra.mxu0 0.0
    %2223 = vmatprep.subr.mxu0 0.0
    %2224 = vmatpush1.msra.mxu0 0.0
    %2225 = vmatprep.subr.mxu0 0.0
    %2226 = vmatpush1.msra.mxu0 0.0
    %2227 = vmatprep.subr.mxu0 0.0
    %2228 = vmatpush1.msra.mxu0 0.0
    %2229 = vmatprep.subr.mxu0 0.0
    %2230 = vmatpush1.msra.mxu0 0.0
    %2231 = vmatprep.subr.mxu0 0.0
    %2232 = vmatpush1.msra.mxu0 0.0
    %2233 = vmatprep.subr.mxu0 0.0
    %2234 = vmatpush1.msra.mxu0 0.0
    %2235 = vmatprep.subr.mxu0 0.0
    %2236 = vmatpush1.msra.mxu0 0.0
    %2237 = vmatprep.subr.mxu0 0.0
    %2238 = vmatpush1.msra.mxu0 0.0
    %2239 = vmatprep.subr.mxu0 0.0
    %2240 = vmatpush1.msra.mxu0 0.0
    %2241 = vmatprep.subr.mxu0 0.0
    %2242 = vmatpush1.msra.mxu0 0.0
    %2243 = vmatprep.subr.mxu0 0.0
    %2244 = vmatpush1.msra.mxu0 0.0
    %2245 = vmatprep.subr.mxu0 0.0
    %2246 = vmatpush1.msra.mxu0 0.0
    %2247 = vmatprep.subr.mxu0 0.0
    %2248 = vmatpush1.msra.mxu0 0.0
    %2249 = vmatprep.subr.mxu0 0.0
    %2250 = vmatpush1.msra.mxu0 0.0
    %2251 = vmatprep.subr.mxu0 0.0
    %2252 = vmatpush1.msra.mxu0 0.0
    %2253 = vmatprep.subr.mxu0 0.0
    %2254 = vmatpush1.msra.mxu0 0.0
    %2255 = vmatprep.subr.mxu0 0.0
    %2256 = vmatpush1.msra.mxu0 0.0
    %2257 = vmatprep.subr.mxu0 0.0
    %2258 = vmatpush1.msra.mxu0 0.0
    %2259 = vmatprep.subr.mxu0 0.0
    %2260 = vmatpush1.msra.mxu0 0.0
    %2261 = vmatprep.subr.mxu0 0.0
    %2262 = vmatpush1.msra.mxu0 0.0
    %2263 = vmatprep.subr.mxu0 0.0
    %2264 = vmatpush1.msra.mxu0 0.0
    %2265 = vmatprep.subr.mxu0 0.0
    %2266 = vmatpush1.msra.mxu0 0.0
    %2267 = vmatprep.mubr.f32.mxu0 0.0
    %2268 = vmatmul.mubr.f32.gmra.mrb[0].mxu0 %v2201
    %v2269 = vpop.f32.mrb[0].mxu0
    %v2270 = vadd.f32 0.0, %v2269
    %v2271 = vpop.f32.mrb[0].mxu0
    %2272 = vdwg.mxu0
    %v2273 = vadd.f32 %v1307, %v2270
    %v2274 = vsub.f32 0.0, %v2273
    %v2275 = vmul.f32 %v2274, 1.442695
    %v2276 = vpow.pop %v2275
    %v2277 = vadd.f32 %v2276, 1.0
    %v2278 = vrcp.pop %v2277
    %v2279 = vmul.f32 %v2278, 2.0
    %v2280 = vsub.f32 %v2279, 1.0
    %v2281 = vmul.f32 %v2278, %v2176
    %2283 = vrot.lane.b32.xlu0 %v2280, 64
    %v2284 = vpop.permute.xlu0 %2283
    %v2286 = vmul.f32 %v2278, %v2284
    %2288 = vrot.lane.b32.xlu0 %v2286, 32
    %v2289 = vpop.permute.xlu0 %2288
    %v2291 = vadd.f32 %v2281, %v2289
    %v2292 = vtanh.pop %v2291
    %2294 = vrot.lane.b32.xlu0 %v2292, 64
    %v2295 = vpop.permute.xlu0 %2294
    %v2297 = vmul.f32 %v2278, %v2295
    %v2298 = vmul.f32 %v2297, %v1370
    %2300 = vrot.lane.b32.xlu0 %v2298, 32
    %v2301 = vpop.permute.xlu0 %2300
    %v2303 = vsel %vm1377, %v2301, 0.0
    %2304 = vadd.xlane.f32.xlu0 %v2303
    %v2305 = vpop.xlane.xlu0 %2304
    %v2306 = vadd.f32 %v2305, %v71
    %2308 = vrot.lane.b32.xlu0 %v2306, 104
    %v2309 = vpop.permute.xlu0 %2308
    %vm2311 = vcmask 66624
    %2312 = vst.msk [vmem:[#allocation5] sm:$0x3] %vm2311, %v2309
    %2314 = vrot.lane.b32.xlu0 %v2297, 32
    %v2315 = vpop.permute.xlu0 %2314
    %v2316 = vsel %vm1391, %v2315, 0
    %2318 = vmatprep.subr.mxu0 0.0
    %2319 = vmatpush1.msra.mxu0 %v42
    %2320 = vmatprep.subr.mxu0 0.0
    %2321 = vmatpush1.msra.mxu0 %v43
    %2322 = vmatprep.subr.mxu0 0.0
    %2323 = vmatpush1.msra.mxu0 %v44
    %2324 = vmatprep.subr.mxu0 0.0
    %2325 = vmatpush1.msra.mxu0 %v45
    %2326 = vmatprep.subr.mxu0 0.0
    %2327 = vmatpush1.msra.mxu0 0.0
    %2328 = vmatprep.subr.mxu0 0.0
    %2329 = vmatpush1.msra.mxu0 0.0
    %2330 = vmatprep.subr.mxu0 0.0
    %2331 = vmatpush1.msra.mxu0 0.0
    %2332 = vmatprep.subr.mxu0 0.0
    %2333 = vmatpush1.msra.mxu0 0.0
    %2334 = vmatprep.subr.mxu0 0.0
    %2335 = vmatpush1.msra.mxu0 0.0
    %2336 = vmatprep.subr.mxu0 0.0
    %2337 = vmatpush1.msra.mxu0 0.0
    %2338 = vmatprep.subr.mxu0 0.0
    %2339 = vmatpush1.msra.mxu0 0.0
    %2340 = vmatprep.subr.mxu0 0.0
    %2341 = vmatpush1.msra.mxu0 0.0
    %2342 = vmatprep.subr.mxu0 0.0
    %2343 = vmatpush1.msra.mxu0 0.0
    %2344 = vmatprep.subr.mxu0 0.0
    %2345 = vmatpush1.msra.mxu0 0.0
    %2346 = vmatprep.subr.mxu0 0.0
    %2347 = vmatpush1.msra.mxu0 0.0
    %2348 = vmatprep.subr.mxu0 0.0
    %2349 = vmatpush1.msra.mxu0 0.0
    %2350 = vmatprep.subr.mxu0 0.0
    %2351 = vmatpush1.msra.mxu0 0.0
    %2352 = vmatprep.subr.mxu0 0.0
    %2353 = vmatpush1.msra.mxu0 0.0
    %2354 = vmatprep.subr.mxu0 0.0
    %2355 = vmatpush1.msra.mxu0 0.0
    %2356 = vmatprep.subr.mxu0 0.0
    %2357 = vmatpush1.msra.mxu0 0.0
    %2358 = vmatprep.subr.mxu0 0.0
    %2359 = vmatpush1.msra.mxu0 0.0
    %2360 = vmatprep.subr.mxu0 0.0
    %2361 = vmatpush1.msra.mxu0 0.0
    %2362 = vmatprep.subr.mxu0 0.0
    %2363 = vmatpush1.msra.mxu0 0.0
    %2364 = vmatprep.subr.mxu0 0.0
    %2365 = vmatpush1.msra.mxu0 0.0
    %2366 = vmatprep.subr.mxu0 0.0
    %2367 = vmatpush1.msra.mxu0 0.0
    %2368 = vmatprep.subr.mxu0 0.0
    %2369 = vmatpush1.msra.mxu0 0.0
    %2370 = vmatprep.subr.mxu0 0.0
    %2371 = vmatpush1.msra.mxu0 0.0
    %2372 = vmatprep.subr.mxu0 0.0
    %2373 = vmatpush1.msra.mxu0 0.0
    %2374 = vmatprep.subr.mxu0 0.0
    %2375 = vmatpush1.msra.mxu0 0.0
    %2376 = vmatprep.subr.mxu0 0.0
    %2377 = vmatpush1.msra.mxu0 0.0
    %2378 = vmatprep.subr.mxu0 0.0
    %2379 = vmatpush1.msra.mxu0 0.0
    %2380 = vmatprep.subr.mxu0 0.0
    %2381 = vmatpush1.msra.mxu0 0.0
    %2382 = vmatprep.mubr.f32.mxu0 0.0
    %2383 = vmatmul.mubr.f32.gmra.mrb[0].mxu0 %v2316
    %v2384 = vpop.f32.mrb[0].mxu0
    %v2385 = vadd.f32 0.0, %v2384
    %v2386 = vpop.f32.mrb[0].mxu0
    %2387 = vdwg.mxu0
    %v2388 = vadd.f32 %v1313, %v2385
    %v2389 = vsub.f32 0.0, %v2388
    %v2390 = vmul.f32 %v2389, 1.442695
    %v2391 = vpow.pop %v2390
    %v2392 = vadd.f32 %v2391, 1.0
    %v2393 = vrcp.pop %v2392
    %v2394 = vmul.f32 %v2393, 2.0
    %v2395 = vsub.f32 %v2394, 1.0
    %v2396 = vmul.f32 %v2393, %v2291
    %2398 = vrot.lane.b32.xlu0 %v2395, 64
    %v2399 = vpop.permute.xlu0 %2398
    %v2401 = vmul.f32 %v2393, %v2399
    %2403 = vrot.lane.b32.xlu0 %v2401, 32
    %v2404 = vpop.permute.xlu0 %2403
    %v2406 = vadd.f32 %v2396, %v2404
    %v2407 = vtanh.pop %v2406
    %2409 = vrot.lane.b32.xlu0 %v2407, 64
    %v2410 = vpop.permute.xlu0 %2409
    %v2412 = vmul.f32 %v2393, %v2410
    %v2413 = vmul.f32 %v2412, %v1370
    %2415 = vrot.lane.b32.xlu0 %v2413, 32
    %v2416 = vpop.permute.xlu0 %2415
    %v2418 = vsel %vm1377, %v2416, 0.0
    %2419 = vadd.xlane.f32.xlu0 %v2418
    %v2420 = vpop.xlane.xlu0 %2419
    %v2421 = vadd.f32 %v2420, %v71
    %2423 = vrot.lane.b32.xlu0 %v2421, 105
    %v2424 = vpop.permute.xlu0 %2423
    %vm2426 = vcmask 74824
    %2427 = vst.msk [vmem:[#allocation5] sm:$0x3] %vm2426, %v2424
    %2429 = vrot.lane.b32.xlu0 %v2412, 32
    %v2430 = vpop.permute.xlu0 %2429
    %v2431 = vsel %vm1391, %v2430, 0
    %2433 = vmatprep.subr.mxu0 0.0
    %2434 = vmatpush1.msra.mxu0 %v42
    %2435 = vmatprep.subr.mxu0 0.0
    %2436 = vmatpush1.msra.mxu0 %v43
    %2437 = vmatprep.subr.mxu0 0.0
    %2438 = vmatpush1.msra.mxu0 %v44
    %2439 = vmatprep.subr.mxu0 0.0
    %2440 = vmatpush1.msra.mxu0 %v45
    %2441 = vmatprep.subr.mxu0 0.0
    %2442 = vmatpush1.msra.mxu0 0.0
    %2443 = vmatprep.subr.mxu0 0.0
    %2444 = vmatpush1.msra.mxu0 0.0
    %2445 = vmatprep.subr.mxu0 0.0
    %2446 = vmatpush1.msra.mxu0 0.0
    %2447 = vmatprep.subr.mxu0 0.0
    %2448 = vmatpush1.msra.mxu0 0.0
    %2449 = vmatprep.subr.mxu0 0.0
    %2450 = vmatpush1.msra.mxu0 0.0
    %2451 = vmatprep.subr.mxu0 0.0
    %2452 = vmatpush1.msra.mxu0 0.0
    %2453 = vmatprep.subr.mxu0 0.0
    %2454 = vmatpush1.msra.mxu0 0.0
    %2455 = vmatprep.subr.mxu0 0.0
    %2456 = vmatpush1.msra.mxu0 0.0
    %2457 = vmatprep.subr.mxu0 0.0
    %2458 = vmatpush1.msra.mxu0 0.0
    %2459 = vmatprep.subr.mxu0 0.0
    %2460 = vmatpush1.msra.mxu0 0.0
    %2461 = vmatprep.subr.mxu0 0.0
    %2462 = vmatpush1.msra.mxu0 0.0
    %2463 = vmatprep.subr.mxu0 0.0
    %2464 = vmatpush1.msra.mxu0 0.0
    %2465 = vmatprep.subr.mxu0 0.0
    %2466 = vmatpush1.msra.mxu0 0.0
    %2467 = vmatprep.subr.mxu0 0.0
    %2468 = vmatpush1.msra.mxu0 0.0
    %2469 = vmatprep.subr.mxu0 0.0
    %2470 = vmatpush1.msra.mxu0 0.0
    %2471 = vmatprep.subr.mxu0 0.0
    %2472 = vmatpush1.msra.mxu0 0.0
    %2473 = vmatprep.subr.mxu0 0.0
    %2474 = vmatpush1.msra.mxu0 0.0
    %2475 = vmatprep.subr.mxu0 0.0
    %2476 = vmatpush1.msra.mxu0 0.0
    %2477 = vmatprep.subr.mxu0 0.0
    %2478 = vmatpush1.msra.mxu0 0.0
    %2479 = vmatprep.subr.mxu0 0.0
    %2480 = vmatpush1.msra.mxu0 0.0
    %2481 = vmatprep.subr.mxu0 0.0
    %2482 = vmatpush1.msra.mxu0 0.0
    %2483 = vmatprep.subr.mxu0 0.0
    %2484 = vmatpush1.msra.mxu0 0.0
    %2485 = vmatprep.subr.mxu0 0.0
    %2486 = vmatpush1.msra.mxu0 0.0
    %2487 = vmatprep.subr.mxu0 0.0
    %2488 = vmatpush1.msra.mxu0 0.0
    %2489 = vmatprep.subr.mxu0 0.0
    %2490 = vmatpush1.msra.mxu0 0.0
    %2491 = vmatprep.subr.mxu0 0.0
    %2492 = vmatpush1.msra.mxu0 0.0
    %2493 = vmatprep.subr.mxu0 0.0
    %2494 = vmatpush1.msra.mxu0 0.0
    %2495 = vmatprep.subr.mxu0 0.0
    %2496 = vmatpush1.msra.mxu0 0.0
    %2497 = vmatprep.mubr.f32.mxu0 0.0
    %2498 = vmatmul.mubr.f32.gmra.mrb[0].mxu0 %v2431
    %v2499 = vpop.f32.mrb[0].mxu0
    %v2500 = vadd.f32 0.0, %v2499
    %v2501 = vpop.f32.mrb[0].mxu0
    %2502 = vdwg.mxu0
    %v2503 = vadd.f32 %v1319, %v2500
    %v2504 = vsub.f32 0.0, %v2503
    %v2505 = vmul.f32 %v2504, 1.442695
    %v2506 = vpow.pop %v2505
    %v2507 = vadd.f32 %v2506, 1.0
    %v2508 = vrcp.pop %v2507
    %v2509 = vmul.f32 %v2508, 2.0
    %v2510 = vsub.f32 %v2509, 1.0
    %v2511 = vmul.f32 %v2508, %v2406
    %2513 = vrot.lane.b32.xlu0 %v2510, 64
    %v2514 = vpop.permute.xlu0 %2513
    %v2516 = vmul.f32 %v2508, %v2514
    %2518 = vrot.lane.b32.xlu0 %v2516, 32
    %v2519 = vpop.permute.xlu0 %2518
    %v2521 = vadd.f32 %v2511, %v2519
    %v2522 = vtanh.pop %v2521
    %2524 = vrot.lane.b32.xlu0 %v2522, 64
    %v2525 = vpop.permute.xlu0 %2524
    %v2527 = vmul.f32 %v2508, %v2525
    %v2528 = vmul.f32 %v2527, %v1370
    %2530 = vrot.lane.b32.xlu0 %v2528, 32
    %v2531 = vpop.permute.xlu0 %2530
    %v2533 = vsel %vm1377, %v2531, 0.0
    %2534 = vadd.xlane.f32.xlu0 %v2533
    %v2535 = vpop.xlane.xlu0 %2534
    %v2536 = vadd.f32 %v2535, %v71
    %2538 = vrot.lane.b32.xlu0 %v2536, 106
    %v2539 = vpop.permute.xlu0 %2538
    %vm2541 = vcmask 83024
    %2542 = vst.msk [vmem:[#allocation5] sm:$0x3] %vm2541, %v2539
    %2544 = vrot.lane.b32.xlu0 %v2527, 32
    %v2545 = vpop.permute.xlu0 %2544
    %v2546 = vsel %vm1391, %v2545, 0
    %2548 = vmatprep.subr.mxu0 0.0
    %2549 = vmatpush1.msra.mxu0 %v42
    %2550 = vmatprep.subr.mxu0 0.0
    %2551 = vmatpush1.msra.mxu0 %v43
    %2552 = vmatprep.subr.mxu0 0.0
    %2553 = vmatpush1.msra.mxu0 %v44
    %2554 = vmatprep.subr.mxu0 0.0
    %2555 = vmatpush1.msra.mxu0 %v45
    %2556 = vmatprep.subr.mxu0 0.0
    %2557 = vmatpush1.msra.mxu0 0.0
    %2558 = vmatprep.subr.mxu0 0.0
    %2559 = vmatpush1.msra.mxu0 0.0
    %2560 = vmatprep.subr.mxu0 0.0
    %2561 = vmatpush1.msra.mxu0 0.0
    %2562 = vmatprep.subr.mxu0 0.0
    %2563 = vmatpush1.msra.mxu0 0.0
    %2564 = vmatprep.subr.mxu0 0.0
    %2565 = vmatpush1.msra.mxu0 0.0
    %2566 = vmatprep.subr.mxu0 0.0
    %2567 = vmatpush1.msra.mxu0 0.0
    %2568 = vmatprep.subr.mxu0 0.0
    %2569 = vmatpush1.msra.mxu0 0.0
    %2570 = vmatprep.subr.mxu0 0.0
    %2571 = vmatpush1.msra.mxu0 0.0
    %2572 = vmatprep.subr.mxu0 0.0
    %2573 = vmatpush1.msra.mxu0 0.0
    %2574 = vmatprep.subr.mxu0 0.0
    %2575 = vmatpush1.msra.mxu0 0.0
    %2576 = vmatprep.subr.mxu0 0.0
    %2577 = vmatpush1.msra.mxu0 0.0
    %2578 = vmatprep.subr.mxu0 0.0
    %2579 = vmatpush1.msra.mxu0 0.0
    %2580 = vmatprep.subr.mxu0 0.0
    %2581 = vmatpush1.msra.mxu0 0.0
    %2582 = vmatprep.subr.mxu0 0.0
    %2583 = vmatpush1.msra.mxu0 0.0
    %2584 = vmatprep.subr.mxu0 0.0
    %2585 = vmatpush1.msra.mxu0 0.0
    %2586 = vmatprep.subr.mxu0 0.0
    %2587 = vmatpush1.msra.mxu0 0.0
    %2588 = vmatprep.subr.mxu0 0.0
    %2589 = vmatpush1.msra.mxu0 0.0
    %2590 = vmatprep.subr.mxu0 0.0
    %2591 = vmatpush1.msra.mxu0 0.0
    %2592 = vmatprep.subr.mxu0 0.0
    %2593 = vmatpush1.msra.mxu0 0.0
    %2594 = vmatprep.subr.mxu0 0.0
    %2595 = vmatpush1.msra.mxu0 0.0
    %2596 = vmatprep.subr.mxu0 0.0
    %2597 = vmatpush1.msra.mxu0 0.0
    %2598 = vmatprep.subr.mxu0 0.0
    %2599 = vmatpush1.msra.mxu0 0.0
    %2600 = vmatprep.subr.mxu0 0.0
    %2601 = vmatpush1.msra.mxu0 0.0
    %2602 = vmatprep.subr.mxu0 0.0
    %2603 = vmatpush1.msra.mxu0 0.0
    %2604 = vmatprep.subr.mxu0 0.0
    %2605 = vmatpush1.msra.mxu0 0.0
    %2606 = vmatprep.subr.mxu0 0.0
    %2607 = vmatpush1.msra.mxu0 0.0
    %2608 = vmatprep.subr.mxu0 0.0
    %2609 = vmatpush1.msra.mxu0 0.0
    %2610 = vmatprep.subr.mxu0 0.0
    %2611 = vmatpush1.msra.mxu0 0.0
    %2612 = vmatprep.mubr.f32.mxu0 0.0
    %2613 = vmatmul.mubr.f32.gmra.mrb[0].mxu0 %v2546
    %v2614 = vpop.f32.mrb[0].mxu0
    %v2615 = vadd.f32 0.0, %v2614
    %v2616 = vpop.f32.mrb[0].mxu0
    %2617 = vdwg.mxu0
    %v2618 = vadd.f32 %v1325, %v2615
    %v2619 = vsub.f32 0.0, %v2618
    %v2620 = vmul.f32 %v2619, 1.442695
    %v2621 = vpow.pop %v2620
    %v2622 = vadd.f32 %v2621, 1.0
    %v2623 = vrcp.pop %v2622
    %v2624 = vmul.f32 %v2623, 2.0
    %v2625 = vsub.f32 %v2624, 1.0
    %v2626 = vmul.f32 %v2623, %v2521
    %2628 = vrot.lane.b32.xlu0 %v2625, 64
    %v2629 = vpop.permute.xlu0 %2628
    %v2631 = vmul.f32 %v2623, %v2629
    %2633 = vrot.lane.b32.xlu0 %v2631, 32
    %v2634 = vpop.permute.xlu0 %2633
    %v2636 = vadd.f32 %v2626, %v2634
    %v2637 = vtanh.pop %v2636
    %2639 = vrot.lane.b32.xlu0 %v2637, 64
    %v2640 = vpop.permute.xlu0 %2639
    %v2642 = vmul.f32 %v2623, %v2640
    %v2643 = vmul.f32 %v2642, %v1370
    %2645 = vrot.lane.b32.xlu0 %v2643, 32
    %v2646 = vpop.permute.xlu0 %2645
    %v2648 = vsel %vm1377, %v2646, 0.0
    %2649 = vadd.xlane.f32.xlu0 %v2648
    %v2650 = vpop.xlane.xlu0 %2649
    %v2651 = vadd.f32 %v2650, %v71
    %2653 = vrot.lane.b32.xlu0 %v2651, 107
    %v2654 = vpop.permute.xlu0 %2653
    %vm2656 = vcmask 91224
    %2657 = vst.msk [vmem:[#allocation5] sm:$0x3] %vm2656, %v2654
    %2659 = vrot.lane.b32.xlu0 %v2642, 32
    %v2660 = vpop.permute.xlu0 %2659
    %v2661 = vsel %vm1391, %v2660, 0
    %2663 = vmatprep.subr.mxu0 0.0
    %2664 = vmatpush1.msra.mxu0 %v42
    %2665 = vmatprep.subr.mxu0 0.0
    %2666 = vmatpush1.msra.mxu0 %v43
    %2667 = vmatprep.subr.mxu0 0.0
    %2668 = vmatpush1.msra.mxu0 %v44
    %2669 = vmatprep.subr.mxu0 0.0
    %2670 = vmatpush1.msra.mxu0 %v45
    %2671 = vmatprep.subr.mxu0 0.0
    %2672 = vmatpush1.msra.mxu0 0.0
    %2673 = vmatprep.subr.mxu0 0.0
    %2674 = vmatpush1.msra.mxu0 0.0
    %2675 = vmatprep.subr.mxu0 0.0
    %2676 = vmatpush1.msra.mxu0 0.0
    %2677 = vmatprep.subr.mxu0 0.0
    %2678 = vmatpush1.msra.mxu0 0.0
    %2679 = vmatprep.subr.mxu0 0.0
    %2680 = vmatpush1.msra.mxu0 0.0
    %2681 = vmatprep.subr.mxu0 0.0
    %2682 = vmatpush1.msra.mxu0 0.0
    %2683 = vmatprep.subr.mxu0 0.0
    %2684 = vmatpush1.msra.mxu0 0.0
    %2685 = vmatprep.subr.mxu0 0.0
    %2686 = vmatpush1.msra.mxu0 0.0
    %2687 = vmatprep.subr.mxu0 0.0
    %2688 = vmatpush1.msra.mxu0 0.0
    %2689 = vmatprep.subr.mxu0 0.0
    %2690 = vmatpush1.msra.mxu0 0.0
    %2691 = vmatprep.subr.mxu0 0.0
    %2692 = vmatpush1.msra.mxu0 0.0
    %2693 = vmatprep.subr.mxu0 0.0
    %2694 = vmatpush1.msra.mxu0 0.0
    %2695 = vmatprep.subr.mxu0 0.0
    %2696 = vmatpush1.msra.mxu0 0.0
    %2697 = vmatprep.subr.mxu0 0.0
    %2698 = vmatpush1.msra.mxu0 0.0
    %2699 = vmatprep.subr.mxu0 0.0
    %2700 = vmatpush1.msra.mxu0 0.0
    %2701 = vmatprep.subr.mxu0 0.0
    %2702 = vmatpush1.msra.mxu0 0.0
    %2703 = vmatprep.subr.mxu0 0.0
    %2704 = vmatpush1.msra.mxu0 0.0
    %2705 = vmatprep.subr.mxu0 0.0
    %2706 = vmatpush1.msra.mxu0 0.0
    %2707 = vmatprep.subr.mxu0 0.0
    %2708 = vmatpush1.msra.mxu0 0.0
    %2709 = vmatprep.subr.mxu0 0.0
    %2710 = vmatpush1.msra.mxu0 0.0
    %2711 = vmatprep.subr.mxu0 0.0
    %2712 = vmatpush1.msra.mxu0 0.0
    %2713 = vmatprep.subr.mxu0 0.0
    %2714 = vmatpush1.msra.mxu0 0.0
    %2715 = vmatprep.subr.mxu0 0.0
    %2716 = vmatpush1.msra.mxu0 0.0
    %2717 = vmatprep.subr.mxu0 0.0
    %2718 = vmatpush1.msra.mxu0 0.0
    %2719 = vmatprep.subr.mxu0 0.0
    %2720 = vmatpush1.msra.mxu0 0.0
    %2721 = vmatprep.subr.mxu0 0.0
    %2722 = vmatpush1.msra.mxu0 0.0
    %2723 = vmatprep.subr.mxu0 0.0
    %2724 = vmatpush1.msra.mxu0 0.0
    %2725 = vmatprep.subr.mxu0 0.0
    %2726 = vmatpush1.msra.mxu0 0.0
    %2727 = vmatprep.mubr.f32.mxu0 0.0
    %2728 = vmatmul.mubr.f32.gmra.mrb[0].mxu0 %v2661
    %v2729 = vpop.f32.mrb[0].mxu0
    %v2730 = vadd.f32 0.0, %v2729
    %v2731 = vpop.f32.mrb[0].mxu0
    %2732 = vdwg.mxu0
    %v2733 = vadd.f32 %v1331, %v2730
    %v2734 = vsub.f32 0.0, %v2733
    %v2735 = vmul.f32 %v2734, 1.442695
    %v2736 = vpow.pop %v2735
    %v2737 = vadd.f32 %v2736, 1.0
    %v2738 = vrcp.pop %v2737
    %v2739 = vmul.f32 %v2738, 2.0
    %v2740 = vsub.f32 %v2739, 1.0
    %v2741 = vmul.f32 %v2738, %v2636
    %2743 = vrot.lane.b32.xlu0 %v2740, 64
    %v2744 = vpop.permute.xlu0 %2743
    %v2746 = vmul.f32 %v2738, %v2744
    %2748 = vrot.lane.b32.xlu0 %v2746, 32
    %v2749 = vpop.permute.xlu0 %2748
    %v2751 = vadd.f32 %v2741, %v2749
    %v2752 = vtanh.pop %v2751
    %2754 = vrot.lane.b32.xlu0 %v2752, 64
    %v2755 = vpop.permute.xlu0 %2754
    %v2757 = vmul.f32 %v2738, %v2755
    %v2758 = vmul.f32 %v2757, %v1370
    %2760 = vrot.lane.b32.xlu0 %v2758, 32
    %v2761 = vpop.permute.xlu0 %2760
    %v2763 = vsel %vm1377, %v2761, 0.0
    %2764 = vadd.xlane.f32.xlu0 %v2763
    %v2765 = vpop.xlane.xlu0 %2764
    %v2766 = vadd.f32 %v2765, %v71
    %2768 = vrot.lane.b32.xlu0 %v2766, 108
    %v2769 = vpop.permute.xlu0 %2768
    %vm2771 = vcmask 99424
    %2772 = vst.msk [vmem:[#allocation5] sm:$0x3] %vm2771, %v2769
    %2774 = vrot.lane.b32.xlu0 %v2757, 32
    %v2775 = vpop.permute.xlu0 %2774
    %v2776 = vsel %vm1391, %v2775, 0
    %2778 = vmatprep.subr.mxu0 0.0
    %2779 = vmatpush1.msra.mxu0 %v42
    %2780 = vmatprep.subr.mxu0 0.0
    %2781 = vmatpush1.msra.mxu0 %v43
    %2782 = vmatprep.subr.mxu0 0.0
    %2783 = vmatpush1.msra.mxu0 %v44
    %2784 = vmatprep.subr.mxu0 0.0
    %2785 = vmatpush1.msra.mxu0 %v45
    %2786 = vmatprep.subr.mxu0 0.0
    %2787 = vmatpush1.msra.mxu0 0.0
    %2788 = vmatprep.subr.mxu0 0.0
    %2789 = vmatpush1.msra.mxu0 0.0
    %2790 = vmatprep.subr.mxu0 0.0
    %2791 = vmatpush1.msra.mxu0 0.0
    %2792 = vmatprep.subr.mxu0 0.0
    %2793 = vmatpush1.msra.mxu0 0.0
    %2794 = vmatprep.subr.mxu0 0.0
    %2795 = vmatpush1.msra.mxu0 0.0
    %2796 = vmatprep.subr.mxu0 0.0
    %2797 = vmatpush1.msra.mxu0 0.0
    %2798 = vmatprep.subr.mxu0 0.0
    %2799 = vmatpush1.msra.mxu0 0.0
    %2800 = vmatprep.subr.mxu0 0.0
    %2801 = vmatpush1.msra.mxu0 0.0
    %2802 = vmatprep.subr.mxu0 0.0
    %2803 = vmatpush1.msra.mxu0 0.0
    %2804 = vmatprep.subr.mxu0 0.0
    %2805 = vmatpush1.msra.mxu0 0.0
    %2806 = vmatprep.subr.mxu0 0.0
    %2807 = vmatpush1.msra.mxu0 0.0
    %2808 = vmatprep.subr.mxu0 0.0
    %2809 = vmatpush1.msra.mxu0 0.0
    %2810 = vmatprep.subr.mxu0 0.0
    %2811 = vmatpush1.msra.mxu0 0.0
    %2812 = vmatprep.subr.mxu0 0.0
    %2813 = vmatpush1.msra.mxu0 0.0
    %2814 = vmatprep.subr.mxu0 0.0
    %2815 = vmatpush1.msra.mxu0 0.0
    %2816 = vmatprep.subr.mxu0 0.0
    %2817 = vmatpush1.msra.mxu0 0.0
    %2818 = vmatprep.subr.mxu0 0.0
    %2819 = vmatpush1.msra.mxu0 0.0
    %2820 = vmatprep.subr.mxu0 0.0
    %2821 = vmatpush1.msra.mxu0 0.0
    %2822 = vmatprep.subr.mxu0 0.0
    %2823 = vmatpush1.msra.mxu0 0.0
    %2824 = vmatprep.subr.mxu0 0.0
    %2825 = vmatpush1.msra.mxu0 0.0
    %2826 = vmatprep.subr.mxu0 0.0
    %2827 = vmatpush1.msra.mxu0 0.0
    %2828 = vmatprep.subr.mxu0 0.0
    %2829 = vmatpush1.msra.mxu0 0.0
    %2830 = vmatprep.subr.mxu0 0.0
    %2831 = vmatpush1.msra.mxu0 0.0
    %2832 = vmatprep.subr.mxu0 0.0
    %2833 = vmatpush1.msra.mxu0 0.0
    %2834 = vmatprep.subr.mxu0 0.0
    %2835 = vmatpush1.msra.mxu0 0.0
    %2836 = vmatprep.subr.mxu0 0.0
    %2837 = vmatpush1.msra.mxu0 0.0
    %2838 = vmatprep.subr.mxu0 0.0
    %2839 = vmatpush1.msra.mxu0 0.0
    %2840 = vmatprep.subr.mxu0 0.0
    %2841 = vmatpush1.msra.mxu0 0.0
    %2842 = vmatprep.mubr.f32.mxu0 0.0
    %2843 = vmatmul.mubr.f32.gmra.mrb[0].mxu0 %v2776
    %v2844 = vpop.f32.mrb[0].mxu0
    %v2845 = vadd.f32 0.0, %v2844
    %v2846 = vpop.f32.mrb[0].mxu0
    %2847 = vdwg.mxu0
    %v2848 = vadd.f32 %v1337, %v2845
    %v2849 = vsub.f32 0.0, %v2848
    %v2850 = vmul.f32 %v2849, 1.442695
    %v2851 = vpow.pop %v2850
    %v2852 = vadd.f32 %v2851, 1.0
    %v2853 = vrcp.pop %v2852
    %v2854 = vmul.f32 %v2853, 2.0
    %v2855 = vsub.f32 %v2854, 1.0
    %v2856 = vmul.f32 %v2853, %v2751
    %2858 = vrot.lane.b32.xlu0 %v2855, 64
    %v2859 = vpop.permute.xlu0 %2858
    %v2861 = vmul.f32 %v2853, %v2859
    %2863 = vrot.lane.b32.xlu0 %v2861, 32
    %v2864 = vpop.permute.xlu0 %2863
    %v2866 = vadd.f32 %v2856, %v2864
    %v2867 = vtanh.pop %v2866
    %2869 = vrot.lane.b32.xlu0 %v2867, 64
    %v2870 = vpop.permute.xlu0 %2869
    %v2872 = vmul.f32 %v2853, %v2870
    %v2873 = vmul.f32 %v2872, %v1370
    %2875 = vrot.lane.b32.xlu0 %v2873, 32
    %v2876 = vpop.permute.xlu0 %2875
    %v2878 = vsel %vm1377, %v2876, 0.0
    %2879 = vadd.xlane.f32.xlu0 %v2878
    %v2880 = vpop.xlane.xlu0 %2879
    %v2881 = vadd.f32 %v2880, %v71
    %2883 = vrot.lane.b32.xlu0 %v2881, 109
    %v2884 = vpop.permute.xlu0 %2883
    %vm2886 = vcmask 107624
    %2887 = vst.msk [vmem:[#allocation5] sm:$0x3] %vm2886, %v2884
    %2889 = vrot.lane.b32.xlu0 %v2872, 32
    %v2890 = vpop.permute.xlu0 %2889
    %v2891 = vsel %vm1391, %v2890, 0
    %2893 = vmatprep.subr.mxu0 0.0
    %2894 = vmatpush1.msra.mxu0 %v42
    %2895 = vmatprep.subr.mxu0 0.0
    %2896 = vmatpush1.msra.mxu0 %v43
    %2897 = vmatprep.subr.mxu0 0.0
    %2898 = vmatpush1.msra.mxu0 %v44
    %2899 = vmatprep.subr.mxu0 0.0
    %2900 = vmatpush1.msra.mxu0 %v45
    %2901 = vmatprep.subr.mxu0 0.0
    %2902 = vmatpush1.msra.mxu0 0.0
    %2903 = vmatprep.subr.mxu0 0.0
    %2904 = vmatpush1.msra.mxu0 0.0
    %2905 = vmatprep.subr.mxu0 0.0
    %2906 = vmatpush1.msra.mxu0 0.0
    %2907 = vmatprep.subr.mxu0 0.0
    %2908 = vmatpush1.msra.mxu0 0.0
    %2909 = vmatprep.subr.mxu0 0.0
    %2910 = vmatpush1.msra.mxu0 0.0
    %2911 = vmatprep.subr.mxu0 0.0
    %2912 = vmatpush1.msra.mxu0 0.0
    %2913 = vmatprep.subr.mxu0 0.0
    %2914 = vmatpush1.msra.mxu0 0.0
    %2915 = vmatprep.subr.mxu0 0.0
    %2916 = vmatpush1.msra.mxu0 0.0
    %2917 = vmatprep.subr.mxu0 0.0
    %2918 = vmatpush1.msra.mxu0 0.0
    %2919 = vmatprep.subr.mxu0 0.0
    %2920 = vmatpush1.msra.mxu0 0.0
    %2921 = vmatprep.subr.mxu0 0.0
    %2922 = vmatpush1.msra.mxu0 0.0
    %2923 = vmatprep.subr.mxu0 0.0
    %2924 = vmatpush1.msra.mxu0 0.0
    %2925 = vmatprep.subr.mxu0 0.0
    %2926 = vmatpush1.msra.mxu0 0.0
    %2927 = vmatprep.subr.mxu0 0.0
    %2928 = vmatpush1.msra.mxu0 0.0
    %2929 = vmatprep.subr.mxu0 0.0
    %2930 = vmatpush1.msra.mxu0 0.0
    %2931 = vmatprep.subr.mxu0 0.0
    %2932 = vmatpush1.msra.mxu0 0.0
    %2933 = vmatprep.subr.mxu0 0.0
    %2934 = vmatpush1.msra.mxu0 0.0
    %2935 = vmatprep.subr.mxu0 0.0
    %2936 = vmatpush1.msra.mxu0 0.0
    %2937 = vmatprep.subr.mxu0 0.0
    %2938 = vmatpush1.msra.mxu0 0.0
    %2939 = vmatprep.subr.mxu0 0.0
    %2940 = vmatpush1.msra.mxu0 0.0
    %2941 = vmatprep.subr.mxu0 0.0
    %2942 = vmatpush1.msra.mxu0 0.0
    %2943 = vmatprep.subr.mxu0 0.0
    %2944 = vmatpush1.msra.mxu0 0.0
    %2945 = vmatprep.subr.mxu0 0.0
    %2946 = vmatpush1.msra.mxu0 0.0
    %2947 = vmatprep.subr.mxu0 0.0
    %2948 = vmatpush1.msra.mxu0 0.0
    %2949 = vmatprep.subr.mxu0 0.0
    %2950 = vmatpush1.msra.mxu0 0.0
    %2951 = vmatprep.subr.mxu0 0.0
    %2952 = vmatpush1.msra.mxu0 0.0
    %2953 = vmatprep.subr.mxu0 0.0
    %2954 = vmatpush1.msra.mxu0 0.0
    %2955 = vmatprep.subr.mxu0 0.0
    %2956 = vmatpush1.msra.mxu0 0.0
    %2957 = vmatprep.mubr.f32.mxu0 0.0
    %2958 = vmatmul.mubr.f32.gmra.mrb[0].mxu0 %v2891
    %v2959 = vpop.f32.mrb[0].mxu0
    %v2960 = vadd.f32 0.0, %v2959
    %v2961 = vpop.f32.mrb[0].mxu0
    %2962 = vdwg.mxu0
    %v2963 = vadd.f32 %v1343, %v2960
    %v2964 = vsub.f32 0.0, %v2963
    %v2965 = vmul.f32 %v2964, 1.442695
    %v2966 = vpow.pop %v2965
    %v2967 = vadd.f32 %v2966, 1.0
    %v2968 = vrcp.pop %v2967
    %v2969 = vmul.f32 %v2968, 2.0
    %v2970 = vsub.f32 %v2969, 1.0
    %v2971 = vmul.f32 %v2968, %v2866
    %2973 = vrot.lane.b32.xlu0 %v2970, 64
    %v2974 = vpop.permute.xlu0 %2973
    %v2976 = vmul.f32 %v2968, %v2974
    %2978 = vrot.lane.b32.xlu0 %v2976, 32
    %v2979 = vpop.permute.xlu0 %2978
    %v2981 = vadd.f32 %v2971, %v2979
    %v2982 = vtanh.pop %v2981
    %2984 = vrot.lane.b32.xlu0 %v2982, 64
    %v2985 = vpop.permute.xlu0 %2984
    %v2987 = vmul.f32 %v2968, %v2985
    %v2988 = vmul.f32 %v2987, %v1370
    %2990 = vrot.lane.b32.xlu0 %v2988, 32
    %v2991 = vpop.permute.xlu0 %2990
    %v2993 = vsel %vm1377, %v2991, 0.0
    %2994 = vadd.xlane.f32.xlu0 %v2993
    %v2995 = vpop.xlane.xlu0 %2994
    %v2996 = vadd.f32 %v2995, %v71
    %2998 = vrot.lane.b32.xlu0 %v2996, 110
    %v2999 = vpop.permute.xlu0 %2998
    %vm3001 = vcmask 115824
    %3002 = vst.msk [vmem:[#allocation5] sm:$0x3] %vm3001, %v2999
    %3004 = vrot.lane.b32.xlu0 %v2987, 32
    %v3005 = vpop.permute.xlu0 %3004
    %v3006 = vsel %vm1391, %v3005, 0
    %3008 = vmatprep.subr.mxu0 0.0
    %3009 = vmatpush1.msra.mxu0 %v42
    %3010 = vmatprep.subr.mxu0 0.0
    %3011 = vmatpush1.msra.mxu0 %v43
    %3012 = vmatprep.subr.mxu0 0.0
    %3013 = vmatpush1.msra.mxu0 %v44
    %3014 = vmatprep.subr.mxu0 0.0
    %3015 = vmatpush1.msra.mxu0 %v45
    %3016 = vmatprep.subr.mxu0 0.0
    %3017 = vmatpush1.msra.mxu0 0.0
    %3018 = vmatprep.subr.mxu0 0.0
    %3019 = vmatpush1.msra.mxu0 0.0
    %3020 = vmatprep.subr.mxu0 0.0
    %3021 = vmatpush1.msra.mxu0 0.0
    %3022 = vmatprep.subr.mxu0 0.0
    %3023 = vmatpush1.msra.mxu0 0.0
    %3024 = vmatprep.subr.mxu0 0.0
    %3025 = vmatpush1.msra.mxu0 0.0
    %3026 = vmatprep.subr.mxu0 0.0
    %3027 = vmatpush1.msra.mxu0 0.0
    %3028 = vmatprep.subr.mxu0 0.0
    %3029 = vmatpush1.msra.mxu0 0.0
    %3030 = vmatprep.subr.mxu0 0.0
    %3031 = vmatpush1.msra.mxu0 0.0
    %3032 = vmatprep.subr.mxu0 0.0
    %3033 = vmatpush1.msra.mxu0 0.0
    %3034 = vmatprep.subr.mxu0 0.0
    %3035 = vmatpush1.msra.mxu0 0.0
    %3036 = vmatprep.subr.mxu0 0.0
    %3037 = vmatpush1.msra.mxu0 0.0
    %3038 = vmatprep.subr.mxu0 0.0
    %3039 = vmatpush1.msra.mxu0 0.0
    %3040 = vmatprep.subr.mxu0 0.0
    %3041 = vmatpush1.msra.mxu0 0.0
    %3042 = vmatprep.subr.mxu0 0.0
    %3043 = vmatpush1.msra.mxu0 0.0
    %3044 = vmatprep.subr.mxu0 0.0
    %3045 = vmatpush1.msra.mxu0 0.0
    %3046 = vmatprep.subr.mxu0 0.0
    %3047 = vmatpush1.msra.mxu0 0.0
    %3048 = vmatprep.subr.mxu0 0.0
    %3049 = vmatpush1.msra.mxu0 0.0
    %3050 = vmatprep.subr.mxu0 0.0
    %3051 = vmatpush1.msra.mxu0 0.0
    %3052 = vmatprep.subr.mxu0 0.0
    %3053 = vmatpush1.msra.mxu0 0.0
    %3054 = vmatprep.subr.mxu0 0.0
    %3055 = vmatpush1.msra.mxu0 0.0
    %3056 = vmatprep.subr.mxu0 0.0
    %3057 = vmatpush1.msra.mxu0 0.0
    %3058 = vmatprep.subr.mxu0 0.0
    %3059 = vmatpush1.msra.mxu0 0.0
    %3060 = vmatprep.subr.mxu0 0.0
    %3061 = vmatpush1.msra.mxu0 0.0
    %3062 = vmatprep.subr.mxu0 0.0
    %3063 = vmatpush1.msra.mxu0 0.0
    %3064 = vmatprep.subr.mxu0 0.0
    %3065 = vmatpush1.msra.mxu0 0.0
    %3066 = vmatprep.subr.mxu0 0.0
    %3067 = vmatpush1.msra.mxu0 0.0
    %3068 = vmatprep.subr.mxu0 0.0
    %3069 = vmatpush1.msra.mxu0 0.0
    %3070 = vmatprep.subr.mxu0 0.0
    %3071 = vmatpush1.msra.mxu0 0.0
    %3072 = vmatprep.mubr.f32.mxu0 0.0
    %3073 = vmatmul.mubr.f32.gmra.mrb[0].mxu0 %v3006
    %v3074 = vpop.f32.mrb[0].mxu0
    %v3075 = vadd.f32 0.0, %v3074
    %v3076 = vpop.f32.mrb[0].mxu0
    %3077 = vdwg.mxu0
    %v3078 = vadd.f32 %v1349, %v3075
    %v3079 = vsub.f32 0.0, %v3078
    %v3080 = vmul.f32 %v3079, 1.442695
    %v3081 = vpow.pop %v3080
    %v3082 = vadd.f32 %v3081, 1.0
    %v3083 = vrcp.pop %v3082
    %v3084 = vmul.f32 %v3083, 2.0
    %v3085 = vsub.f32 %v3084, 1.0
    %v3086 = vmul.f32 %v3083, %v2981
    %3088 = vrot.lane.b32.xlu0 %v3085, 64
    %v3089 = vpop.permute.xlu0 %3088
    %v3091 = vmul.f32 %v3083, %v3089
    %3093 = vrot.lane.b32.xlu0 %v3091, 32
    %v3094 = vpop.permute.xlu0 %3093
    %v3096 = vadd.f32 %v3086, %v3094
    %v3097 = vtanh.pop %v3096
    %3099 = vrot.lane.b32.xlu0 %v3097, 64
    %v3100 = vpop.permute.xlu0 %3099
    %v3102 = vmul.f32 %v3083, %v3100
    %v3103 = vmul.f32 %v3102, %v1370
    %3105 = vrot.lane.b32.xlu0 %v3103, 32
    %v3106 = vpop.permute.xlu0 %3105
    %v3108 = vsel %vm1377, %v3106, 0.0
    %3109 = vadd.xlane.f32.xlu0 %v3108
    %v3110 = vpop.xlane.xlu0 %3109
    %v3111 = vadd.f32 %v3110, %v71
    %3113 = vrot.lane.b32.xlu0 %v3111, 111
    %v3114 = vpop.permute.xlu0 %3113
    %vm3116 = vcmask 124024
    %3117 = vst.msk [vmem:[#allocation5] sm:$0x3] %vm3116, %v3114
    // Predicated region
    $region14: #{closed_form_forward.1} parent=1 // pred_check
      _
    $region15: #{closed_form_forward.1} parent=1 // pred_check_branch
      %3119 = sbr.rel (0) target = $region17
    $region16: #{closed_form_forward.1} parent=1 // pred_region
      %s3121 = ssub.s32 32, 32
      %3122 = vsyncadd [#allocation4], %s3121
      %s3124 = sshll.u32 [#allocation5], 4
      %s3125 = int_to_ptr.vmem [resolvable:$true] %s3124
      %3127 = dma.vmem_to_hbm [thread:$0]  %s3125, 32, %s2, [#allocation4]
    $region17: #{closed_form_forward.1} parent=1 // pred_fallthru
      _
    // Predicated region
    $region18: #{closed_form_forward.1} parent=1 // pred_check
      _
    $region19: #{closed_form_forward.1} parent=1 // pred_check_branch
      %3129 = sbr.rel (0) target = $region21
    $region20: #{closed_form_forward.1} parent=1 // pred_region
      %3130 = dma.done [#allocation4], 32
    $region21: #{closed_form_forward.1} parent=1 // pred_fallthru
      _
    %3131 = vsyncpa [#allocation3], 1
    %3132 = vsyncpa [#allocation4], 1

</llo_original>
